<compile_context>
chip_gen: v7x
topology: tpu7x:2x2x1
jax: 0.10.0
libtpu: 0.0.40
codegen_flags: <defaults>
</compile_context>

<pallas_src>
import jax
import jax.numpy as jnp
import numpy as np
from jax.experimental import pallas as pl
from jax.experimental.pallas import tpu as pltpu

# --- small CLIP-text-like config (toy dims chosen lane-dense: every matmul /
#     slice last dim is a multiple of 128; HD == 128). ---
VOCAB = 64
SEQ = 8            # stands in for max_length=77 (pad to 128 at real dims)
D = 256            # hidden size (multiple of 128)
H = 2              # attention heads
HD = D // H        # 128 -> head slices are full-lane aligned
MLP = 4 * D
LAYERS = 2
BATCH = 2


def _layer_norm(x, g, b, eps=1e-5):
    mu = jnp.mean(x, axis=-1, keepdims=True)
    var = jnp.mean((x - mu) ** 2, axis=-1, keepdims=True)
    return (x - mu) * jax.lax.rsqrt(var + eps) * g + b


def _quick_gelu(x):
    # CLIP uses quick_gelu: x * sigmoid(1.702 * x)
    return x * jax.nn.sigmoid(1.702 * x)


def clip_text_kernel(x0_ref, mask_ref,
                     ln1_g_ref, ln1_b_ref,
                     wqkv_ref, bqkv_ref, wo_ref, bo_ref,
                     ln2_g_ref, ln2_b_ref,
                     w1_ref, b1_ref, w2_ref, b2_ref,
                     lnf_g_ref, lnf_b_ref,
                     out_ref, ctx_ref):
    """One (batch-tile, layer) grid step: update the resident activation tile."""
    l = pl.program_id(1)
    n_layers = pl.num_programs(1)
    bt, seq, d = out_ref.shape
    m = bt * seq

    # Layer 0: seed the resident activation from the (aliased) embeddings.
    @pl.when(l == 0)
    def _init():
        out_ref[...] = x0_ref[...]

    x = out_ref[...].reshape(m, d)          # (M, D) f32 residual stream
    causal = mask_ref[...]                  # (S, S) additive causal mask (shared input)

    # ----------------- self-attention (pre-LN, causal, fused QKV) -----------------
    h = _layer_norm(x, ln1_g_ref[0], ln1_b_ref[0])
    # 1/sqrt(HD) is already folded into the Q third of wqkv / bqkv at prep time;
    # cast to bf16 once (single store of the (M, 3D) temp).
    qkv = (jnp.dot(h.astype(jnp.bfloat16), wqkv_ref[0],
                   preferred_element_type=jnp.float32) + bqkv_ref[0]
           ).astype(jnp.bfloat16)           # (M, 3D)

    # Static unroll over H=2 heads (128-lane slices).  Each head's context is
    # written into a lane-aligned VMEM scratch so the output projection is one
    # (M, D) x (D, D) matmul instead of H matmuls with K=HD.
    for hh in range(H):
        q = qkv[:, hh * HD:(hh + 1) * HD].reshape(bt, seq, HD)
        k = qkv[:, d + hh * HD:d + (hh + 1) * HD].reshape(bt, seq, HD)
        v = qkv[:, 2 * d + hh * HD:2 * d + (hh + 1) * HD].reshape(bt, seq, HD)

        s = jnp.einsum('bqd,bkd->bqk', q, k,
                       preferred_element_type=jnp.float32)        # (Bt, S, S)
        s = s + causal[None]
        mx = jnp.max(s, axis=-1, keepdims=True)
        p = jnp.exp(s - mx)
        p = p * pl.reciprocal(jnp.sum(p, axis=-1, keepdims=True), approx=True)

        ctx = jnp.einsum('bqk,bkd->bqd', p.astype(jnp.bfloat16), v,
                         preferred_element_type=jnp.float32)      # (Bt, S, HD)
        ctx_ref[:, hh * HD:(hh + 1) * HD] = ctx.reshape(m, HD).astype(jnp.bfloat16)

    attn = jnp.dot(ctx_ref[...], wo_ref[0],
                   preferred_element_type=jnp.float32) + bo_ref[0]
    x = x + attn

    # ------------------------- MLP (pre-LN, quick-GELU) ---------------------------
    h = _layer_norm(x, ln2_g_ref[0], ln2_b_ref[0])
    h1 = jnp.dot(h.astype(jnp.bfloat16), w1_ref[0],
                 preferred_element_type=jnp.float32) + b1_ref[0]
    g = _quick_gelu(h1)
    h2 = jnp.dot(g.astype(jnp.bfloat16), w2_ref[0],
                 preferred_element_type=jnp.float32) + b2_ref[0]
    x = x + h2

    @pl.when(l < n_layers - 1)
    def _carry():
        out_ref[...] = x.reshape(bt, seq, d)

    @pl.when(l == n_layers - 1)
    def _finalize():
        out_ref[...] = _layer_norm(
            x, lnf_g_ref[...], lnf_b_ref[...]).reshape(bt, seq, d)


# ------------------------- one-time frozen-parameter prep ------------------------
def prepare_params(params):
    """Fold scale into Wq/bq, cast matmul weights to bf16, build causal mask.

    Run ONCE at init (the model is frozen) so no per-forward convert ops remain.
    """
    scale = 1.0 / np.sqrt(HD)
    wqkv_scaled = params["wqkv"].at[:, :, :D].multiply(scale)
    bqkv_scaled = params["bqkv"].at[:, :, :D].multiply(scale)

    rows = jax.lax.broadcasted_iota(jnp.int32, (SEQ, SEQ), 0)
    cols = jax.lax.broadcasted_iota(jnp.int32, (SEQ, SEQ), 1)

    prepped = dict(params)
    prepped.update(
        wqkv_bf16=wqkv_scaled.astype(jnp.bfloat16),
        bqkv_scaled=bqkv_scaled,
        wo_bf16=params["wo"].astype(jnp.bfloat16),
        w1_bf16=params["w1"].astype(jnp.bfloat16),
        w2_bf16=params["w2"].astype(jnp.bfloat16),
        causal_mask=jnp.where(cols <= rows, 0.0, -1e9).astype(jnp.float32),
    )
    return prepped


@jax.jit
def clip_text_forward(tokens, p):
    """tokens: (B, S) int32 ids -> last_hidden_state (B, S, D) float32."""
    # TODO(synk): CLIPTokenizer (text -> ids) has no Pallas equivalent; ids are inputs.
    # Token-embedding row gather stays in the wrapper; it could be moved in-kernel
    # via PrefetchScalarGridSpec(num_scalar_prefetch=1) + pl.Element row gather.
    tok_emb = jnp.take(p["token_embedding"], tokens, axis=0)         # (B, S, D)
    x0 = tok_emb + p["pos_emb"][None]                                # embeddings
    B, S, Dm = x0.shape
    Bt = B                      # whole batch per grid step at toy size
    assert B % Bt == 0
    M = Bt * S

    def per_layer(shape):
        # (LAYERS, ...) stacked parameter, streamed one layer per grid step.
        return pl.BlockSpec((1,) + shape, lambda b, l: (l,) + (0,) * len(shape))

    def shared(shape):
        return pl.BlockSpec(shape, lambda b, l: (0,) * len(shape))

    in_specs = [
        pl.BlockSpec((Bt, S, Dm), lambda b, l: (b, 0, 0)),    # x0 (aliased to output)
        shared((S, S)),                                       # causal mask
        per_layer((1, Dm)), per_layer((1, Dm)),               # ln1 gamma / beta
        per_layer((Dm, 3 * Dm)), per_layer((1, 3 * Dm)),      # wqkv (bf16), bqkv
        per_layer((Dm, Dm)), per_layer((1, Dm)),              # wo (bf16), bo
        per_layer((1, Dm)), per_layer((1, Dm)),               # ln2 gamma / beta
        per_layer((Dm, MLP)), per_layer((1, MLP)),            # w1 (bf16), b1
        per_layer((MLP, Dm)), per_layer((1, Dm)),             # w2 (bf16), b2
        shared((1, Dm)), shared((1, Dm)),                     # final LN gamma / beta
    ]
    out_spec = pl.BlockSpec((Bt, S, Dm), lambda b, l: (b, 0, 0))  # resident across l

    # Advisory cost hint for XLA scheduling around the custom call.
    matmul_flops = 2 * M * Dm * (3 * Dm) + 2 * M * Dm * Dm + 4 * M * Dm * MLP
    attn_flops = 4 * H * Bt * S * S * HD
    weight_bytes = 2 * (Dm * 3 * Dm + Dm * Dm + 2 * Dm * MLP)        # bf16 per layer
    cost = pl.CostEstimate(
        flops=LAYERS * (matmul_flops + attn_flops),
        transcendentals=LAYERS * (H * Bt * S * S + M * MLP),
        bytes_accessed=LAYERS * weight_bytes + 2 * 4 * B * S * Dm,
    )

    return pl.pallas_call(
        clip_text_kernel,
        out_shape=jax.ShapeDtypeStruct((B, S, Dm), jnp.float32),
        grid_spec=pltpu.PrefetchScalarGridSpec(
            num_scalar_prefetch=0,
            grid=(B // Bt, LAYERS),        # layers stream on the last (arbitrary) axis
            in_specs=in_specs,
            out_specs=out_spec,
            scratch_shapes=[pltpu.VMEM((M, Dm), jnp.bfloat16)],      # per-head ctx slab
        ),
        # Donate the embedding buffer to the output (it is only read at l == 0).
        input_output_aliases={0: 0},
        compiler_params=pltpu.CompilerParams(
            # batch axis parallel (megacore) once B//Bt >= 2; layer axis is a
            # sequential carry over the resident activation block.
            dimension_semantics=("parallel", "arbitrary"),
            # Explicit scoped-VMEM budget: safe on every generation (<= 64 MiB
            # physical on v7x) and large enough for double-buffered weight
            # streaming at real CLIP dims.
            vmem_limit_bytes=48 * 1024 * 1024,
        ),
        cost_estimate=cost,
    )(x0, p["causal_mask"],
      p["ln1_g"], p["ln1_b"],
      p["wqkv_bf16"], p["bqkv_scaled"], p["wo_bf16"], p["bo"],
      p["ln2_g"], p["ln2_b"],
      p["w1_bf16"], p["b1"], p["w2_bf16"], p["b2"],
      p["lnf_g"], p["lnf_b"])


# ----------------------------- pure-JAX f32 reference ---------------------------
def clip_text_ref(tokens, params):
    x = jnp.take(params["token_embedding"], tokens, axis=0) + params["pos_emb"][None]
    B, S, Dm = x.shape
    rows = jax.lax.broadcasted_iota(jnp.int32, (S, S), 0)
    cols = jax.lax.broadcasted_iota(jnp.int32, (S, S), 1)
    causal = jnp.where(cols <= rows, 0.0, -1e9).astype(jnp.float32)
    scale = 1.0 / np.sqrt(HD)
    for l in range(LAYERS):
        h = _layer_norm(x, params["ln1_g"][l], params["ln1_b"][l])
        qkv = h @ params["wqkv"][l] + params["bqkv"][l]
        q, k, v = jnp.split(qkv, 3, axis=-1)
        q = q.reshape(B, S, H, HD).transpose(0, 2, 1, 3)
        k = k.reshape(B, S, H, HD).transpose(0, 2, 1, 3)
        v = v.reshape(B, S, H, HD).transpose(0, 2, 1, 3)
        s = jnp.einsum('bhqd,bhkd->bhqk', q, k) * scale + causal
        p = jax.nn.softmax(s, axis=-1)
        ctx = jnp.einsum('bhqk,bhkd->bhqd', p, v)
        ctx = ctx.transpose(0, 2, 1, 3).reshape(B, S, Dm)
        x = x + ctx @ params["wo"][l] + params["bo"][l]
        h = _layer_norm(x, params["ln2_g"][l], params["ln2_b"][l])
        h = _quick_gelu(h @ params["w1"][l] + params["b1"][l])
        x = x + h @ params["w2"][l] + params["b2"][l]
    return _layer_norm(x, params["lnf_g"], params["lnf_b"])


# ----------------------------- parameter init ------------------------------------
def init_params(key):
    ks = jax.random.split(key, 12)
    s = 0.02

    def rnd(i, shape):
        return s * jax.random.normal(ks[i], shape, jnp.float32)

    return {
        "token_embedding": rnd(0, (VOCAB, D)),
        "pos_emb":         rnd(1, (SEQ, D)),
        "ln1_g": 1.0 + rnd(2, (LAYERS, 1, D)),
        "ln1_b": rnd(3, (LAYERS, 1, D)),
        "wqkv":  rnd(4, (LAYERS, D, 3 * D)),        # fused [Wq | Wk | Wv]
        "bqkv":  rnd(5, (LAYERS, 1, 3 * D)),
        "wo":    rnd(6, (LAYERS, D, D)),
        "bo":    rnd(7, (LAYERS, 1, D)),
        "ln2_g": 1.0 + rnd(8, (LAYERS, 1, D)),
        "ln2_b": rnd(9, (LAYERS, 1, D)),
        "w1":    rnd(10, (LAYERS, D, MLP)),
        "b1":    jnp.zeros((LAYERS, 1, MLP), jnp.float32),
        "w2":    rnd(11, (LAYERS, MLP, D)),
        "b2":    jnp.zeros((LAYERS, 1, D), jnp.float32),
        "lnf_g": jnp.ones((1, D), jnp.float32),
        "lnf_b": jnp.zeros((1, D), jnp.float32),
    }


if __name__ == "__main__":
    key = jax.random.PRNGKey(0)
    pkey, tkey = jax.random.split(key)
    params = init_params(pkey)
    prepped = prepare_params(params)     # one-time prep (frozen model)

    # "tokenized text": batch of 2 sequences padded to max_length=SEQ
    tokens = jax.random.randint(tkey, (BATCH, SEQ), 0, VOCAB, dtype=jnp.int32)

    z = jax.block_until_ready(clip_text_forward(tokens, prepped))   # last_hidden_state
    z_ref = jax.block_until_ready(clip_text_ref(tokens, params))

    # Kernel uses bf16 MXU operands + EUP approx reciprocal vs. the exact f32
    # reference, so validate with a correspondingly looser tolerance.
    np.testing.assert_allclose(np.asarray(z), np.asarray(z_ref), rtol=5e-2, atol=5e-2)
    assert z.shape == (BATCH, SEQ, D) and z.dtype == jnp.float32

    print("KERNEL_OK")
</pallas_src>

<mosaic_0001>
module attributes {stable_mosaic.version = 11 : i64} {
  func.func @clip_text_kernel(%arg0: i32, %arg1: i32, %arg2: memref<2x8x256xf32, #tpu.memory_space<vmem>>, %arg3: memref<8x8xf32, #tpu.memory_space<vmem>>, %arg4: memref<1x1x256xf32, #tpu.memory_space<vmem>>, %arg5: memref<1x1x256xf32, #tpu.memory_space<vmem>>, %arg6: memref<1x256x768xbf16, #tpu.memory_space<vmem>>, %arg7: memref<1x1x768xf32, #tpu.memory_space<vmem>>, %arg8: memref<1x256x256xbf16, #tpu.memory_space<vmem>>, %arg9: memref<1x1x256xf32, #tpu.memory_space<vmem>>, %arg10: memref<1x1x256xf32, #tpu.memory_space<vmem>>, %arg11: memref<1x1x256xf32, #tpu.memory_space<vmem>>, %arg12: memref<1x256x1024xbf16, #tpu.memory_space<vmem>>, %arg13: memref<1x1x1024xf32, #tpu.memory_space<vmem>>, %arg14: memref<1x1024x256xbf16, #tpu.memory_space<vmem>>, %arg15: memref<1x1x256xf32, #tpu.memory_space<vmem>>, %arg16: memref<1x256xf32, #tpu.memory_space<vmem>>, %arg17: memref<1x256xf32, #tpu.memory_space<vmem>>, %arg18: memref<2x8x256xf32, #tpu.memory_space<vmem>>, %arg19: memref<16x256xbf16, #tpu.memory_space<vmem>>) attributes {dimension_semantics = [#tpu.dimension_semantics<parallel>, #tpu.dimension_semantics<arbitrary>], iteration_bounds = array<i64: 1, 2>, scalar_prefetch = 0 : i64, scratch_operands = 1 : i64, tpu.core_type = #tpu.core_type<tc>, window_params = [{transform_indices = @transform_0, window_bounds = array<i64: 2, 8, 256>}, {pipeline_mode = #tpu.pipeline_mode<synchronous>, transform_indices = @transform_1, window_bounds = array<i64: 8, 8>}, {transform_indices = @transform_2, window_bounds = array<i64: 1, 1, 256>}, {transform_indices = @transform_3, window_bounds = array<i64: 1, 1, 256>}, {transform_indices = @transform_4, window_bounds = array<i64: 1, 256, 768>}, {transform_indices = @transform_5, window_bounds = array<i64: 1, 1, 768>}, {transform_indices = @transform_6, window_bounds = array<i64: 1, 256, 256>}, {transform_indices = @transform_7, window_bounds = array<i64: 1, 1, 256>}, {transform_indices = @transform_8, window_bounds = array<i64: 1, 1, 256>}, {transform_indices = @transform_9, window_bounds = array<i64: 1, 1, 256>}, {transform_indices = @transform_10, window_bounds = array<i64: 1, 256, 1024>}, {transform_indices = @transform_11, window_bounds = array<i64: 1, 1, 1024>}, {transform_indices = @transform_12, window_bounds = array<i64: 1, 1024, 256>}, {transform_indices = @transform_13, window_bounds = array<i64: 1, 1, 256>}, {pipeline_mode = #tpu.pipeline_mode<synchronous>, transform_indices = @transform_14, window_bounds = array<i64: 1, 256>}, {pipeline_mode = #tpu.pipeline_mode<synchronous>, transform_indices = @transform_15, window_bounds = array<i64: 1, 256>}, {transform_indices = @transform_16, window_bounds = array<i64: 2, 8, 256>}]} {
    %c0_i32 = arith.constant 0 : i32
    %0 = arith.cmpi eq, %arg1, %c0_i32 : i32
    %1 = arith.extui %0 : i1 to i32
    %c0_i32_0 = arith.constant 0 : i32
    %2 = arith.cmpi ne, %1, %c0_i32_0 : i32
    scf.if %2 {
      %c0_72 = arith.constant 0 : index
      %c0_73 = arith.constant 0 : index
      %c0_74 = arith.constant 0 : index
      %157 = vector.load %arg2[%c0_72, %c0_73, %c0_74] : memref<2x8x256xf32, #tpu.memory_space<vmem>>, vector<2x8x256xf32>
      %c0_75 = arith.constant 0 : index
      %c0_76 = arith.constant 0 : index
      %c0_77 = arith.constant 0 : index
      %158 = vector.load %arg18[%c0_75, %c0_76, %c0_77] : memref<2x8x256xf32, #tpu.memory_space<vmem>>, vector<2x8x256xf32>
      tpu.vector_store %arg18[%c0_75, %c0_76, %c0_77], %157 {strides = array<i32>} : memref<2x8x256xf32, #tpu.memory_space<vmem>>, vector<2x8x256xf32>,
    } else {
    }
    %c0 = arith.constant 0 : index
    %c0_1 = arith.constant 0 : index
    %c0_2 = arith.constant 0 : index
    %3 = vector.load %arg18[%c0, %c0_1, %c0_2] : memref<2x8x256xf32, #tpu.memory_space<vmem>>, vector<2x8x256xf32>
    %4 = vector.shape_cast %3 : vector<2x8x256xf32> to vector<16x256xf32>
    %c0_3 = arith.constant 0 : index
    %c0_4 = arith.constant 0 : index
    %5 = vector.load %arg3[%c0_3, %c0_4] : memref<8x8xf32, #tpu.memory_space<vmem>>, vector<8x8xf32>
    %c0_5 = arith.constant 0 : index
    %c0_6 = arith.constant 0 : index
    %c0_7 = arith.constant 0 : index
    %6 = vector.load %arg4[%c0_5, %c0_6, %c0_7] : memref<1x1x256xf32, #tpu.memory_space<vmem>>, vector<1x1x256xf32>
    %7 = vector.shape_cast %6 : vector<1x1x256xf32> to vector<1x256xf32>
    %c0_8 = arith.constant 0 : index
    %c0_9 = arith.constant 0 : index
    %c0_10 = arith.constant 0 : index
    %8 = vector.load %arg5[%c0_8, %c0_9, %c0_10] : memref<1x1x256xf32, #tpu.memory_space<vmem>>, vector<1x1x256xf32>
    %9 = vector.shape_cast %8 : vector<1x1x256xf32> to vector<1x256xf32>
    %cst = arith.constant dense<0.000000e+00> : vector<16xf32>
    %10 = vector.multi_reduction <add>, %4, %cst [1] : vector<16x256xf32> to vector<16xf32>
    %11 = vector.shape_cast %10 : vector<16xf32> to vector<16x1xf32>
    %cst_11 = arith.constant 2.560000e+02 : f32
    %12 = vector.broadcast %cst_11 : f32 to vector<16x1xf32>
    %13 = arith.divf %11, %12 : vector<16x1xf32>
    %14 = vector.broadcast %13 : vector<16x1xf32> to vector<16x256xf32>
    %15 = arith.subf %4, %14 : vector<16x256xf32>
    %16 = arith.mulf %15, %15 : vector<16x256xf32>
    %cst_12 = arith.constant dense<0.000000e+00> : vector<16xf32>
    %17 = vector.multi_reduction <add>, %16, %cst_12 [1] : vector<16x256xf32> to vector<16xf32>
    %18 = vector.shape_cast %17 : vector<16xf32> to vector<16x1xf32>
    %cst_13 = arith.constant 2.560000e+02 : f32
    %19 = vector.broadcast %cst_13 : f32 to vector<16x1xf32>
    %20 = arith.divf %18, %19 : vector<16x1xf32>
    %21 = vector.broadcast %13 : vector<16x1xf32> to vector<16x256xf32>
    %22 = arith.subf %4, %21 : vector<16x256xf32>
    %cst_14 = arith.constant 9.99999974E-6 : f32
    %23 = vector.broadcast %cst_14 : f32 to vector<16x1xf32>
    %24 = arith.addf %20, %23 : vector<16x1xf32>
    %25 = math.rsqrt %24 : vector<16x1xf32>
    %26 = vector.broadcast %25 : vector<16x1xf32> to vector<16x256xf32>
    %27 = arith.mulf %22, %26 : vector<16x256xf32>
    %28 = vector.broadcast %7 : vector<1x256xf32> to vector<16x256xf32>
    %29 = arith.mulf %27, %28 : vector<16x256xf32>
    %30 = vector.broadcast %9 : vector<1x256xf32> to vector<16x256xf32>
    %31 = arith.addf %29, %30 : vector<16x256xf32>
    %32 = arith.truncf %31 : vector<16x256xf32> to vector<16x256xbf16>
    %c0_15 = arith.constant 0 : index
    %c0_16 = arith.constant 0 : index
    %c0_17 = arith.constant 0 : index
    %33 = vector.load %arg6[%c0_15, %c0_16, %c0_17] : memref<1x256x768xbf16, #tpu.memory_space<vmem>>, vector<1x256x768xbf16>
    %34 = vector.shape_cast %33 : vector<1x256x768xbf16> to vector<256x768xbf16>
    %cst_18 = arith.constant dense<0.000000e+00> : vector<16x768xf32>
    %35 = tpu.matmul %32, %34, %cst_18 {dimension_numbers = #tpu.dot_dimension_numbers<[1], [0], [0], [1], [0, 0, 1, 1], [], []>} : vector<16x256xbf16>, vector<256x768xbf16>, vector<16x768xf32> -> vector<16x768xf32>
    %c0_19 = arith.constant 0 : index
    %c0_20 = arith.constant 0 : index
    %c0_21 = arith.constant 0 : index
    %36 = vector.load %arg7[%c0_19, %c0_20, %c0_21] : memref<1x1x768xf32, #tpu.memory_space<vmem>>, vector<1x1x768xf32>
    %37 = vector.shape_cast %36 : vector<1x1x768xf32> to vector<1x768xf32>
    %38 = vector.broadcast %37 : vector<1x768xf32> to vector<16x768xf32>
    %39 = arith.addf %35, %38 : vector<16x768xf32>
    %40 = arith.truncf %39 : vector<16x768xf32> to vector<16x768xbf16>
    %41 = vector.extract_strided_slice %40 {offsets = [0, 0], sizes = [16, 128], strides = [1, 1]} : vector<16x768xbf16> to vector<16x128xbf16>
    %42 = vector.shape_cast %41 : vector<16x128xbf16> to vector<2x8x128xbf16>
    %43 = vector.extract_strided_slice %40 {offsets = [0, 256], sizes = [16, 128], strides = [1, 1]} : vector<16x768xbf16> to vector<16x128xbf16>
    %44 = vector.shape_cast %43 : vector<16x128xbf16> to vector<2x8x128xbf16>
    %45 = vector.extract_strided_slice %40 {offsets = [0, 512], sizes = [16, 128], strides = [1, 1]} : vector<16x768xbf16> to vector<16x128xbf16>
    %46 = vector.shape_cast %45 : vector<16x128xbf16> to vector<2x8x128xbf16>
    "tpu.trace_start"() <{level = 10 : i32, message = "bqd,bkd->bqk"}> : () -> ()
    %cst_22 = arith.constant dense<0.000000e+00> : vector<2x8x8xf32>
    %47 = tpu.matmul %42, %44, %cst_22 {dimension_numbers = #tpu.dot_dimension_numbers<[2], [2], [1], [1], [0, 0, 0, 1, 1, 1], [0], [0]>} : vector<2x8x128xbf16>, vector<2x8x128xbf16>, vector<2x8x8xf32> -> vector<2x8x8xf32>
    "tpu.trace_stop"() : () -> ()
    %48 = vector.shape_cast %5 : vector<8x8xf32> to vector<1x8x8xf32>
    %49 = vector.broadcast %48 : vector<1x8x8xf32> to vector<2x8x8xf32>
    %50 = arith.addf %47, %49 : vector<2x8x8xf32>
    %cst_23 = arith.constant dense<0xFF800000> : vector<2x8xf32>
    %51 = vector.multi_reduction <maximumf>, %50, %cst_23 [2] : vector<2x8x8xf32> to vector<2x8xf32>
    %52 = vector.shape_cast %51 : vector<2x8xf32> to vector<2x8x1xf32>
    %53 = vector.broadcast %52 : vector<2x8x1xf32> to vector<2x8x8xf32>
    %54 = arith.subf %50, %53 : vector<2x8x8xf32>
    %55 = math.exp %54 : vector<2x8x8xf32>
    %cst_24 = arith.constant dense<0.000000e+00> : vector<2x8xf32>
    %56 = vector.multi_reduction <add>, %55, %cst_24 [2] : vector<2x8x8xf32> to vector<2x8xf32>
    %57 = vector.shape_cast %56 : vector<2x8xf32> to vector<2x8x1xf32>
    %58 = tpu.reciprocal %57 {approx = true} : vector<2x8x1xf32> -> vector<2x8x1xf32>
    %59 = vector.broadcast %58 : vector<2x8x1xf32> to vector<2x8x8xf32>
    %60 = arith.mulf %55, %59 : vector<2x8x8xf32>
    %61 = arith.truncf %60 : vector<2x8x8xf32> to vector<2x8x8xbf16>
    "tpu.trace_start"() <{level = 10 : i32, message = "bqk,bkd->bqd"}> : () -> ()
    %cst_25 = arith.constant dense<0.000000e+00> : vector<2x8x128xf32>
    %62 = tpu.matmul %61, %46, %cst_25 {dimension_numbers = #tpu.dot_dimension_numbers<[2], [1], [1], [2], [0, 0, 0, 1, 1, 2], [0], [0]>} : vector<2x8x8xbf16>, vector<2x8x128xbf16>, vector<2x8x128xf32> -> vector<2x8x128xf32>
    "tpu.trace_stop"() : () -> ()
    %63 = vector.shape_cast %62 : vector<2x8x128xf32> to vector<16x128xf32>
    %64 = arith.truncf %63 : vector<16x128xf32> to vector<16x128xbf16>
    %c0_26 = arith.constant 0 : index
    %c0_27 = arith.constant 0 : index
    %65 = vector.load %arg19[%c0_26, %c0_27] : memref<16x256xbf16, #tpu.memory_space<vmem>>, vector<16x128xbf16>
    tpu.vector_store %arg19[%c0_26, %c0_27], %64 {strides = array<i32>} : memref<16x256xbf16, #tpu.memory_space<vmem>>, vector<16x128xbf16>,
    %66 = vector.extract_strided_slice %40 {offsets = [0, 128], sizes = [16, 128], strides = [1, 1]} : vector<16x768xbf16> to vector<16x128xbf16>
    %67 = vector.shape_cast %66 : vector<16x128xbf16> to vector<2x8x128xbf16>
    %68 = vector.extract_strided_slice %40 {offsets = [0, 384], sizes = [16, 128], strides = [1, 1]} : vector<16x768xbf16> to vector<16x128xbf16>
    %69 = vector.shape_cast %68 : vector<16x128xbf16> to vector<2x8x128xbf16>
    %70 = vector.extract_strided_slice %40 {offsets = [0, 640], sizes = [16, 128], strides = [1, 1]} : vector<16x768xbf16> to vector<16x128xbf16>
    %71 = vector.shape_cast %70 : vector<16x128xbf16> to vector<2x8x128xbf16>
    "tpu.trace_start"() <{level = 10 : i32, message = "bqd,bkd->bqk"}> : () -> ()
    %cst_28 = arith.constant dense<0.000000e+00> : vector<2x8x8xf32>
    %72 = tpu.matmul %67, %69, %cst_28 {dimension_numbers = #tpu.dot_dimension_numbers<[2], [2], [1], [1], [0, 0, 0, 1, 1, 1], [0], [0]>} : vector<2x8x128xbf16>, vector<2x8x128xbf16>, vector<2x8x8xf32> -> vector<2x8x8xf32>
    "tpu.trace_stop"() : () -> ()
    %73 = vector.shape_cast %5 : vector<8x8xf32> to vector<1x8x8xf32>
    %74 = vector.broadcast %73 : vector<1x8x8xf32> to vector<2x8x8xf32>
    %75 = arith.addf %72, %74 : vector<2x8x8xf32>
    %cst_29 = arith.constant dense<0xFF800000> : vector<2x8xf32>
    %76 = vector.multi_reduction <maximumf>, %75, %cst_29 [2] : vector<2x8x8xf32> to vector<2x8xf32>
    %77 = vector.shape_cast %76 : vector<2x8xf32> to vector<2x8x1xf32>
    %78 = vector.broadcast %77 : vector<2x8x1xf32> to vector<2x8x8xf32>
    %79 = arith.subf %75, %78 : vector<2x8x8xf32>
    %80 = math.exp %79 : vector<2x8x8xf32>
    %cst_30 = arith.constant dense<0.000000e+00> : vector<2x8xf32>
    %81 = vector.multi_reduction <add>, %80, %cst_30 [2] : vector<2x8x8xf32> to vector<2x8xf32>
    %82 = vector.shape_cast %81 : vector<2x8xf32> to vector<2x8x1xf32>
    %83 = tpu.reciprocal %82 {approx = true} : vector<2x8x1xf32> -> vector<2x8x1xf32>
    %84 = vector.broadcast %83 : vector<2x8x1xf32> to vector<2x8x8xf32>
    %85 = arith.mulf %80, %84 : vector<2x8x8xf32>
    %86 = arith.truncf %85 : vector<2x8x8xf32> to vector<2x8x8xbf16>
    "tpu.trace_start"() <{level = 10 : i32, message = "bqk,bkd->bqd"}> : () -> ()
    %cst_31 = arith.constant dense<0.000000e+00> : vector<2x8x128xf32>
    %87 = tpu.matmul %86, %71, %cst_31 {dimension_numbers = #tpu.dot_dimension_numbers<[2], [1], [1], [2], [0, 0, 0, 1, 1, 2], [0], [0]>} : vector<2x8x8xbf16>, vector<2x8x128xbf16>, vector<2x8x128xf32> -> vector<2x8x128xf32>
    "tpu.trace_stop"() : () -> ()
    %88 = vector.shape_cast %87 : vector<2x8x128xf32> to vector<16x128xf32>
    %89 = arith.truncf %88 : vector<16x128xf32> to vector<16x128xbf16>
    %c0_32 = arith.constant 0 : index
    %c128 = arith.constant 128 : index
    %90 = vector.load %arg19[%c0_32, %c128] : memref<16x256xbf16, #tpu.memory_space<vmem>>, vector<16x128xbf16>
    tpu.vector_store %arg19[%c0_32, %c128], %89 {strides = array<i32>} : memref<16x256xbf16, #tpu.memory_space<vmem>>, vector<16x128xbf16>,
    %c0_33 = arith.constant 0 : index
    %c0_34 = arith.constant 0 : index
    %91 = vector.load %arg19[%c0_33, %c0_34] : memref<16x256xbf16, #tpu.memory_space<vmem>>, vector<16x256xbf16>
    %c0_35 = arith.constant 0 : index
    %c0_36 = arith.constant 0 : index
    %c0_37 = arith.constant 0 : index
    %92 = vector.load %arg8[%c0_35, %c0_36, %c0_37] : memref<1x256x256xbf16, #tpu.memory_space<vmem>>, vector<1x256x256xbf16>
    %93 = vector.shape_cast %92 : vector<1x256x256xbf16> to vector<256x256xbf16>
    %cst_38 = arith.constant dense<0.000000e+00> : vector<16x256xf32>
    %94 = tpu.matmul %91, %93, %cst_38 {dimension_numbers = #tpu.dot_dimension_numbers<[1], [0], [0], [1], [0, 0, 1, 1], [], []>} : vector<16x256xbf16>, vector<256x256xbf16>, vector<16x256xf32> -> vector<16x256xf32>
    %c0_39 = arith.constant 0 : index
    %c0_40 = arith.constant 0 : index
    %c0_41 = arith.constant 0 : index
    %95 = vector.load %arg9[%c0_39, %c0_40, %c0_41] : memref<1x1x256xf32, #tpu.memory_space<vmem>>, vector<1x1x256xf32>
    %96 = vector.shape_cast %95 : vector<1x1x256xf32> to vector<1x256xf32>
    %97 = vector.broadcast %96 : vector<1x256xf32> to vector<16x256xf32>
    %98 = arith.addf %94, %97 : vector<16x256xf32>
    %99 = arith.addf %4, %98 : vector<16x256xf32>
    %c0_42 = arith.constant 0 : index
    %c0_43 = arith.constant 0 : index
    %c0_44 = arith.constant 0 : index
    %100 = vector.load %arg10[%c0_42, %c0_43, %c0_44] : memref<1x1x256xf32, #tpu.memory_space<vmem>>, vector<1x1x256xf32>
    %101 = vector.shape_cast %100 : vector<1x1x256xf32> to vector<1x256xf32>
    %c0_45 = arith.constant 0 : index
    %c0_46 = arith.constant 0 : index
    %c0_47 = arith.constant 0 : index
    %102 = vector.load %arg11[%c0_45, %c0_46, %c0_47] : memref<1x1x256xf32, #tpu.memory_space<vmem>>, vector<1x1x256xf32>
    %103 = vector.shape_cast %102 : vector<1x1x256xf32> to vector<1x256xf32>
    %cst_48 = arith.constant dense<0.000000e+00> : vector<16xf32>
    %104 = vector.multi_reduction <add>, %99, %cst_48 [1] : vector<16x256xf32> to vector<16xf32>
    %105 = vector.shape_cast %104 : vector<16xf32> to vector<16x1xf32>
    %cst_49 = arith.constant 2.560000e+02 : f32
    %106 = vector.broadcast %cst_49 : f32 to vector<16x1xf32>
    %107 = arith.divf %105, %106 : vector<16x1xf32>
    %108 = vector.broadcast %107 : vector<16x1xf32> to vector<16x256xf32>
    %109 = arith.subf %99, %108 : vector<16x256xf32>
    %110 = arith.mulf %109, %109 : vector<16x256xf32>
    %cst_50 = arith.constant dense<0.000000e+00> : vector<16xf32>
    %111 = vector.multi_reduction <add>, %110, %cst_50 [1] : vector<16x256xf32> to vector<16xf32>
    %112 = vector.shape_cast %111 : vector<16xf32> to vector<16x1xf32>
    %cst_51 = arith.constant 2.560000e+02 : f32
    %113 = vector.broadcast %cst_51 : f32 to vector<16x1xf32>
    %114 = arith.divf %112, %113 : vector<16x1xf32>
    %115 = vector.broadcast %107 : vector<16x1xf32> to vector<16x256xf32>
    %116 = arith.subf %99, %115 : vector<16x256xf32>
    %cst_52 = arith.constant 9.99999974E-6 : f32
    %117 = vector.broadcast %cst_52 : f32 to vector<16x1xf32>
    %118 = arith.addf %114, %117 : vector<16x1xf32>
    %119 = math.rsqrt %118 : vector<16x1xf32>
    %120 = vector.broadcast %119 : vector<16x1xf32> to vector<16x256xf32>
    %121 = arith.mulf %116, %120 : vector<16x256xf32>
    %122 = vector.broadcast %101 : vector<1x256xf32> to vector<16x256xf32>
    %123 = arith.mulf %121, %122 : vector<16x256xf32>
    %124 = vector.broadcast %103 : vector<1x256xf32> to vector<16x256xf32>
    %125 = arith.addf %123, %124 : vector<16x256xf32>
    %126 = arith.truncf %125 : vector<16x256xf32> to vector<16x256xbf16>
    %c0_53 = arith.constant 0 : index
    %c0_54 = arith.constant 0 : index
    %c0_55 = arith.constant 0 : index
    %127 = vector.load %arg12[%c0_53, %c0_54, %c0_55] : memref<1x256x1024xbf16, #tpu.memory_space<vmem>>, vector<1x256x1024xbf16>
    %128 = vector.shape_cast %127 : vector<1x256x1024xbf16> to vector<256x1024xbf16>
    %cst_56 = arith.constant dense<0.000000e+00> : vector<16x1024xf32>
    %129 = tpu.matmul %126, %128, %cst_56 {dimension_numbers = #tpu.dot_dimension_numbers<[1], [0], [0], [1], [0, 0, 1, 1], [], []>} : vector<16x256xbf16>, vector<256x1024xbf16>, vector<16x1024xf32> -> vector<16x1024xf32>
    %c0_57 = arith.constant 0 : index
    %c0_58 = arith.constant 0 : index
    %c0_59 = arith.constant 0 : index
    %130 = vector.load %arg13[%c0_57, %c0_58, %c0_59] : memref<1x1x1024xf32, #tpu.memory_space<vmem>>, vector<1x1x1024xf32>
    %131 = vector.shape_cast %130 : vector<1x1x1024xf32> to vector<1x1024xf32>
    %132 = vector.broadcast %131 : vector<1x1024xf32> to vector<16x1024xf32>
    %133 = arith.addf %129, %132 : vector<16x1024xf32>
    %cst_60 = arith.constant 1.702000e+00 : f32
    %134 = vector.broadcast %cst_60 : f32 to vector<16x1024xf32>
    %135 = arith.mulf %134, %133 : vector<16x1024xf32>
    %136 = arith.negf %135 : vector<16x1024xf32>
    %137 = math.exp %136 : vector<16x1024xf32>
    %cst_61 = arith.constant 1.000000e+00 : f32
    %138 = vector.broadcast %cst_61 : f32 to vector<16x1024xf32>
    %139 = arith.addf %138, %137 : vector<16x1024xf32>
    %140 = arith.divf %138, %139 : vector<16x1024xf32>
    %141 = arith.mulf %133, %140 : vector<16x1024xf32>
    %142 = arith.truncf %141 : vector<16x1024xf32> to vector<16x1024xbf16>
    %c0_62 = arith.constant 0 : index
    %c0_63 = arith.constant 0 : index
    %c0_64 = arith.constant 0 : index
    %143 = vector.load %arg14[%c0_62, %c0_63, %c0_64] : memref<1x1024x256xbf16, #tpu.memory_space<vmem>>, vector<1x1024x256xbf16>
    %144 = vector.shape_cast %143 : vector<1x1024x256xbf16> to vector<1024x256xbf16>
    %cst_65 = arith.constant dense<0.000000e+00> : vector<16x256xf32>
    %145 = tpu.matmul %142, %144, %cst_65 {dimension_numbers = #tpu.dot_dimension_numbers<[1], [0], [0], [1], [0, 0, 1, 1], [], []>} : vector<16x1024xbf16>, vector<1024x256xbf16>, vector<16x256xf32> -> vector<16x256xf32>
    %c0_66 = arith.constant 0 : index
    %c0_67 = arith.constant 0 : index
    %c0_68 = arith.constant 0 : index
    %146 = vector.load %arg15[%c0_66, %c0_67, %c0_68] : memref<1x1x256xf32, #tpu.memory_space<vmem>>, vector<1x1x256xf32>
    %147 = vector.shape_cast %146 : vector<1x1x256xf32> to vector<1x256xf32>
    %148 = vector.broadcast %147 : vector<1x256xf32> to vector<16x256xf32>
    %149 = arith.addf %145, %148 : vector<16x256xf32>
    %150 = arith.addf %99, %149 : vector<16x256xf32>
    %c1_i32 = arith.constant 1 : i32
    %151 = arith.cmpi slt, %arg1, %c1_i32 : i32
    %152 = arith.extui %151 : i1 to i32
    %c0_i32_69 = arith.constant 0 : i32
    %153 = arith.cmpi ne, %152, %c0_i32_69 : i32
    scf.if %153 {
      %157 = vector.shape_cast %150 : vector<16x256xf32> to vector<2x8x256xf32>
      %c0_72 = arith.constant 0 : index
      %c0_73 = arith.constant 0 : index
      %c0_74 = arith.constant 0 : index
      %158 = vector.load %arg18[%c0_72, %c0_73, %c0_74] : memref<2x8x256xf32, #tpu.memory_space<vmem>>, vector<2x8x256xf32>
      tpu.vector_store %arg18[%c0_72, %c0_73, %c0_74], %157 {strides = array<i32>} : memref<2x8x256xf32, #tpu.memory_space<vmem>>, vector<2x8x256xf32>,
    } else {
    }
    %c1_i32_70 = arith.constant 1 : i32
    %154 = arith.cmpi eq, %arg1, %c1_i32_70 : i32
    %155 = arith.extui %154 : i1 to i32
    %c0_i32_71 = arith.constant 0 : i32
    %156 = arith.cmpi ne, %155, %c0_i32_71 : i32
    scf.if %156 {
      %c0_72 = arith.constant 0 : index
      %c0_73 = arith.constant 0 : index
      %157 = vector.load %arg16[%c0_72, %c0_73] : memref<1x256xf32, #tpu.memory_space<vmem>>, vector<1x256xf32>
      %c0_74 = arith.constant 0 : index
      %c0_75 = arith.constant 0 : index
      %158 = vector.load %arg17[%c0_74, %c0_75] : memref<1x256xf32, #tpu.memory_space<vmem>>, vector<1x256xf32>
      %cst_76 = arith.constant dense<0.000000e+00> : vector<16xf32>
      %159 = vector.multi_reduction <add>, %150, %cst_76 [1] : vector<16x256xf32> to vector<16xf32>
      %160 = vector.shape_cast %159 : vector<16xf32> to vector<16x1xf32>
      %cst_77 = arith.constant 2.560000e+02 : f32
      %161 = vector.broadcast %cst_77 : f32 to vector<16x1xf32>
      %162 = arith.divf %160, %161 : vector<16x1xf32>
      %163 = vector.broadcast %162 : vector<16x1xf32> to vector<16x256xf32>
      %164 = arith.subf %150, %163 : vector<16x256xf32>
      %165 = arith.mulf %164, %164 : vector<16x256xf32>
      %cst_78 = arith.constant dense<0.000000e+00> : vector<16xf32>
      %166 = vector.multi_reduction <add>, %165, %cst_78 [1] : vector<16x256xf32> to vector<16xf32>
      %167 = vector.shape_cast %166 : vector<16xf32> to vector<16x1xf32>
      %cst_79 = arith.constant 2.560000e+02 : f32
      %168 = vector.broadcast %cst_79 : f32 to vector<16x1xf32>
      %169 = arith.divf %167, %168 : vector<16x1xf32>
      %170 = vector.broadcast %162 : vector<16x1xf32> to vector<16x256xf32>
      %171 = arith.subf %150, %170 : vector<16x256xf32>
      %cst_80 = arith.constant 9.99999974E-6 : f32
      %172 = vector.broadcast %cst_80 : f32 to vector<16x1xf32>
      %173 = arith.addf %169, %172 : vector<16x1xf32>
      %174 = math.rsqrt %173 : vector<16x1xf32>
      %175 = vector.broadcast %174 : vector<16x1xf32> to vector<16x256xf32>
      %176 = arith.mulf %171, %175 : vector<16x256xf32>
      %177 = vector.broadcast %157 : vector<1x256xf32> to vector<16x256xf32>
      %178 = arith.mulf %176, %177 : vector<16x256xf32>
      %179 = vector.broadcast %158 : vector<1x256xf32> to vector<16x256xf32>
      %180 = arith.addf %178, %179 : vector<16x256xf32>
      %181 = vector.shape_cast %180 : vector<16x256xf32> to vector<2x8x256xf32>
      %c0_81 = arith.constant 0 : index
      %c0_82 = arith.constant 0 : index
      %c0_83 = arith.constant 0 : index
      %182 = vector.load %arg18[%c0_81, %c0_82, %c0_83] : memref<2x8x256xf32, #tpu.memory_space<vmem>>, vector<2x8x256xf32>
      tpu.vector_store %arg18[%c0_81, %c0_82, %c0_83], %181 {strides = array<i32>} : memref<2x8x256xf32, #tpu.memory_space<vmem>>, vector<2x8x256xf32>,
    } else {
    }
    return
  }
  func.func @transform_0(%arg0: i32, %arg1: i32) -> (i32, i32, i32) {
    %c0_i32 = arith.constant 0 : i32
    %c0_i32_0 = arith.constant 0 : i32
    %c0_i32_1 = arith.constant 0 : i32
    return %arg0, %c0_i32, %c0_i32_0 : i32, i32, i32
  }
  func.func @transform_1(%arg0: i32, %arg1: i32) -> (i32, i32) {
    %c0_i32 = arith.constant 0 : i32
    %c0_i32_0 = arith.constant 0 : i32
    %c0_i32_1 = arith.constant 0 : i32
    return %c0_i32, %c0_i32_0 : i32, i32
  }
  func.func @transform_2(%arg0: i32, %arg1: i32) -> (i32, i32, i32) {
    %c0_i32 = arith.constant 0 : i32
    %c0_i32_0 = arith.constant 0 : i32
    %c0_i32_1 = arith.constant 0 : i32
    return %arg1, %c0_i32, %c0_i32_0 : i32, i32, i32
  }
  func.func @transform_3(%arg0: i32, %arg1: i32) -> (i32, i32, i32) {
    %c0_i32 = arith.constant 0 : i32
    %c0_i32_0 = arith.constant 0 : i32
    %c0_i32_1 = arith.constant 0 : i32
    return %arg1, %c0_i32, %c0_i32_0 : i32, i32, i32
  }
  func.func @transform_4(%arg0: i32, %arg1: i32) -> (i32, i32, i32) {
    %c0_i32 = arith.constant 0 : i32
    %c0_i32_0 = arith.constant 0 : i32
    %c0_i32_1 = arith.constant 0 : i32
    return %arg1, %c0_i32, %c0_i32_0 : i32, i32, i32
  }
  func.func @transform_5(%arg0: i32, %arg1: i32) -> (i32, i32, i32) {
    %c0_i32 = arith.constant 0 : i32
    %c0_i32_0 = arith.constant 0 : i32
    %c0_i32_1 = arith.constant 0 : i32
    return %arg1, %c0_i32, %c0_i32_0 : i32, i32, i32
  }
  func.func @transform_6(%arg0: i32, %arg1: i32) -> (i32, i32, i32) {
    %c0_i32 = arith.constant 0 : i32
    %c0_i32_0 = arith.constant 0 : i32
    %c0_i32_1 = arith.constant 0 : i32
    return %arg1, %c0_i32, %c0_i32_0 : i32, i32, i32
  }
  func.func @transform_7(%arg0: i32, %arg1: i32) -> (i32, i32, i32) {
    %c0_i32 = arith.constant 0 : i32
    %c0_i32_0 = arith.constant 0 : i32
    %c0_i32_1 = arith.constant 0 : i32
    return %arg1, %c0_i32, %c0_i32_0 : i32, i32, i32
  }
  func.func @transform_8(%arg0: i32, %arg1: i32) -> (i32, i32, i32) {
    %c0_i32 = arith.constant 0 : i32
    %c0_i32_0 = arith.constant 0 : i32
    %c0_i32_1 = arith.constant 0 : i32
    return %arg1, %c0_i32, %c0_i32_0 : i32, i32, i32
  }
  func.func @transform_9(%arg0: i32, %arg1: i32) -> (i32, i32, i32) {
    %c0_i32 = arith.constant 0 : i32
    %c0_i32_0 = arith.constant 0 : i32
    %c0_i32_1 = arith.constant 0 : i32
    return %arg1, %c0_i32, %c0_i32_0 : i32, i32, i32
  }
  func.func @transform_10(%arg0: i32, %arg1: i32) -> (i32, i32, i32) {
    %c0_i32 = arith.constant 0 : i32
    %c0_i32_0 = arith.constant 0 : i32
    %c0_i32_1 = arith.constant 0 : i32
    return %arg1, %c0_i32, %c0_i32_0 : i32, i32, i32
  }
  func.func @transform_11(%arg0: i32, %arg1: i32) -> (i32, i32, i32) {
    %c0_i32 = arith.constant 0 : i32
    %c0_i32_0 = arith.constant 0 : i32
    %c0_i32_1 = arith.constant 0 : i32
    return %arg1, %c0_i32, %c0_i32_0 : i32, i32, i32
  }
  func.func @transform_12(%arg0: i32, %arg1: i32) -> (i32, i32, i32) {
    %c0_i32 = arith.constant 0 : i32
    %c0_i32_0 = arith.constant 0 : i32
    %c0_i32_1 = arith.constant 0 : i32
    return %arg1, %c0_i32, %c0_i32_0 : i32, i32, i32
  }
  func.func @transform_13(%arg0: i32, %arg1: i32) -> (i32, i32, i32) {
    %c0_i32 = arith.constant 0 : i32
    %c0_i32_0 = arith.constant 0 : i32
    %c0_i32_1 = arith.constant 0 : i32
    return %arg1, %c0_i32, %c0_i32_0 : i32, i32, i32
  }
  func.func @transform_14(%arg0: i32, %arg1: i32) -> (i32, i32) {
    %c0_i32 = arith.constant 0 : i32
    %c0_i32_0 = arith.constant 0 : i32
    %c0_i32_1 = arith.constant 0 : i32
    return %c0_i32, %c0_i32_0 : i32, i32
  }
  func.func @transform_15(%arg0: i32, %arg1: i32) -> (i32, i32) {
    %c0_i32 = arith.constant 0 : i32
    %c0_i32_0 = arith.constant 0 : i32
    %c0_i32_1 = arith.constant 0 : i32
    return %c0_i32, %c0_i32_0 : i32, i32
  }
  func.func @transform_16(%arg0: i32, %arg1: i32) -> (i32, i32, i32) {
    %c0_i32 = arith.constant 0 : i32
    %c0_i32_0 = arith.constant 0 : i32
    %c0_i32_1 = arith.constant 0 : i32
    return %arg0, %c0_i32, %c0_i32_0 : i32, i32, i32
  }
}

</mosaic_0001>

<llo_original>
// kernel: clip_text_forward.1
$region0: #{clip_text_forward.1}
  #allocation0 [shape = 'u32[]', space=smem, size = 0x4, offset = 0x4, fixed_abs, tag = 'smem constant byte address 0x4 - core index']
  #allocation1 [shape = 'u32[144,128]{1,0:T(1,128)}', space=vmem, size = 0x12000, scoped, tag = 'internal scratch']
  #allocation2 [shape = 'bf16[16,256]{1,0:T(16,128)(2,1)}', space=vmem, size = 0x2000, scoped, tag = 'scratch operand']
  %s0 = inlined_call_operand.hbm [shape: f32[2,8,256], index: 0, kind: input, shape index: {}, may-alias: {0,16}]
  %s1 = inlined_call_operand.vmem [shape: f32[8,8], index: 1, kind: input, shape index: {}]
  %s2 = inlined_call_operand.vmem [shape: f32[2,1,256], index: 2, kind: input, shape index: {}]
  %s3 = inlined_call_operand.vmem [shape: f32[2,1,256], index: 3, kind: input, shape index: {}]
  %s4 = inlined_call_operand.hbm [shape: bf16[2,256,768], index: 4, kind: input, shape index: {}]
  %s5 = inlined_call_operand.vmem [shape: f32[2,1,768], index: 5, kind: input, shape index: {}]
  %s6 = inlined_call_operand.hbm [shape: bf16[2,256,256], index: 6, kind: input, shape index: {}]
  %s7 = inlined_call_operand.vmem [shape: f32[2,1,256], index: 7, kind: input, shape index: {}]
  %s8 = inlined_call_operand.vmem [shape: f32[2,1,256], index: 8, kind: input, shape index: {}]
  %s9 = inlined_call_operand.vmem [shape: f32[2,1,256], index: 9, kind: input, shape index: {}]
  %s10 = inlined_call_operand.hbm [shape: bf16[2,256,1024], index: 10, kind: input, shape index: {}]
  %s11 = inlined_call_operand.vmem [shape: f32[2,1,1024], index: 11, kind: input, shape index: {}]
  %s12 = inlined_call_operand.hbm [shape: bf16[2,1024,256], index: 12, kind: input, shape index: {}]
  %s13 = inlined_call_operand.vmem [shape: f32[2,1,256], index: 13, kind: input, shape index: {}]
  %s14 = inlined_call_operand.vmem [shape: f32[1,256], index: 14, kind: input, shape index: {}]
  %s15 = inlined_call_operand.vmem [shape: f32[1,256], index: 15, kind: input, shape index: {}]
  %s16 = inlined_call_operand.hbm [shape: f32[2,8,256], index: 16, kind: output, shape index: {}, may-alias: {0,16}]
  %s17 = sld [smem:[#allocation0]]
  $region129: #{clip_text_forward.1} parent=0
    _
  %s19 = ssub.s32 1, %s17
  %s20 = scalar_select 0, %s19, %s17
  $region1: #{clip_text_forward.1} parent=0
    #allocation3 [shape = 'u8[16384]{0}', space=vmem, size = 0x4000, scoped, tag = 'input window, operand 0, single buffered']
    #allocation4 [shape = 's32[2]{0}', space=sflag, size = 0x8, scoped, tag = 'scoped memory for clip_text_forward.1']
    #allocation5 [shape = 's32[2]{0}', space=sflag, size = 0x8, scoped, tag = 'scoped memory for clip_text_forward.1']
    #allocation6 [shape = 'u8[786432]{0}', space=vmem, size = 0xc0000, scoped, tag = 'input window, operand 4']
    #allocation7 [shape = 's32[2]{0}', space=sflag, size = 0x8, scoped, tag = 'scoped memory for clip_text_forward.1']
    #allocation8 [shape = 'u8[262144]{0}', space=vmem, size = 0x40000, scoped, tag = 'input window, operand 6']
    #allocation9 [shape = 'u8[1048576]{0}', space=vmem, size = 0x100000, scoped, tag = 'input window, operand 10']
    #allocation10 [shape = 's32[2]{0}', space=sflag, size = 0x8, scoped, tag = 'scoped memory for clip_text_forward.1']
    #allocation11 [shape = 'u8[1048576]{0}', space=vmem, size = 0x100000, scoped, tag = 'input window, operand 12']
    #allocation12 [shape = 'u8[16384]{0}', space=vmem, size = 0x4000, scoped, tag = 'output window, operand 0, single buffered']
    %21 = vsyncpa [#allocation4], 0
    %22 = vsyncpa [#allocation7], 0
    %s23 = scalar_lea.sflag [#allocation7], 1
    %24 = vsyncpa %s23, 0
    %25 = vsyncpa [#allocation10], 0
    %s26 = scalar_lea.sflag [#allocation10], 1
    %27 = vsyncpa %s26, 0
    %28 = vsyncpa [#allocation5], 0
    loop: start=0, step=1, limit=4
    $region2: #{clip_text_forward.1} parent=1 // loop_pre_header
      _
    $region3: #{clip_text_forward.1} parent=1 // loop_header
      %s30 = sphi 0, %s34
      %p31 = scmp.ge.s32.totalorder %s30, 4
      %s37 = sphi 0, %s49
      %s38 = sphi 0, %s45
      %s39 = sphi 0, %s37
      %s40 = sphi 0, %s38
      %s41 = sphi 0, %s39
      %s42 = sphi 0, %s40
      %s52 = sphi 0, %s54
      %s55 = sphi 0, %s52
      %s56 = sphi 0, %s55
      %s72 = sphi 0, %s56
      %s76 = sphi 0, %s76
      %s78 = sphi 0, %s76
      %s79 = sphi 0, %s78
      %s93 = sphi 0, %s79
      %s99 = sphi 0, %s101
      %s102 = sphi 0, %s99
      %s103 = sphi 0, %s102
      %s119 = sphi 0, %s103
      %s125 = sphi 0, %s127
      %s128 = sphi 0, %s125
      %s129 = sphi 0, %s128
      %s145 = sphi 0, %s129
      %s151 = sphi 0, %s153
      %s154 = sphi 0, %s151
      %s155 = sphi 0, %s154
      %s171 = sphi 0, %s155
      %s177 = sphi 0, %s179
      %s180 = sphi 0, %s177
      %s181 = sphi 0, %s180
      %s197 = sphi 0, %s181
      %s203 = sphi 0, %s205
      %s206 = sphi 0, %s203
      %s207 = sphi 0, %s206
      %s223 = sphi 0, %s207
      %s229 = sphi 0, %s231
      %s232 = sphi 0, %s229
      %s233 = sphi 0, %s232
      %s249 = sphi 0, %s233
      %s255 = sphi 0, %s257
      %s258 = sphi 0, %s255
      %s259 = sphi 0, %s258
      %s275 = sphi 0, %s259
      %s281 = sphi 0, %s283
      %s284 = sphi 0, %s281
      %s285 = sphi 0, %s284
      %s301 = sphi 0, %s285
      %s307 = sphi 0, %s309
      %s310 = sphi 0, %s307
      %s311 = sphi 0, %s310
      %s327 = sphi 0, %s311
      %s333 = sphi 0, %s335
      %s336 = sphi 0, %s333
      %s337 = sphi 0, %s336
      %s353 = sphi 0, %s337
      %s359 = sphi 0, %s361
      %s362 = sphi 0, %s359
      %s363 = sphi 0, %s362
      %s379 = sphi 0, %s363
      %s385 = sphi 0, %s387
      %s388 = sphi 0, %s385
      %s389 = sphi 0, %s388
      %s405 = sphi 0, %s389
      %s409 = sphi 0, %s409
      %s411 = sphi 0, %s409
      %s412 = sphi 0, %s411
      %s426 = sphi 0, %s412
      %s430 = sphi 0, %s430
      %s432 = sphi 0, %s430
      %s433 = sphi 0, %s432
      %s447 = sphi 0, %s433
      %s453 = sphi 0, %s455
      %s456 = sphi 0, %s453
      %s457 = sphi 0, %s456
      %s473 = sphi 0, %s457
    $region4: #{clip_text_forward.1} parent=1 // loop_header_branch
      %33 = sbr.rel (%p31) target = $region8
    $region5: #{clip_text_forward.1} parent=1 // loop_body
      %s35 = ssub.s32 %s30, 1
      %s36 = ssub.s32 %s30, 2
      %s43 = sadd.s32 1, %s38
      %p44 = scmp.ge.s32.totalorder %s43, 2
      %s45 = scalar_select %p44, 0, %s43
      %s46 = sadd.s32 1, %s37
      %s47 = scalar_select %p44, %s46, %s37
      %p48 = scmp.ge.s32.totalorder %s47, 1
      %s49 = scalar_select %p48, 0, %s47
      %s50 = ssub.s32 %s37, %s49
      %p51 = scmp.eq.s32.totalorder %s50, 0
      %s53 = sadd.s32 %s52, 1
      %s54 = scalar_select %p51, %s52, %s53
      %p57 = pneg %p51
      %p58 = scmp.eq.s32.totalorder %s30, 1
      %p59 = por %p57, %p58
      %p60 = scmp.ne.s32.totalorder %s52, %s55
      %p61 = scmp.eq.s32.totalorder %s30, 0
      %p62 = por %p60, %p61
      %p63 = scmp.ne.s32.totalorder %s52, %s55
      %p64 = scmp.eq.s32.totalorder %s35, 1
      %p65 = por %p63, %p64
      %p66 = scmp.ne.s32.totalorder %s55, %s56
      %p67 = scmp.eq.s32.totalorder %s35, 0
      %p68 = por %p66, %p67
      %p69 = scmp.ne.s32.totalorder %s55, %s56
      %p70 = scmp.eq.s32.totalorder %s36, 1
      %p71 = por %p69, %p70
      %p73 = scmp.ne.s32.totalorder %s56, %s72
      %p74 = scmp.eq.s32.totalorder %s36, 0
      %p75 = por %p73, %p74
      %s77 = sadd.s32 %s76, 1
      %p80 = scmp.eq.s32.totalorder %s30, 1
      %p81 = scmp.ne.s32.totalorder %s76, %s78
      %p82 = scmp.eq.s32.totalorder %s30, 0
      %p83 = por %p81, %p82
      %p84 = scmp.ne.s32.totalorder %s76, %s78
      %p85 = scmp.eq.s32.totalorder %s35, 1
      %p86 = por %p84, %p85
      %p87 = scmp.ne.s32.totalorder %s78, %s79
      %p88 = scmp.eq.s32.totalorder %s35, 0
      %p89 = por %p87, %p88
      %p90 = scmp.ne.s32.totalorder %s78, %s79
      %p91 = scmp.eq.s32.totalorder %s36, 1
      %p92 = por %p90, %p91
      %p94 = scmp.ne.s32.totalorder %s79, %s93
      %p95 = scmp.eq.s32.totalorder %s36, 0
      %p96 = por %p94, %p95
      %s97 = ssub.s32 %s38, %s45
      %p98 = scmp.eq.s32.totalorder %s97, 0
      %s100 = sadd.s32 %s99, 1
      %s101 = scalar_select %p98, %s99, %s100
      %p104 = pneg %p98
      %p105 = scmp.eq.s32.totalorder %s30, 1
      %p106 = por %p104, %p105
      %p107 = scmp.ne.s32.totalorder %s99, %s102
      %p108 = scmp.eq.s32.totalorder %s30, 0
      %p109 = por %p107, %p108
      %p110 = scmp.ne.s32.totalorder %s99, %s102
      %p111 = scmp.eq.s32.totalorder %s35, 1
      %p112 = por %p110, %p111
      %p113 = scmp.ne.s32.totalorder %s102, %s103
      %p114 = scmp.eq.s32.totalorder %s35, 0
      %p115 = por %p113, %p114
      %p116 = scmp.ne.s32.totalorder %s102, %s103
      %p117 = scmp.eq.s32.totalorder %s36, 1
      %p118 = por %p116, %p117
      %p120 = scmp.ne.s32.totalorder %s103, %s119
      %p121 = scmp.eq.s32.totalorder %s36, 0
      %p122 = por %p120, %p121
      %s123 = ssub.s32 %s38, %s45
      %p124 = scmp.eq.s32.totalorder %s123, 0
      %s126 = sadd.s32 %s125, 1
      %s127 = scalar_select %p124, %s125, %s126
      %p130 = pneg %p124
      %p131 = scmp.eq.s32.totalorder %s30, 1
      %p132 = por %p130, %p131
      %p133 = scmp.ne.s32.totalorder %s125, %s128
      %p134 = scmp.eq.s32.totalorder %s30, 0
      %p135 = por %p133, %p134
      %p136 = scmp.ne.s32.totalorder %s125, %s128
      %p137 = scmp.eq.s32.totalorder %s35, 1
      %p138 = por %p136, %p137
      %p139 = scmp.ne.s32.totalorder %s128, %s129
      %p140 = scmp.eq.s32.totalorder %s35, 0
      %p141 = por %p139, %p140
      %p142 = scmp.ne.s32.totalorder %s128, %s129
      %p143 = scmp.eq.s32.totalorder %s36, 1
      %p144 = por %p142, %p143
      %p146 = scmp.ne.s32.totalorder %s129, %s145
      %p147 = scmp.eq.s32.totalorder %s36, 0
      %p148 = por %p146, %p147
      %s149 = ssub.s32 %s38, %s45
      %p150 = scmp.eq.s32.totalorder %s149, 0
      %s152 = sadd.s32 %s151, 1
      %s153 = scalar_select %p150, %s151, %s152
      %p156 = pneg %p150
      %p157 = scmp.eq.s32.totalorder %s30, 1
      %p158 = por %p156, %p157
      %p159 = scmp.ne.s32.totalorder %s151, %s154
      %p160 = scmp.eq.s32.totalorder %s30, 0
      %p161 = por %p159, %p160
      %p162 = scmp.ne.s32.totalorder %s151, %s154
      %p163 = scmp.eq.s32.totalorder %s35, 1
      %p164 = por %p162, %p163
      %p165 = scmp.ne.s32.totalorder %s154, %s155
      %p166 = scmp.eq.s32.totalorder %s35, 0
      %p167 = por %p165, %p166
      %p168 = scmp.ne.s32.totalorder %s154, %s155
      %p169 = scmp.eq.s32.totalorder %s36, 1
      %p170 = por %p168, %p169
      %p172 = scmp.ne.s32.totalorder %s155, %s171
      %p173 = scmp.eq.s32.totalorder %s36, 0
      %p174 = por %p172, %p173
      %s175 = ssub.s32 %s38, %s45
      %p176 = scmp.eq.s32.totalorder %s175, 0
      %s178 = sadd.s32 %s177, 1
      %s179 = scalar_select %p176, %s177, %s178
      %p182 = pneg %p176
      %p183 = scmp.eq.s32.totalorder %s30, 1
      %p184 = por %p182, %p183
      %p185 = scmp.ne.s32.totalorder %s177, %s180
      %p186 = scmp.eq.s32.totalorder %s30, 0
      %p187 = por %p185, %p186
      %p188 = scmp.ne.s32.totalorder %s177, %s180
      %p189 = scmp.eq.s32.totalorder %s35, 1
      %p190 = por %p188, %p189
      %p191 = scmp.ne.s32.totalorder %s180, %s181
      %p192 = scmp.eq.s32.totalorder %s35, 0
      %p193 = por %p191, %p192
      %p194 = scmp.ne.s32.totalorder %s180, %s181
      %p195 = scmp.eq.s32.totalorder %s36, 1
      %p196 = por %p194, %p195
      %p198 = scmp.ne.s32.totalorder %s181, %s197
      %p199 = scmp.eq.s32.totalorder %s36, 0
      %p200 = por %p198, %p199
      %s201 = ssub.s32 %s38, %s45
      %p202 = scmp.eq.s32.totalorder %s201, 0
      %s204 = sadd.s32 %s203, 1
      %s205 = scalar_select %p202, %s203, %s204
      %p208 = pneg %p202
      %p209 = scmp.eq.s32.totalorder %s30, 1
      %p210 = por %p208, %p209
      %p211 = scmp.ne.s32.totalorder %s203, %s206
      %p212 = scmp.eq.s32.totalorder %s30, 0
      %p213 = por %p211, %p212
      %p214 = scmp.ne.s32.totalorder %s203, %s206
      %p215 = scmp.eq.s32.totalorder %s35, 1
      %p216 = por %p214, %p215
      %p217 = scmp.ne.s32.totalorder %s206, %s207
      %p218 = scmp.eq.s32.totalorder %s35, 0
      %p219 = por %p217, %p218
      %p220 = scmp.ne.s32.totalorder %s206, %s207
      %p221 = scmp.eq.s32.totalorder %s36, 1
      %p222 = por %p220, %p221
      %p224 = scmp.ne.s32.totalorder %s207, %s223
      %p225 = scmp.eq.s32.totalorder %s36, 0
      %p226 = por %p224, %p225
      %s227 = ssub.s32 %s38, %s45
      %p228 = scmp.eq.s32.totalorder %s227, 0
      %s230 = sadd.s32 %s229, 1
      %s231 = scalar_select %p228, %s229, %s230
      %p234 = pneg %p228
      %p235 = scmp.eq.s32.totalorder %s30, 1
      %p236 = por %p234, %p235
      %p237 = scmp.ne.s32.totalorder %s229, %s232
      %p238 = scmp.eq.s32.totalorder %s30, 0
      %p239 = por %p237, %p238
      %p240 = scmp.ne.s32.totalorder %s229, %s232
      %p241 = scmp.eq.s32.totalorder %s35, 1
      %p242 = por %p240, %p241
      %p243 = scmp.ne.s32.totalorder %s232, %s233
      %p244 = scmp.eq.s32.totalorder %s35, 0
      %p245 = por %p243, %p244
      %p246 = scmp.ne.s32.totalorder %s232, %s233
      %p247 = scmp.eq.s32.totalorder %s36, 1
      %p248 = por %p246, %p247
      %p250 = scmp.ne.s32.totalorder %s233, %s249
      %p251 = scmp.eq.s32.totalorder %s36, 0
      %p252 = por %p250, %p251
      %s253 = ssub.s32 %s38, %s45
      %p254 = scmp.eq.s32.totalorder %s253, 0
      %s256 = sadd.s32 %s255, 1
      %s257 = scalar_select %p254, %s255, %s256
      %p260 = pneg %p254
      %p261 = scmp.eq.s32.totalorder %s30, 1
      %p262 = por %p260, %p261
      %p263 = scmp.ne.s32.totalorder %s255, %s258
      %p264 = scmp.eq.s32.totalorder %s30, 0
      %p265 = por %p263, %p264
      %p266 = scmp.ne.s32.totalorder %s255, %s258
      %p267 = scmp.eq.s32.totalorder %s35, 1
      %p268 = por %p266, %p267
      %p269 = scmp.ne.s32.totalorder %s258, %s259
      %p270 = scmp.eq.s32.totalorder %s35, 0
      %p271 = por %p269, %p270
      %p272 = scmp.ne.s32.totalorder %s258, %s259
      %p273 = scmp.eq.s32.totalorder %s36, 1
      %p274 = por %p272, %p273
      %p276 = scmp.ne.s32.totalorder %s259, %s275
      %p277 = scmp.eq.s32.totalorder %s36, 0
      %p278 = por %p276, %p277
      %s279 = ssub.s32 %s38, %s45
      %p280 = scmp.eq.s32.totalorder %s279, 0
      %s282 = sadd.s32 %s281, 1
      %s283 = scalar_select %p280, %s281, %s282
      %p286 = pneg %p280
      %p287 = scmp.eq.s32.totalorder %s30, 1
      %p288 = por %p286, %p287
      %p289 = scmp.ne.s32.totalorder %s281, %s284
      %p290 = scmp.eq.s32.totalorder %s30, 0
      %p291 = por %p289, %p290
      %p292 = scmp.ne.s32.totalorder %s281, %s284
      %p293 = scmp.eq.s32.totalorder %s35, 1
      %p294 = por %p292, %p293
      %p295 = scmp.ne.s32.totalorder %s284, %s285
      %p296 = scmp.eq.s32.totalorder %s35, 0
      %p297 = por %p295, %p296
      %p298 = scmp.ne.s32.totalorder %s284, %s285
      %p299 = scmp.eq.s32.totalorder %s36, 1
      %p300 = por %p298, %p299
      %p302 = scmp.ne.s32.totalorder %s285, %s301
      %p303 = scmp.eq.s32.totalorder %s36, 0
      %p304 = por %p302, %p303
      %s305 = ssub.s32 %s38, %s45
      %p306 = scmp.eq.s32.totalorder %s305, 0
      %s308 = sadd.s32 %s307, 1
      %s309 = scalar_select %p306, %s307, %s308
      %p312 = pneg %p306
      %p313 = scmp.eq.s32.totalorder %s30, 1
      %p314 = por %p312, %p313
      %p315 = scmp.ne.s32.totalorder %s307, %s310
      %p316 = scmp.eq.s32.totalorder %s30, 0
      %p317 = por %p315, %p316
      %p318 = scmp.ne.s32.totalorder %s307, %s310
      %p319 = scmp.eq.s32.totalorder %s35, 1
      %p320 = por %p318, %p319
      %p321 = scmp.ne.s32.totalorder %s310, %s311
      %p322 = scmp.eq.s32.totalorder %s35, 0
      %p323 = por %p321, %p322
      %p324 = scmp.ne.s32.totalorder %s310, %s311
      %p325 = scmp.eq.s32.totalorder %s36, 1
      %p326 = por %p324, %p325
      %p328 = scmp.ne.s32.totalorder %s311, %s327
      %p329 = scmp.eq.s32.totalorder %s36, 0
      %p330 = por %p328, %p329
      %s331 = ssub.s32 %s38, %s45
      %p332 = scmp.eq.s32.totalorder %s331, 0
      %s334 = sadd.s32 %s333, 1
      %s335 = scalar_select %p332, %s333, %s334
      %p338 = pneg %p332
      %p339 = scmp.eq.s32.totalorder %s30, 1
      %p340 = por %p338, %p339
      %p341 = scmp.ne.s32.totalorder %s333, %s336
      %p342 = scmp.eq.s32.totalorder %s30, 0
      %p343 = por %p341, %p342
      %p344 = scmp.ne.s32.totalorder %s333, %s336
      %p345 = scmp.eq.s32.totalorder %s35, 1
      %p346 = por %p344, %p345
      %p347 = scmp.ne.s32.totalorder %s336, %s337
      %p348 = scmp.eq.s32.totalorder %s35, 0
      %p349 = por %p347, %p348
      %p350 = scmp.ne.s32.totalorder %s336, %s337
      %p351 = scmp.eq.s32.totalorder %s36, 1
      %p352 = por %p350, %p351
      %p354 = scmp.ne.s32.totalorder %s337, %s353
      %p355 = scmp.eq.s32.totalorder %s36, 0
      %p356 = por %p354, %p355
      %s357 = ssub.s32 %s38, %s45
      %p358 = scmp.eq.s32.totalorder %s357, 0
      %s360 = sadd.s32 %s359, 1
      %s361 = scalar_select %p358, %s359, %s360
      %p364 = pneg %p358
      %p365 = scmp.eq.s32.totalorder %s30, 1
      %p366 = por %p364, %p365
      %p367 = scmp.ne.s32.totalorder %s359, %s362
      %p368 = scmp.eq.s32.totalorder %s30, 0
      %p369 = por %p367, %p368
      %p370 = scmp.ne.s32.totalorder %s359, %s362
      %p371 = scmp.eq.s32.totalorder %s35, 1
      %p372 = por %p370, %p371
      %p373 = scmp.ne.s32.totalorder %s362, %s363
      %p374 = scmp.eq.s32.totalorder %s35, 0
      %p375 = por %p373, %p374
      %p376 = scmp.ne.s32.totalorder %s362, %s363
      %p377 = scmp.eq.s32.totalorder %s36, 1
      %p378 = por %p376, %p377
      %p380 = scmp.ne.s32.totalorder %s363, %s379
      %p381 = scmp.eq.s32.totalorder %s36, 0
      %p382 = por %p380, %p381
      %s383 = ssub.s32 %s38, %s45
      %p384 = scmp.eq.s32.totalorder %s383, 0
      %s386 = sadd.s32 %s385, 1
      %s387 = scalar_select %p384, %s385, %s386
      %p390 = pneg %p384
      %p391 = scmp.eq.s32.totalorder %s30, 1
      %p392 = por %p390, %p391
      %p393 = scmp.ne.s32.totalorder %s385, %s388
      %p394 = scmp.eq.s32.totalorder %s30, 0
      %p395 = por %p393, %p394
      %p396 = scmp.ne.s32.totalorder %s385, %s388
      %p397 = scmp.eq.s32.totalorder %s35, 1
      %p398 = por %p396, %p397
      %p399 = scmp.ne.s32.totalorder %s388, %s389
      %p400 = scmp.eq.s32.totalorder %s35, 0
      %p401 = por %p399, %p400
      %p402 = scmp.ne.s32.totalorder %s388, %s389
      %p403 = scmp.eq.s32.totalorder %s36, 1
      %p404 = por %p402, %p403
      %p406 = scmp.ne.s32.totalorder %s389, %s405
      %p407 = scmp.eq.s32.totalorder %s36, 0
      %p408 = por %p406, %p407
      %s410 = sadd.s32 %s409, 1
      %p413 = scmp.eq.s32.totalorder %s30, 1
      %p414 = scmp.ne.s32.totalorder %s409, %s411
      %p415 = scmp.eq.s32.totalorder %s30, 0
      %p416 = por %p414, %p415
      %p417 = scmp.ne.s32.totalorder %s409, %s411
      %p418 = scmp.eq.s32.totalorder %s35, 1
      %p419 = por %p417, %p418
      %p420 = scmp.ne.s32.totalorder %s411, %s412
      %p421 = scmp.eq.s32.totalorder %s35, 0
      %p422 = por %p420, %p421
      %p423 = scmp.ne.s32.totalorder %s411, %s412
      %p424 = scmp.eq.s32.totalorder %s36, 1
      %p425 = por %p423, %p424
      %p427 = scmp.ne.s32.totalorder %s412, %s426
      %p428 = scmp.eq.s32.totalorder %s36, 0
      %p429 = por %p427, %p428
      %s431 = sadd.s32 %s430, 1
      %p434 = scmp.eq.s32.totalorder %s30, 1
      %p435 = scmp.ne.s32.totalorder %s430, %s432
      %p436 = scmp.eq.s32.totalorder %s30, 0
      %p437 = por %p435, %p436
      %p438 = scmp.ne.s32.totalorder %s430, %s432
      %p439 = scmp.eq.s32.totalorder %s35, 1
      %p440 = por %p438, %p439
      %p441 = scmp.ne.s32.totalorder %s432, %s433
      %p442 = scmp.eq.s32.totalorder %s35, 0
      %p443 = por %p441, %p442
      %p444 = scmp.ne.s32.totalorder %s432, %s433
      %p445 = scmp.eq.s32.totalorder %s36, 1
      %p446 = por %p444, %p445
      %p448 = scmp.ne.s32.totalorder %s433, %s447
      %p449 = scmp.eq.s32.totalorder %s36, 0
      %p450 = por %p448, %p449
      %s451 = ssub.s32 %s37, %s49
      %p452 = scmp.eq.s32.totalorder %s451, 0
      %s454 = sadd.s32 %s453, 1
      %s455 = scalar_select %p452, %s453, %s454
      %p458 = pneg %p452
      %p459 = scmp.eq.s32.totalorder %s30, 1
      %p460 = por %p458, %p459
      %p461 = scmp.ne.s32.totalorder %s453, %s456
      %p462 = scmp.eq.s32.totalorder %s30, 0
      %p463 = por %p461, %p462
      %p464 = scmp.ne.s32.totalorder %s453, %s456
      %p465 = scmp.eq.s32.totalorder %s35, 1
      %p466 = por %p464, %p465
      %p467 = scmp.ne.s32.totalorder %s456, %s457
      %p468 = scmp.eq.s32.totalorder %s35, 0
      %p469 = por %p467, %p468
      %p470 = scmp.ne.s32.totalorder %s456, %s457
      %p471 = scmp.eq.s32.totalorder %s36, 1
      %p472 = por %p470, %p471
      %p474 = scmp.ne.s32.totalorder %s457, %s473
      %p475 = scmp.eq.s32.totalorder %s36, 0
      %p476 = por %p474, %p475
      %p477 = scmp.le.s32.totalorder 1, %s30
      %p478 = scmp.lt.s32.totalorder %s30, 3
      %p479 = pnand %p477, %p478
      %p480 = pneg %p479
      // Predicated region
      $region9: #{clip_text_forward.1} parent=5 // pred_check
        _
      $region10: #{clip_text_forward.1} parent=5 // pred_check_branch
        %482 = sbr.rel (%p479) target = $region12
      $region11: #{clip_text_forward.1} parent=5 // pred_region
        %s483 = ssub.s32 %s30, 1
        // Predicated region
        $region13: #{clip_text_forward.1} parent=11 // pred_check
          %p484 = pneg %p68
        $region14: #{clip_text_forward.1} parent=11 // pred_check_branch
          %486 = sbr.rel (%p484) target = $region16
        $region15: #{clip_text_forward.1} parent=11 // pred_region
          %s487 = smul.u32 2, %s39
          %s489 = ssub.s32 512, 512
          %490 = vsyncadd [#allocation4], %s489
          %s491 = smul.addr %s487, 2
          %s492 = smul.addr %s491, 128
          %s493 = scalar_lea.hbm %s0, %s492
          %s494 = sshll.u32 [#allocation3], 4
          %s495 = int_to_ptr.vmem [resolvable:$true] %s494
          %500 = dma.hbm_to_vmem [thread:$0]  %s493, 512, %s495, [#allocation4], 256, 256, 16
        $region16: #{clip_text_forward.1} parent=11 // pred_fallthru
          _
        // Predicated region
        $region17: #{clip_text_forward.1} parent=11 // pred_check
          %p501 = pneg %p89
        $region18: #{clip_text_forward.1} parent=11 // pred_check_branch
          %503 = sbr.rel (%p501) target = $region20
        $region19: #{clip_text_forward.1} parent=11 // pred_region
          _
        $region20: #{clip_text_forward.1} parent=11 // pred_fallthru
          _
        // Predicated region
        $region21: #{clip_text_forward.1} parent=11 // pred_check
          %p504 = pneg %p422
        $region22: #{clip_text_forward.1} parent=11 // pred_check_branch
          %506 = sbr.rel (%p504) target = $region24
        $region23: #{clip_text_forward.1} parent=11 // pred_region
          _
        $region24: #{clip_text_forward.1} parent=11 // pred_fallthru
          _
        // Predicated region
        $region25: #{clip_text_forward.1} parent=11 // pred_check
          %p507 = pneg %p443
        $region26: #{clip_text_forward.1} parent=11 // pred_check_branch
          %509 = sbr.rel (%p507) target = $region28
        $region27: #{clip_text_forward.1} parent=11 // pred_region
          _
        $region28: #{clip_text_forward.1} parent=11 // pred_fallthru
          _
      $region12: #{clip_text_forward.1} parent=5 // pred_fallthru
        _
      %p510 = scmp.lt.s32.totalorder %s30, 2
      // Predicated region
      $region29: #{clip_text_forward.1} parent=5 // pred_check
        %p511 = pneg %p510
      $region30: #{clip_text_forward.1} parent=5 // pred_check_branch
        %513 = sbr.rel (%p511) target = $region32
      $region31: #{clip_text_forward.1} parent=5 // pred_region
        // Predicated region
        $region33: #{clip_text_forward.1} parent=31 // pred_check
          %p514 = pneg %p109
        $region34: #{clip_text_forward.1} parent=31 // pred_check_branch
          %516 = sbr.rel (%p514) target = $region36
        $region35: #{clip_text_forward.1} parent=31 // pred_region
          %p517 = scmp.lt.s32.totalorder %s38, 1
          %s518 = scalar_select %p517, %s38, 1
          %s519 = smul.addr %s518, 2
          %s520 = scalar_lea.vmem %s2, %s519
        $region36: #{clip_text_forward.1} parent=31 // pred_fallthru
          _
        // Predicated region
        $region37: #{clip_text_forward.1} parent=31 // pred_check
          %p521 = pneg %p135
        $region38: #{clip_text_forward.1} parent=31 // pred_check_branch
          %523 = sbr.rel (%p521) target = $region40
        $region39: #{clip_text_forward.1} parent=31 // pred_region
          %p524 = scmp.lt.s32.totalorder %s38, 1
          %s525 = scalar_select %p524, %s38, 1
          %s526 = smul.addr %s525, 2
          %s527 = scalar_lea.vmem %s3, %s526
        $region40: #{clip_text_forward.1} parent=31 // pred_fallthru
          _
        // Predicated region
        $region41: #{clip_text_forward.1} parent=31 // pred_check
          %p528 = pneg %p161
        $region42: #{clip_text_forward.1} parent=31 // pred_check_branch
          %530 = sbr.rel (%p528) target = $region44
        $region43: #{clip_text_forward.1} parent=31 // pred_region
          %s531 = sand.u32 %s30, 1
          %s532 = scalar_lea.sflag [#allocation7], %s531
          %s533 = sand.u32 %s151, 1
          %s534 = smul.addr %s533, 768
          %s535 = scalar_lea.vmem [#allocation6], %s534
          %s537 = ssub.s32 12288, 12288
          %538 = vsyncadd %s532, %s537
          %s539 = smul.addr %s38, 192
          %s540 = smul.addr %s539, 64
          %s541 = scalar_lea.hbm %s4, %s540
          %s542 = sshll.u32 %s535, 4
          %s543 = int_to_ptr.vmem [resolvable:$true] %s542
          %548 = dma.hbm_to_vmem [thread:$0]  %s541, 12288, %s543, %s532, 384, 384, 24
        $region44: #{clip_text_forward.1} parent=31 // pred_fallthru
          _
        // Predicated region
        $region45: #{clip_text_forward.1} parent=31 // pred_check
          %p549 = pneg %p187
        $region46: #{clip_text_forward.1} parent=31 // pred_check_branch
          %551 = sbr.rel (%p549) target = $region48
        $region47: #{clip_text_forward.1} parent=31 // pred_region
          %p552 = scmp.lt.s32.totalorder %s38, 1
          %s553 = scalar_select %p552, %s38, 1
          %s554 = smul.addr %s553, 6
          %s555 = scalar_lea.vmem %s5, %s554
        $region48: #{clip_text_forward.1} parent=31 // pred_fallthru
          _
        // Predicated region
        $region49: #{clip_text_forward.1} parent=31 // pred_check
          %p556 = pneg %p213
        $region50: #{clip_text_forward.1} parent=31 // pred_check_branch
          %558 = sbr.rel (%p556) target = $region52
        $region51: #{clip_text_forward.1} parent=31 // pred_region
          %s559 = sand.u32 %s30, 1
          %s560 = scalar_lea.sflag [#allocation7], %s559
          %s561 = sand.u32 %s203, 1
          %s562 = smul.addr %s561, 256
          %s563 = scalar_lea.vmem [#allocation8], %s562
          %s565 = ssub.s32 4096, 4096
          %566 = vsyncadd %s560, %s565
          %s567 = smul.addr %s38, 64
          %s568 = smul.addr %s567, 64
          %s569 = scalar_lea.hbm %s6, %s568
          %s570 = sshll.u32 %s563, 4
          %s571 = int_to_ptr.vmem [resolvable:$true] %s570
          %576 = dma.hbm_to_vmem [thread:$0]  %s569, 4096, %s571, %s560, 128, 128, 8
        $region52: #{clip_text_forward.1} parent=31 // pred_fallthru
          _
        // Predicated region
        $region53: #{clip_text_forward.1} parent=31 // pred_check
          %p577 = pneg %p239
        $region54: #{clip_text_forward.1} parent=31 // pred_check_branch
          %579 = sbr.rel (%p577) target = $region56
        $region55: #{clip_text_forward.1} parent=31 // pred_region
          %p580 = scmp.lt.s32.totalorder %s38, 1
          %s581 = scalar_select %p580, %s38, 1
          %s582 = smul.addr %s581, 2
          %s583 = scalar_lea.vmem %s7, %s582
        $region56: #{clip_text_forward.1} parent=31 // pred_fallthru
          _
        // Predicated region
        $region57: #{clip_text_forward.1} parent=31 // pred_check
          %p584 = pneg %p265
        $region58: #{clip_text_forward.1} parent=31 // pred_check_branch
          %586 = sbr.rel (%p584) target = $region60
        $region59: #{clip_text_forward.1} parent=31 // pred_region
          %p587 = scmp.lt.s32.totalorder %s38, 1
          %s588 = scalar_select %p587, %s38, 1
          %s589 = smul.addr %s588, 2
          %s590 = scalar_lea.vmem %s8, %s589
        $region60: #{clip_text_forward.1} parent=31 // pred_fallthru
          _
        // Predicated region
        $region61: #{clip_text_forward.1} parent=31 // pred_check
          %p591 = pneg %p291
        $region62: #{clip_text_forward.1} parent=31 // pred_check_branch
          %593 = sbr.rel (%p591) target = $region64
        $region63: #{clip_text_forward.1} parent=31 // pred_region
          %p594 = scmp.lt.s32.totalorder %s38, 1
          %s595 = scalar_select %p594, %s38, 1
          %s596 = smul.addr %s595, 2
          %s597 = scalar_lea.vmem %s9, %s596
        $region64: #{clip_text_forward.1} parent=31 // pred_fallthru
          _
        // Predicated region
        $region65: #{clip_text_forward.1} parent=31 // pred_check
          %p598 = pneg %p317
        $region66: #{clip_text_forward.1} parent=31 // pred_check_branch
          %600 = sbr.rel (%p598) target = $region68
        $region67: #{clip_text_forward.1} parent=31 // pred_region
          %s601 = sand.u32 %s30, 1
          %s602 = scalar_lea.sflag [#allocation10], %s601
          %s603 = sand.u32 %s307, 1
          %s604 = smul.addr %s603, 1024
          %s605 = scalar_lea.vmem [#allocation9], %s604
          %s607 = ssub.s32 16384, 16384
          %608 = vsyncadd %s602, %s607
          %s609 = smul.addr %s38, 256
          %s610 = smul.addr %s609, 64
          %s611 = scalar_lea.hbm %s10, %s610
          %s612 = sshll.u32 %s605, 4
          %s613 = int_to_ptr.vmem [resolvable:$true] %s612
          %618 = dma.hbm_to_vmem [thread:$0]  %s611, 16384, %s613, %s602, 512, 512, 32
        $region68: #{clip_text_forward.1} parent=31 // pred_fallthru
          _
        // Predicated region
        $region69: #{clip_text_forward.1} parent=31 // pred_check
          %p619 = pneg %p343
        $region70: #{clip_text_forward.1} parent=31 // pred_check_branch
          %621 = sbr.rel (%p619) target = $region72
        $region71: #{clip_text_forward.1} parent=31 // pred_region
          %p622 = scmp.lt.s32.totalorder %s38, 1
          %s623 = scalar_select %p622, %s38, 1
          %s624 = smul.addr %s623, 8
          %s625 = scalar_lea.vmem %s11, %s624
        $region72: #{clip_text_forward.1} parent=31 // pred_fallthru
          _
        // Predicated region
        $region73: #{clip_text_forward.1} parent=31 // pred_check
          %p626 = pneg %p369
        $region74: #{clip_text_forward.1} parent=31 // pred_check_branch
          %628 = sbr.rel (%p626) target = $region76
        $region75: #{clip_text_forward.1} parent=31 // pred_region
          %s629 = sand.u32 %s30, 1
          %s630 = scalar_lea.sflag [#allocation10], %s629
          %s631 = sand.u32 %s359, 1
          %s632 = smul.addr %s631, 1024
          %s633 = scalar_lea.vmem [#allocation11], %s632
          %s635 = ssub.s32 16384, 16384
          %636 = vsyncadd %s630, %s635
          %s637 = smul.addr %s38, 256
          %s638 = smul.addr %s637, 64
          %s639 = scalar_lea.hbm %s12, %s638
          %s640 = sshll.u32 %s633, 4
          %s641 = int_to_ptr.vmem [resolvable:$true] %s640
          %646 = dma.hbm_to_vmem [thread:$0]  %s639, 16384, %s641, %s630, 128, 128, 8
        $region76: #{clip_text_forward.1} parent=31 // pred_fallthru
          _
        // Predicated region
        $region77: #{clip_text_forward.1} parent=31 // pred_check
          %p647 = pneg %p395
        $region78: #{clip_text_forward.1} parent=31 // pred_check_branch
          %649 = sbr.rel (%p647) target = $region80
        $region79: #{clip_text_forward.1} parent=31 // pred_region
          %p650 = scmp.lt.s32.totalorder %s38, 1
          %s651 = scalar_select %p650, %s38, 1
          %s652 = smul.addr %s651, 2
          %s653 = scalar_lea.vmem %s13, %s652
        $region80: #{clip_text_forward.1} parent=31 // pred_fallthru
          _
      $region32: #{clip_text_forward.1} parent=5 // pred_fallthru
        _
      %p654 = scmp.le.s32.totalorder 1, %s30
      %p655 = scmp.lt.s32.totalorder %s30, 3
      %p656 = pnand %p654, %p655
      %p657 = pneg %p656
      // Predicated region
      $region81: #{clip_text_forward.1} parent=5 // pred_check
        _
      $region82: #{clip_text_forward.1} parent=5 // pred_check_branch
        %659 = sbr.rel (%p656) target = $region84
      $region83: #{clip_text_forward.1} parent=5 // pred_region
        %s660 = ssub.s32 %s30, 1
        // Predicated region
        $region85: #{clip_text_forward.1} parent=83 // pred_check
          %p661 = pneg %p68
        $region86: #{clip_text_forward.1} parent=83 // pred_check_branch
          %663 = sbr.rel (%p661) target = $region88
        $region87: #{clip_text_forward.1} parent=83 // pred_region
          %664 = dma.done [#allocation4], 512
        $region88: #{clip_text_forward.1} parent=83 // pred_fallthru
          _
        %s665 = sand.u32 %s35, 1
        %s666 = scalar_lea.sflag [#allocation7], %s665
        %s667 = sand.u32 %s154, 1
        %s668 = smul.addr %s667, 768
        %s669 = scalar_lea.vmem [#allocation6], %s668
        // Predicated region
        $region89: #{clip_text_forward.1} parent=83 // pred_check
          %p670 = pneg %p167
        $region90: #{clip_text_forward.1} parent=83 // pred_check_branch
          %672 = sbr.rel (%p670) target = $region92
        $region91: #{clip_text_forward.1} parent=83 // pred_region
          %673 = dma.done %s666, 12288
        $region92: #{clip_text_forward.1} parent=83 // pred_fallthru
          _
        %s674 = sand.u32 %s35, 1
        %s675 = scalar_lea.sflag [#allocation7], %s674
        %s676 = sand.u32 %s206, 1
        %s677 = smul.addr %s676, 256
        %s678 = scalar_lea.vmem [#allocation8], %s677
        // Predicated region
        $region93: #{clip_text_forward.1} parent=83 // pred_check
          %p679 = pneg %p219
        $region94: #{clip_text_forward.1} parent=83 // pred_check_branch
          %681 = sbr.rel (%p679) target = $region96
        $region95: #{clip_text_forward.1} parent=83 // pred_region
          %682 = dma.done %s675, 4096
        $region96: #{clip_text_forward.1} parent=83 // pred_fallthru
          _
        %s683 = sand.u32 %s35, 1
        %s684 = scalar_lea.sflag [#allocation10], %s683
        %s685 = sand.u32 %s310, 1
        %s686 = smul.addr %s685, 1024
        %s687 = scalar_lea.vmem [#allocation9], %s686
        // Predicated region
        $region97: #{clip_text_forward.1} parent=83 // pred_check
          %p688 = pneg %p323
        $region98: #{clip_text_forward.1} parent=83 // pred_check_branch
          %690 = sbr.rel (%p688) target = $region100
        $region99: #{clip_text_forward.1} parent=83 // pred_region
          %691 = dma.done %s684, 16384
        $region100: #{clip_text_forward.1} parent=83 // pred_fallthru
          _
        %s692 = sand.u32 %s35, 1
        %s693 = scalar_lea.sflag [#allocation10], %s692
        %s694 = sand.u32 %s362, 1
        %s695 = smul.addr %s694, 1024
        %s696 = scalar_lea.vmem [#allocation11], %s695
        // Predicated region
        $region101: #{clip_text_forward.1} parent=83 // pred_check
          %p697 = pneg %p375
        $region102: #{clip_text_forward.1} parent=83 // pred_check_branch
          %699 = sbr.rel (%p697) target = $region104
        $region103: #{clip_text_forward.1} parent=83 // pred_region
          %700 = dma.done %s693, 16384
        $region104: #{clip_text_forward.1} parent=83 // pred_fallthru
          _
        %p701 = pneg %p68
        %p702 = pneg %p65
        %p703 = pneg %p89
        %p704 = pneg %p86
        %p705 = scmp.lt.s32.totalorder %s40, 1
        %s706 = scalar_select %p705, %s40, 1
        %s707 = smul.addr %s706, 2
        %s708 = scalar_lea.vmem %s2, %s707
        %p709 = pneg %p115
        %p710 = pneg %p112
        %p711 = scmp.lt.s32.totalorder %s40, 1
        %s712 = scalar_select %p711, %s40, 1
        %s713 = smul.addr %s712, 2
        %s714 = scalar_lea.vmem %s3, %s713
        %p715 = pneg %p141
        %p716 = pneg %p138
        %s717 = sand.u32 %s35, 1
        %s718 = scalar_lea.sflag [#allocation7], %s717
        %s719 = sand.u32 %s154, 1
        %s720 = smul.addr %s719, 768
        %s721 = scalar_lea.vmem [#allocation6], %s720
        %p722 = pneg %p167
        %p723 = pneg %p164
        %p724 = scmp.lt.s32.totalorder %s40, 1
        %s725 = scalar_select %p724, %s40, 1
        %s726 = smul.addr %s725, 6
        %s727 = scalar_lea.vmem %s5, %s726
        %p728 = pneg %p193
        %p729 = pneg %p190
        %s730 = sand.u32 %s35, 1
        %s731 = scalar_lea.sflag [#allocation7], %s730
        %s732 = sand.u32 %s206, 1
        %s733 = smul.addr %s732, 256
        %s734 = scalar_lea.vmem [#allocation8], %s733
        %p735 = pneg %p219
        %p736 = pneg %p216
        %p737 = scmp.lt.s32.totalorder %s40, 1
        %s738 = scalar_select %p737, %s40, 1
        %s739 = smul.addr %s738, 2
        %s740 = scalar_lea.vmem %s7, %s739
        %p741 = pneg %p245
        %p742 = pneg %p242
        %p743 = scmp.lt.s32.totalorder %s40, 1
        %s744 = scalar_select %p743, %s40, 1
        %s745 = smul.addr %s744, 2
        %s746 = scalar_lea.vmem %s8, %s745
        %p747 = pneg %p271
        %p748 = pneg %p268
        %p749 = scmp.lt.s32.totalorder %s40, 1
        %s750 = scalar_select %p749, %s40, 1
        %s751 = smul.addr %s750, 2
        %s752 = scalar_lea.vmem %s9, %s751
        %p753 = pneg %p297
        %p754 = pneg %p294
        %s755 = sand.u32 %s35, 1
        %s756 = scalar_lea.sflag [#allocation10], %s755
        %s757 = sand.u32 %s310, 1
        %s758 = smul.addr %s757, 1024
        %s759 = scalar_lea.vmem [#allocation9], %s758
        %p760 = pneg %p323
        %p761 = pneg %p320
        %p762 = scmp.lt.s32.totalorder %s40, 1
        %s763 = scalar_select %p762, %s40, 1
        %s764 = smul.addr %s763, 8
        %s765 = scalar_lea.vmem %s11, %s764
        %p766 = pneg %p349
        %p767 = pneg %p346
        %s768 = sand.u32 %s35, 1
        %s769 = scalar_lea.sflag [#allocation10], %s768
        %s770 = sand.u32 %s362, 1
        %s771 = smul.addr %s770, 1024
        %s772 = scalar_lea.vmem [#allocation11], %s771
        %p773 = pneg %p375
        %p774 = pneg %p372
        %p775 = scmp.lt.s32.totalorder %s40, 1
        %s776 = scalar_select %p775, %s40, 1
        %s777 = smul.addr %s776, 2
        %s778 = scalar_lea.vmem %s13, %s777
        %p779 = pneg %p401
        %p780 = pneg %p398
        %p781 = pneg %p422
        %p782 = pneg %p419
        %p783 = pneg %p443
        %p784 = pneg %p440
        %p785 = pneg %p469
        %p786 = pneg %p466
        %s787 = smul.u32 2, %s39
        %p788 = scmp.lt.s32.totalorder %s40, 1
        %s789 = scalar_select %p788, %s40, 1
        %s790 = smul.addr %s789, 2
        %s791 = scalar_lea.vmem %s2, %s790
        %p792 = scmp.lt.s32.totalorder %s40, 1
        %s793 = scalar_select %p792, %s40, 1
        %s794 = smul.addr %s793, 2
        %s795 = scalar_lea.vmem %s3, %s794
        %p796 = scmp.lt.s32.totalorder %s40, 1
        %s797 = scalar_select %p796, %s40, 1
        %s798 = smul.addr %s797, 6
        %s799 = scalar_lea.vmem %s5, %s798
        %p800 = scmp.lt.s32.totalorder %s40, 1
        %s801 = scalar_select %p800, %s40, 1
        %s802 = smul.addr %s801, 2
        %s803 = scalar_lea.vmem %s7, %s802
        %p804 = scmp.lt.s32.totalorder %s40, 1
        %s805 = scalar_select %p804, %s40, 1
        %s806 = smul.addr %s805, 2
        %s807 = scalar_lea.vmem %s8, %s806
        %p808 = scmp.lt.s32.totalorder %s40, 1
        %s809 = scalar_select %p808, %s40, 1
        %s810 = smul.addr %s809, 2
        %s811 = scalar_lea.vmem %s9, %s810
        %p812 = scmp.lt.s32.totalorder %s40, 1
        %s813 = scalar_select %p812, %s40, 1
        %s814 = smul.addr %s813, 8
        %s815 = scalar_lea.vmem %s11, %s814
        %p816 = scmp.lt.s32.totalorder %s40, 1
        %s817 = scalar_select %p816, %s40, 1
        %s818 = smul.addr %s817, 2
        %s819 = scalar_lea.vmem %s13, %s818
        %s820 = smul.u32 2, %s39
        %p822 = scmp.eq.s32.totalorder %s40, 0
        // Predicated region
        $region105: #{clip_text_forward.1} parent=83 // pred_check
          %p823 = pneg %p822
        $region106: #{clip_text_forward.1} parent=83 // pred_check_branch
          %825 = sbr.rel (%p823) target = $region108
        $region107: #{clip_text_forward.1} parent=83 // pred_region
          %v826 = vld [vmem:[#allocation3] sm:$0xff]
          %v827 = vld [vmem:[#allocation3 + $0x8] sm:$0xff]
          %v828 = vld [vmem:[#allocation3 + $0x10] sm:$0xff]
          %v829 = vld [vmem:[#allocation3 + $0x18] sm:$0xff]
          %830 = vst [vmem:[#allocation12] sm:$0xff] %v826
          %831 = vst [vmem:[#allocation12 + $0x8] sm:$0xff] %v827
          %832 = vst [vmem:[#allocation12 + $0x10] sm:$0xff] %v828
          %833 = vst [vmem:[#allocation12 + $0x18] sm:$0xff] %v829
        $region108: #{clip_text_forward.1} parent=83 // pred_fallthru
          _
        %v834 = vld [vmem:[#allocation12] sm:$0xff]
        %v835 = vld [vmem:[#allocation12 + $0x8] sm:$0xff]
        %v836 = vld [vmem:[#allocation12 + $0x10] sm:$0xff]
        %v837 = vld [vmem:[#allocation12 + $0x18] sm:$0xff]
        %v838 = vld [vmem:[%s1] sm:$0xff]
        %v839 = vld [vmem:[%s791] sm:$0x3]
        %v840 = vld [vmem:[%s795] sm:$0x3]
        %v841 = vadd.f32 %v834, %v835
        %842 = vadd.xlane.f32.xlu0 %v841
        %v843 = vpop.xlane.xlu0 %842
        %v844 = vadd.f32 %v836, %v837
        %845 = vadd.xlane.f32.xlu0 %v844
        %v846 = vpop.xlane.xlu0 %845
        %v847 = vrcp.pop 256.0
        %v848 = vmul.f32 %v843, %v847
        %v849 = vmul.f32 %v846, %v847
        %v850 = vsub.f32 %v834, %v848
        %v851 = vsub.f32 %v835, %v848
        %v852 = vsub.f32 %v836, %v849
        %v853 = vsub.f32 %v837, %v849
        %v854 = vmul.f32 %v850, %v850
        %v855 = vmul.f32 %v851, %v851
        %v856 = vmul.f32 %v852, %v852
        %v857 = vmul.f32 %v853, %v853
        %v858 = vadd.f32 %v854, %v855
        %859 = vadd.xlane.f32.xlu0 %v858
        %v860 = vpop.xlane.xlu0 %859
        %v861 = vadd.f32 %v856, %v857
        %862 = vadd.xlane.f32.xlu0 %v861
        %v863 = vpop.xlane.xlu0 %862
        %v864 = vmul.f32 %v860, %v847
        %v865 = vmul.f32 %v863, %v847
        %v866 = vadd.f32 %v864, 1e-05
        %v867 = vadd.f32 %v865, 1e-05
        %v868 = vrsqrt.pop %v866
        %v869 = vrsqrt.pop %v867
        %v870 = vmul.f32 %v850, %v868
        %v871 = vmul.f32 %v851, %v868
        %v872 = vmul.f32 %v852, %v869
        %v873 = vmul.f32 %v853, %v869
        %v875 = vlaneseq
        %v876 = vshrl.u32 %v875, 7
        %v877 = vsub.s32 0, %v876
        %v878 = vrot.slane %v839, %v877
        %v879 = vlaneseq
        %v880 = vshrl.u32 %v879, 7
        %v881 = vsub.s32 1, %v880
        %v882 = vrot.slane %v839, %v881
        %v885 = vmul.f32 %v870, %v878
        %v886 = vmul.f32 %v871, %v882
        %v887 = vmul.f32 %v872, %v878
        %v888 = vmul.f32 %v873, %v882
        %v890 = vlaneseq
        %v891 = vshrl.u32 %v890, 7
        %v892 = vsub.s32 0, %v891
        %v893 = vrot.slane %v840, %v892
        %v894 = vlaneseq
        %v895 = vshrl.u32 %v894, 7
        %v896 = vsub.s32 1, %v895
        %v897 = vrot.slane %v840, %v896
        %v900 = vadd.f32 %v885, %v893
        %v901 = vadd.f32 %v886, %v897
        %v902 = vadd.f32 %v887, %v893
        %v903 = vadd.f32 %v888, %v897
        %v904 = vpack.c.bf16 %v902, %v900
        %v905 = vpack.c.bf16 %v903, %v901
        %v906 = vld [vmem:[%s669] sm:$0xff]
        %v907 = vld [vmem:[%s669 + $0x8] sm:$0xff]
        %v908 = vld [vmem:[%s669 + $0x10] sm:$0xff]
        %v909 = vld [vmem:[%s669 + $0x18] sm:$0xff]
        %v910 = vld [vmem:[%s669 + $0x20] sm:$0xff]
        %v911 = vld [vmem:[%s669 + $0x28] sm:$0xff]
        %v912 = vld [vmem:[%s669 + $0x30] sm:$0xff]
        %v913 = vld [vmem:[%s669 + $0x38] sm:$0xff]
        %v914 = vld [vmem:[%s669 + $0x40] sm:$0xff]
        %v915 = vld [vmem:[%s669 + $0x48] sm:$0xff]
        %v916 = vld [vmem:[%s669 + $0x50] sm:$0xff]
        %v917 = vld [vmem:[%s669 + $0x58] sm:$0xff]
        %v918 = vld [vmem:[%s669 + $0x60] sm:$0xff]
        %v919 = vld [vmem:[%s669 + $0x68] sm:$0xff]
        %v920 = vld [vmem:[%s669 + $0x70] sm:$0xff]
        %v921 = vld [vmem:[%s669 + $0x78] sm:$0xff]
        %v922 = vld [vmem:[%s669 + $0x80] sm:$0xff]
        %v923 = vld [vmem:[%s669 + $0x88] sm:$0xff]
        %v924 = vld [vmem:[%s669 + $0x90] sm:$0xff]
        %v925 = vld [vmem:[%s669 + $0x98] sm:$0xff]
        %v926 = vld [vmem:[%s669 + $0xa0] sm:$0xff]
        %v927 = vld [vmem:[%s669 + $0xa8] sm:$0xff]
        %v928 = vld [vmem:[%s669 + $0xb0] sm:$0xff]
        %v929 = vld [vmem:[%s669 + $0xb8] sm:$0xff]
        %v930 = vld [vmem:[%s669 + $0xc0] sm:$0xff]
        %v931 = vld [vmem:[%s669 + $0xc8] sm:$0xff]
        %v932 = vld [vmem:[%s669 + $0xd0] sm:$0xff]
        %v933 = vld [vmem:[%s669 + $0xd8] sm:$0xff]
        %v934 = vld [vmem:[%s669 + $0xe0] sm:$0xff]
        %v935 = vld [vmem:[%s669 + $0xe8] sm:$0xff]
        %v936 = vld [vmem:[%s669 + $0xf0] sm:$0xff]
        %v937 = vld [vmem:[%s669 + $0xf8] sm:$0xff]
        %v938 = vld [vmem:[%s669 + $0x100] sm:$0xff]
        %v939 = vld [vmem:[%s669 + $0x108] sm:$0xff]
        %v940 = vld [vmem:[%s669 + $0x110] sm:$0xff]
        %v941 = vld [vmem:[%s669 + $0x118] sm:$0xff]
        %v942 = vld [vmem:[%s669 + $0x120] sm:$0xff]
        %v943 = vld [vmem:[%s669 + $0x128] sm:$0xff]
        %v944 = vld [vmem:[%s669 + $0x130] sm:$0xff]
        %v945 = vld [vmem:[%s669 + $0x138] sm:$0xff]
        %v946 = vld [vmem:[%s669 + $0x140] sm:$0xff]
        %v947 = vld [vmem:[%s669 + $0x148] sm:$0xff]
        %v948 = vld [vmem:[%s669 + $0x150] sm:$0xff]
        %v949 = vld [vmem:[%s669 + $0x158] sm:$0xff]
        %v950 = vld [vmem:[%s669 + $0x160] sm:$0xff]
        %v951 = vld [vmem:[%s669 + $0x168] sm:$0xff]
        %v952 = vld [vmem:[%s669 + $0x170] sm:$0xff]
        %v953 = vld [vmem:[%s669 + $0x178] sm:$0xff]
        %v954 = vld [vmem:[%s669 + $0x180] sm:$0xff]
        %v955 = vld [vmem:[%s669 + $0x188] sm:$0xff]
        %v956 = vld [vmem:[%s669 + $0x190] sm:$0xff]
        %v957 = vld [vmem:[%s669 + $0x198] sm:$0xff]
        %v958 = vld [vmem:[%s669 + $0x1a0] sm:$0xff]
        %v959 = vld [vmem:[%s669 + $0x1a8] sm:$0xff]
        %v960 = vld [vmem:[%s669 + $0x1b0] sm:$0xff]
        %v961 = vld [vmem:[%s669 + $0x1b8] sm:$0xff]
        %v962 = vld [vmem:[%s669 + $0x1c0] sm:$0xff]
        %v963 = vld [vmem:[%s669 + $0x1c8] sm:$0xff]
        %v964 = vld [vmem:[%s669 + $0x1d0] sm:$0xff]
        %v965 = vld [vmem:[%s669 + $0x1d8] sm:$0xff]
        %v966 = vld [vmem:[%s669 + $0x1e0] sm:$0xff]
        %v967 = vld [vmem:[%s669 + $0x1e8] sm:$0xff]
        %v968 = vld [vmem:[%s669 + $0x1f0] sm:$0xff]
        %v969 = vld [vmem:[%s669 + $0x1f8] sm:$0xff]
        %v970 = vld [vmem:[%s669 + $0x200] sm:$0xff]
        %v971 = vld [vmem:[%s669 + $0x208] sm:$0xff]
        %v972 = vld [vmem:[%s669 + $0x210] sm:$0xff]
        %v973 = vld [vmem:[%s669 + $0x218] sm:$0xff]
        %v974 = vld [vmem:[%s669 + $0x220] sm:$0xff]
        %v975 = vld [vmem:[%s669 + $0x228] sm:$0xff]
        %v976 = vld [vmem:[%s669 + $0x230] sm:$0xff]
        %v977 = vld [vmem:[%s669 + $0x238] sm:$0xff]
        %v978 = vld [vmem:[%s669 + $0x240] sm:$0xff]
        %v979 = vld [vmem:[%s669 + $0x248] sm:$0xff]
        %v980 = vld [vmem:[%s669 + $0x250] sm:$0xff]
        %v981 = vld [vmem:[%s669 + $0x258] sm:$0xff]
        %v982 = vld [vmem:[%s669 + $0x260] sm:$0xff]
        %v983 = vld [vmem:[%s669 + $0x268] sm:$0xff]
        %v984 = vld [vmem:[%s669 + $0x270] sm:$0xff]
        %v985 = vld [vmem:[%s669 + $0x278] sm:$0xff]
        %v986 = vld [vmem:[%s669 + $0x280] sm:$0xff]
        %v987 = vld [vmem:[%s669 + $0x288] sm:$0xff]
        %v988 = vld [vmem:[%s669 + $0x290] sm:$0xff]
        %v989 = vld [vmem:[%s669 + $0x298] sm:$0xff]
        %v990 = vld [vmem:[%s669 + $0x2a0] sm:$0xff]
        %v991 = vld [vmem:[%s669 + $0x2a8] sm:$0xff]
        %v992 = vld [vmem:[%s669 + $0x2b0] sm:$0xff]
        %v993 = vld [vmem:[%s669 + $0x2b8] sm:$0xff]
        %v994 = vld [vmem:[%s669 + $0x2c0] sm:$0xff]
        %v995 = vld [vmem:[%s669 + $0x2c8] sm:$0xff]
        %v996 = vld [vmem:[%s669 + $0x2d0] sm:$0xff]
        %v997 = vld [vmem:[%s669 + $0x2d8] sm:$0xff]
        %v998 = vld [vmem:[%s669 + $0x2e0] sm:$0xff]
        %v999 = vld [vmem:[%s669 + $0x2e8] sm:$0xff]
        %v1000 = vld [vmem:[%s669 + $0x2f0] sm:$0xff]
        %v1001 = vld [vmem:[%s669 + $0x2f8] sm:$0xff]
        %v1002 = vld [vmem:[%s799] sm:$0x3f]
        %v1004 = vlaneseq
        %v1005 = vshrl.u32 %v1004, 7
        %v1006 = vsub.s32 0, %v1005
        %v1007 = vrot.slane %v1002, %v1006
        %v1008 = vlaneseq
        %v1009 = vshrl.u32 %v1008, 7
        %v1010 = vsub.s32 1, %v1009
        %v1011 = vrot.slane %v1002, %v1010
        %v1012 = vlaneseq
        %v1013 = vshrl.u32 %v1012, 7
        %v1014 = vsub.s32 2, %v1013
        %v1015 = vrot.slane %v1002, %v1014
        %v1016 = vlaneseq
        %v1017 = vshrl.u32 %v1016, 7
        %v1018 = vsub.s32 3, %v1017
        %v1019 = vrot.slane %v1002, %v1018
        %v1020 = vlaneseq
        %v1021 = vshrl.u32 %v1020, 7
        %v1022 = vsub.s32 4, %v1021
        %v1023 = vrot.slane %v1002, %v1022
        %v1024 = vlaneseq
        %v1025 = vshrl.u32 %v1024, 7
        %v1026 = vsub.s32 5, %v1025
        %v1027 = vrot.slane %v1002, %v1026
        %v1130 = vunpack.c.l.b16 %v906
        %v1131 = vunpack.c.h.b16 %v906
        %v1132 = vunpack.c.l.b16 %v907
        %v1133 = vunpack.c.h.b16 %v907
        %v1134 = vunpack.c.l.b16 %v908
        %v1135 = vunpack.c.h.b16 %v908
        %v1136 = vunpack.c.l.b16 %v909
        %v1137 = vunpack.c.h.b16 %v909
        %v1138 = vunpack.c.l.b16 %v910
        %v1139 = vunpack.c.h.b16 %v910
        %v1140 = vunpack.c.l.b16 %v911
        %v1141 = vunpack.c.h.b16 %v911
        %v1142 = vunpack.c.l.b16 %v912
        %v1143 = vunpack.c.h.b16 %v912
        %v1144 = vunpack.c.l.b16 %v913
        %v1145 = vunpack.c.h.b16 %v913
        %v1146 = vunpack.c.l.b16 %v914
        %v1147 = vunpack.c.h.b16 %v914
        %v1148 = vunpack.c.l.b16 %v915
        %v1149 = vunpack.c.h.b16 %v915
        %v1150 = vunpack.c.l.b16 %v916
        %v1151 = vunpack.c.h.b16 %v916
        %v1152 = vunpack.c.l.b16 %v917
        %v1153 = vunpack.c.h.b16 %v917
        %v1154 = vunpack.c.l.b16 %v918
        %v1155 = vunpack.c.h.b16 %v918
        %v1156 = vunpack.c.l.b16 %v919
        %v1157 = vunpack.c.h.b16 %v919
        %v1158 = vunpack.c.l.b16 %v920
        %v1159 = vunpack.c.h.b16 %v920
        %v1160 = vunpack.c.l.b16 %v921
        %v1161 = vunpack.c.h.b16 %v921
        %v1162 = vunpack.c.l.b16 %v922
        %v1163 = vunpack.c.h.b16 %v922
        %v1164 = vunpack.c.l.b16 %v923
        %v1165 = vunpack.c.h.b16 %v923
        %v1166 = vunpack.c.l.b16 %v924
        %v1167 = vunpack.c.h.b16 %v924
        %v1168 = vunpack.c.l.b16 %v925
        %v1169 = vunpack.c.h.b16 %v925
        %v1170 = vunpack.c.l.b16 %v926
        %v1171 = vunpack.c.h.b16 %v926
        %v1172 = vunpack.c.l.b16 %v927
        %v1173 = vunpack.c.h.b16 %v927
        %v1174 = vunpack.c.l.b16 %v928
        %v1175 = vunpack.c.h.b16 %v928
        %v1176 = vunpack.c.l.b16 %v929
        %v1177 = vunpack.c.h.b16 %v929
        %v1178 = vunpack.c.l.b16 %v930
        %v1179 = vunpack.c.h.b16 %v930
        %v1180 = vunpack.c.l.b16 %v931
        %v1181 = vunpack.c.h.b16 %v931
        %v1182 = vunpack.c.l.b16 %v932
        %v1183 = vunpack.c.h.b16 %v932
        %v1184 = vunpack.c.l.b16 %v933
        %v1185 = vunpack.c.h.b16 %v933
        %v1186 = vunpack.c.l.b16 %v934
        %v1187 = vunpack.c.h.b16 %v934
        %v1188 = vunpack.c.l.b16 %v935
        %v1189 = vunpack.c.h.b16 %v935
        %v1190 = vunpack.c.l.b16 %v936
        %v1191 = vunpack.c.h.b16 %v936
        %v1192 = vunpack.c.l.b16 %v937
        %v1193 = vunpack.c.h.b16 %v937
        %v1194 = vunpack.c.l.b16 %v938
        %v1195 = vunpack.c.h.b16 %v938
        %v1196 = vunpack.c.l.b16 %v939
        %v1197 = vunpack.c.h.b16 %v939
        %v1198 = vunpack.c.l.b16 %v940
        %v1199 = vunpack.c.h.b16 %v940
        %v1200 = vunpack.c.l.b16 %v941
        %v1201 = vunpack.c.h.b16 %v941
        %v1202 = vunpack.c.l.b16 %v942
        %v1203 = vunpack.c.h.b16 %v942
        %v1204 = vunpack.c.l.b16 %v943
        %v1205 = vunpack.c.h.b16 %v943
        %v1206 = vunpack.c.l.b16 %v944
        %v1207 = vunpack.c.h.b16 %v944
        %v1208 = vunpack.c.l.b16 %v945
        %v1209 = vunpack.c.h.b16 %v945
        %v1210 = vunpack.c.l.b16 %v946
        %v1211 = vunpack.c.h.b16 %v946
        %v1212 = vunpack.c.l.b16 %v947
        %v1213 = vunpack.c.h.b16 %v947
        %v1214 = vunpack.c.l.b16 %v948
        %v1215 = vunpack.c.h.b16 %v948
        %v1216 = vunpack.c.l.b16 %v949
        %v1217 = vunpack.c.h.b16 %v949
        %v1218 = vunpack.c.l.b16 %v950
        %v1219 = vunpack.c.h.b16 %v950
        %v1220 = vunpack.c.l.b16 %v951
        %v1221 = vunpack.c.h.b16 %v951
        %v1222 = vunpack.c.l.b16 %v952
        %v1223 = vunpack.c.h.b16 %v952
        %v1224 = vunpack.c.l.b16 %v953
        %v1225 = vunpack.c.h.b16 %v953
        %v1226 = vunpack.c.l.b16 %v954
        %v1227 = vunpack.c.h.b16 %v954
        %v1228 = vunpack.c.l.b16 %v955
        %v1229 = vunpack.c.h.b16 %v955
        %v1230 = vunpack.c.l.b16 %v956
        %v1231 = vunpack.c.h.b16 %v956
        %v1232 = vunpack.c.l.b16 %v957
        %v1233 = vunpack.c.h.b16 %v957
        %v1234 = vunpack.c.l.b16 %v958
        %v1235 = vunpack.c.h.b16 %v958
        %v1236 = vunpack.c.l.b16 %v959
        %v1237 = vunpack.c.h.b16 %v959
        %v1238 = vunpack.c.l.b16 %v960
        %v1239 = vunpack.c.h.b16 %v960
        %v1240 = vunpack.c.l.b16 %v961
        %v1241 = vunpack.c.h.b16 %v961
        %v1242 = vunpack.c.l.b16 %v962
        %v1243 = vunpack.c.h.b16 %v962
        %v1244 = vunpack.c.l.b16 %v963
        %v1245 = vunpack.c.h.b16 %v963
        %v1246 = vunpack.c.l.b16 %v964
        %v1247 = vunpack.c.h.b16 %v964
        %v1248 = vunpack.c.l.b16 %v965
        %v1249 = vunpack.c.h.b16 %v965
        %v1250 = vunpack.c.l.b16 %v966
        %v1251 = vunpack.c.h.b16 %v966
        %v1252 = vunpack.c.l.b16 %v967
        %v1253 = vunpack.c.h.b16 %v967
        %v1254 = vunpack.c.l.b16 %v968
        %v1255 = vunpack.c.h.b16 %v968
        %v1256 = vunpack.c.l.b16 %v969
        %v1257 = vunpack.c.h.b16 %v969
        %v1258 = vunpack.c.l.b16 %v970
        %v1259 = vunpack.c.h.b16 %v970
        %v1260 = vunpack.c.l.b16 %v971
        %v1261 = vunpack.c.h.b16 %v971
        %v1262 = vunpack.c.l.b16 %v972
        %v1263 = vunpack.c.h.b16 %v972
        %v1264 = vunpack.c.l.b16 %v973
        %v1265 = vunpack.c.h.b16 %v973
        %v1266 = vunpack.c.l.b16 %v974
        %v1267 = vunpack.c.h.b16 %v974
        %v1268 = vunpack.c.l.b16 %v975
        %v1269 = vunpack.c.h.b16 %v975
        %v1270 = vunpack.c.l.b16 %v976
        %v1271 = vunpack.c.h.b16 %v976
        %v1272 = vunpack.c.l.b16 %v977
        %v1273 = vunpack.c.h.b16 %v977
        %v1274 = vunpack.c.l.b16 %v978
        %v1275 = vunpack.c.h.b16 %v978
        %v1276 = vunpack.c.l.b16 %v979
        %v1277 = vunpack.c.h.b16 %v979
        %v1278 = vunpack.c.l.b16 %v980
        %v1279 = vunpack.c.h.b16 %v980
        %v1280 = vunpack.c.l.b16 %v981
        %v1281 = vunpack.c.h.b16 %v981
        %v1282 = vunpack.c.l.b16 %v982
        %v1283 = vunpack.c.h.b16 %v982
        %v1284 = vunpack.c.l.b16 %v983
        %v1285 = vunpack.c.h.b16 %v983
        %v1286 = vunpack.c.l.b16 %v984
        %v1287 = vunpack.c.h.b16 %v984
        %v1288 = vunpack.c.l.b16 %v985
        %v1289 = vunpack.c.h.b16 %v985
        %v1290 = vunpack.c.l.b16 %v986
        %v1291 = vunpack.c.h.b16 %v986
        %v1292 = vunpack.c.l.b16 %v987
        %v1293 = vunpack.c.h.b16 %v987
        %v1294 = vunpack.c.l.b16 %v988
        %v1295 = vunpack.c.h.b16 %v988
        %v1296 = vunpack.c.l.b16 %v989
        %v1297 = vunpack.c.h.b16 %v989
        %v1298 = vunpack.c.l.b16 %v990
        %v1299 = vunpack.c.h.b16 %v990
        %v1300 = vunpack.c.l.b16 %v991
        %v1301 = vunpack.c.h.b16 %v991
        %v1302 = vunpack.c.l.b16 %v992
        %v1303 = vunpack.c.h.b16 %v992
        %v1304 = vunpack.c.l.b16 %v993
        %v1305 = vunpack.c.h.b16 %v993
        %v1306 = vunpack.c.l.b16 %v994
        %v1307 = vunpack.c.h.b16 %v994
        %v1308 = vunpack.c.l.b16 %v995
        %v1309 = vunpack.c.h.b16 %v995
        %v1310 = vunpack.c.l.b16 %v996
        %v1311 = vunpack.c.h.b16 %v996
        %v1312 = vunpack.c.l.b16 %v997
        %v1313 = vunpack.c.h.b16 %v997
        %v1314 = vunpack.c.l.b16 %v998
        %v1315 = vunpack.c.h.b16 %v998
        %v1316 = vunpack.c.l.b16 %v999
        %v1317 = vunpack.c.h.b16 %v999
        %v1318 = vunpack.c.l.b16 %v1000
        %v1319 = vunpack.c.h.b16 %v1000
        %v1320 = vunpack.c.l.b16 %v1001
        %v1321 = vunpack.c.h.b16 %v1001
        %v1322 = vpack.c.b16 %v1136, %v1130
        %v1323 = vpack.c.b16 %v1137, %v1131
        %v1324 = vpack.c.b16 %v1138, %v1132
        %v1325 = vpack.c.b16 %v1139, %v1133
        %v1326 = vpack.c.b16 %v1140, %v1134
        %v1327 = vpack.c.b16 %v1141, %v1135
        %v1328 = vpack.c.b16 %v1148, %v1142
        %v1329 = vpack.c.b16 %v1149, %v1143
        %v1330 = vpack.c.b16 %v1150, %v1144
        %v1331 = vpack.c.b16 %v1151, %v1145
        %v1332 = vpack.c.b16 %v1152, %v1146
        %v1333 = vpack.c.b16 %v1153, %v1147
        %v1334 = vpack.c.b16 %v1160, %v1154
        %v1335 = vpack.c.b16 %v1161, %v1155
        %v1336 = vpack.c.b16 %v1162, %v1156
        %v1337 = vpack.c.b16 %v1163, %v1157
        %v1338 = vpack.c.b16 %v1164, %v1158
        %v1339 = vpack.c.b16 %v1165, %v1159
        %v1340 = vpack.c.b16 %v1172, %v1166
        %v1341 = vpack.c.b16 %v1173, %v1167
        %v1342 = vpack.c.b16 %v1174, %v1168
        %v1343 = vpack.c.b16 %v1175, %v1169
        %v1344 = vpack.c.b16 %v1176, %v1170
        %v1345 = vpack.c.b16 %v1177, %v1171
        %v1346 = vpack.c.b16 %v1184, %v1178
        %v1347 = vpack.c.b16 %v1185, %v1179
        %v1348 = vpack.c.b16 %v1186, %v1180
        %v1349 = vpack.c.b16 %v1187, %v1181
        %v1350 = vpack.c.b16 %v1188, %v1182
        %v1351 = vpack.c.b16 %v1189, %v1183
        %v1352 = vpack.c.b16 %v1196, %v1190
        %v1353 = vpack.c.b16 %v1197, %v1191
        %v1354 = vpack.c.b16 %v1198, %v1192
        %v1355 = vpack.c.b16 %v1199, %v1193
        %v1356 = vpack.c.b16 %v1200, %v1194
        %v1357 = vpack.c.b16 %v1201, %v1195
        %v1358 = vpack.c.b16 %v1208, %v1202
        %v1359 = vpack.c.b16 %v1209, %v1203
        %v1360 = vpack.c.b16 %v1210, %v1204
        %v1361 = vpack.c.b16 %v1211, %v1205
        %v1362 = vpack.c.b16 %v1212, %v1206
        %v1363 = vpack.c.b16 %v1213, %v1207
        %v1364 = vpack.c.b16 %v1220, %v1214
        %v1365 = vpack.c.b16 %v1221, %v1215
        %v1366 = vpack.c.b16 %v1222, %v1216
        %v1367 = vpack.c.b16 %v1223, %v1217
        %v1368 = vpack.c.b16 %v1224, %v1218
        %v1369 = vpack.c.b16 %v1225, %v1219
        %v1370 = vpack.c.b16 %v1232, %v1226
        %v1371 = vpack.c.b16 %v1233, %v1227
        %v1372 = vpack.c.b16 %v1234, %v1228
        %v1373 = vpack.c.b16 %v1235, %v1229
        %v1374 = vpack.c.b16 %v1236, %v1230
        %v1375 = vpack.c.b16 %v1237, %v1231
        %v1376 = vpack.c.b16 %v1244, %v1238
        %v1377 = vpack.c.b16 %v1245, %v1239
        %v1378 = vpack.c.b16 %v1246, %v1240
        %v1379 = vpack.c.b16 %v1247, %v1241
        %v1380 = vpack.c.b16 %v1248, %v1242
        %v1381 = vpack.c.b16 %v1249, %v1243
        %v1382 = vpack.c.b16 %v1256, %v1250
        %v1383 = vpack.c.b16 %v1257, %v1251
        %v1384 = vpack.c.b16 %v1258, %v1252
        %v1385 = vpack.c.b16 %v1259, %v1253
        %v1386 = vpack.c.b16 %v1260, %v1254
        %v1387 = vpack.c.b16 %v1261, %v1255
        %v1388 = vpack.c.b16 %v1268, %v1262
        %v1389 = vpack.c.b16 %v1269, %v1263
        %v1390 = vpack.c.b16 %v1270, %v1264
        %v1391 = vpack.c.b16 %v1271, %v1265
        %v1392 = vpack.c.b16 %v1272, %v1266
        %v1393 = vpack.c.b16 %v1273, %v1267
        %v1394 = vpack.c.b16 %v1280, %v1274
        %v1395 = vpack.c.b16 %v1281, %v1275
        %v1396 = vpack.c.b16 %v1282, %v1276
        %v1397 = vpack.c.b16 %v1283, %v1277
        %v1398 = vpack.c.b16 %v1284, %v1278
        %v1399 = vpack.c.b16 %v1285, %v1279
        %v1400 = vpack.c.b16 %v1292, %v1286
        %v1401 = vpack.c.b16 %v1293, %v1287
        %v1402 = vpack.c.b16 %v1294, %v1288
        %v1403 = vpack.c.b16 %v1295, %v1289
        %v1404 = vpack.c.b16 %v1296, %v1290
        %v1405 = vpack.c.b16 %v1297, %v1291
        %v1406 = vpack.c.b16 %v1304, %v1298
        %v1407 = vpack.c.b16 %v1305, %v1299
        %v1408 = vpack.c.b16 %v1306, %v1300
        %v1409 = vpack.c.b16 %v1307, %v1301
        %v1410 = vpack.c.b16 %v1308, %v1302
        %v1411 = vpack.c.b16 %v1309, %v1303
        %v1412 = vpack.c.b16 %v1316, %v1310
        %v1413 = vpack.c.b16 %v1317, %v1311
        %v1414 = vpack.c.b16 %v1318, %v1312
        %v1415 = vpack.c.b16 %v1319, %v1313
        %v1416 = vpack.c.b16 %v1320, %v1314
        %v1417 = vpack.c.b16 %v1321, %v1315
        %1514 = vmatprep.subr.bf16.mxu0 %v1323
        %1515 = vmatpush1.bf16.msra.mxu0 %v1322
        %1516 = vmatprep.subr.bf16.mxu0 %v1329
        %1517 = vmatpush1.bf16.msra.mxu0 %v1328
        %1518 = vmatprep.subr.bf16.mxu0 %v1335
        %1519 = vmatpush1.bf16.msra.mxu0 %v1334
        %1520 = vmatprep.subr.bf16.mxu0 %v1341
        %1521 = vmatpush1.bf16.msra.mxu0 %v1340
        %1522 = vmatprep.subr.bf16.mxu0 %v1347
        %1523 = vmatpush1.bf16.msra.mxu0 %v1346
        %1524 = vmatprep.subr.bf16.mxu0 %v1353
        %1525 = vmatpush1.bf16.msra.mxu0 %v1352
        %1526 = vmatprep.subr.bf16.mxu0 %v1359
        %1527 = vmatpush1.bf16.msra.mxu0 %v1358
        %1528 = vmatprep.subr.bf16.mxu0 %v1365
        %1529 = vmatpush1.bf16.msra.mxu0 %v1364
        %1530 = vmatprep.subr.bf16.mxu0 %v1371
        %1531 = vmatpush1.bf16.msra.mxu0 %v1370
        %1532 = vmatprep.subr.bf16.mxu0 %v1377
        %1533 = vmatpush1.bf16.msra.mxu0 %v1376
        %1534 = vmatprep.subr.bf16.mxu0 %v1383
        %1535 = vmatpush1.bf16.msra.mxu0 %v1382
        %1536 = vmatprep.subr.bf16.mxu0 %v1389
        %1537 = vmatpush1.bf16.msra.mxu0 %v1388
        %1538 = vmatprep.subr.bf16.mxu0 %v1395
        %1539 = vmatpush1.bf16.msra.mxu0 %v1394
        %1540 = vmatprep.subr.bf16.mxu0 %v1401
        %1541 = vmatpush1.bf16.msra.mxu0 %v1400
        %1542 = vmatprep.subr.bf16.mxu0 %v1407
        %1543 = vmatpush1.bf16.msra.mxu0 %v1406
        %1544 = vmatprep.subr.bf16.mxu0 %v1413
        %1545 = vmatpush1.bf16.msra.mxu0 %v1412
        %1546 = vmatprep.mubr.bf16.mxu0 %v905
        %1547 = vmatmul.mubr.bf16.gmra.mrb[0].mxu0 %v904
        %v1548 = vpop.f32.mrb[0].mxu0
        %v1549 = vadd.f32 %v1007, %v1548
        %v1550 = vpop.f32.mrb[0].mxu0
        %v1551 = vadd.f32 %v1011, %v1550
        %v1552 = vpop.f32.mrb[0].mxu0
        %v1553 = vadd.f32 %v1007, %v1552
        %v1554 = vpop.f32.mrb[0].mxu0
        %v1555 = vadd.f32 %v1011, %v1554
        %1556 = vdwg.mxu0
        %1557 = vmatprep.subr.bf16.mxu0 %v1325
        %1558 = vmatpush1.bf16.msra.mxu0 %v1324
        %1559 = vmatprep.subr.bf16.mxu0 %v1331
        %1560 = vmatpush1.bf16.msra.mxu0 %v1330
        %1561 = vmatprep.subr.bf16.mxu0 %v1337
        %1562 = vmatpush1.bf16.msra.mxu0 %v1336
        %1563 = vmatprep.subr.bf16.mxu0 %v1343
        %1564 = vmatpush1.bf16.msra.mxu0 %v1342
        %1565 = vmatprep.subr.bf16.mxu0 %v1349
        %1566 = vmatpush1.bf16.msra.mxu0 %v1348
        %1567 = vmatprep.subr.bf16.mxu0 %v1355
        %1568 = vmatpush1.bf16.msra.mxu0 %v1354
        %1569 = vmatprep.subr.bf16.mxu0 %v1361
        %1570 = vmatpush1.bf16.msra.mxu0 %v1360
        %1571 = vmatprep.subr.bf16.mxu0 %v1367
        %1572 = vmatpush1.bf16.msra.mxu0 %v1366
        %1573 = vmatprep.subr.bf16.mxu0 %v1373
        %1574 = vmatpush1.bf16.msra.mxu0 %v1372
        %1575 = vmatprep.subr.bf16.mxu0 %v1379
        %1576 = vmatpush1.bf16.msra.mxu0 %v1378
        %1577 = vmatprep.subr.bf16.mxu0 %v1385
        %1578 = vmatpush1.bf16.msra.mxu0 %v1384
        %1579 = vmatprep.subr.bf16.mxu0 %v1391
        %1580 = vmatpush1.bf16.msra.mxu0 %v1390
        %1581 = vmatprep.subr.bf16.mxu0 %v1397
        %1582 = vmatpush1.bf16.msra.mxu0 %v1396
        %1583 = vmatprep.subr.bf16.mxu0 %v1403
        %1584 = vmatpush1.bf16.msra.mxu0 %v1402
        %1585 = vmatprep.subr.bf16.mxu0 %v1409
        %1586 = vmatpush1.bf16.msra.mxu0 %v1408
        %1587 = vmatprep.subr.bf16.mxu0 %v1415
        %1588 = vmatpush1.bf16.msra.mxu0 %v1414
        %1589 = vmatprep.mubr.bf16.mxu0 %v905
        %1590 = vmatmul.mubr.bf16.gmra.mrb[0].mxu0 %v904
        %v1591 = vpop.f32.mrb[0].mxu0
        %v1592 = vadd.f32 %v1015, %v1591
        %v1593 = vpop.f32.mrb[0].mxu0
        %v1594 = vadd.f32 %v1019, %v1593
        %v1595 = vpop.f32.mrb[0].mxu0
        %v1596 = vadd.f32 %v1015, %v1595
        %v1597 = vpop.f32.mrb[0].mxu0
        %v1598 = vadd.f32 %v1019, %v1597
        %1599 = vdwg.mxu0
        %1600 = vmatprep.subr.bf16.mxu0 %v1327
        %1601 = vmatpush1.bf16.msra.mxu0 %v1326
        %1602 = vmatprep.subr.bf16.mxu0 %v1333
        %1603 = vmatpush1.bf16.msra.mxu0 %v1332
        %1604 = vmatprep.subr.bf16.mxu0 %v1339
        %1605 = vmatpush1.bf16.msra.mxu0 %v1338
        %1606 = vmatprep.subr.bf16.mxu0 %v1345
        %1607 = vmatpush1.bf16.msra.mxu0 %v1344
        %1608 = vmatprep.subr.bf16.mxu0 %v1351
        %1609 = vmatpush1.bf16.msra.mxu0 %v1350
        %1610 = vmatprep.subr.bf16.mxu0 %v1357
        %1611 = vmatpush1.bf16.msra.mxu0 %v1356
        %1612 = vmatprep.subr.bf16.mxu0 %v1363
        %1613 = vmatpush1.bf16.msra.mxu0 %v1362
        %1614 = vmatprep.subr.bf16.mxu0 %v1369
        %1615 = vmatpush1.bf16.msra.mxu0 %v1368
        %1616 = vmatprep.subr.bf16.mxu0 %v1375
        %1617 = vmatpush1.bf16.msra.mxu0 %v1374
        %1618 = vmatprep.subr.bf16.mxu0 %v1381
        %1619 = vmatpush1.bf16.msra.mxu0 %v1380
        %1620 = vmatprep.subr.bf16.mxu0 %v1387
        %1621 = vmatpush1.bf16.msra.mxu0 %v1386
        %1622 = vmatprep.subr.bf16.mxu0 %v1393
        %1623 = vmatpush1.bf16.msra.mxu0 %v1392
        %1624 = vmatprep.subr.bf16.mxu0 %v1399
        %1625 = vmatpush1.bf16.msra.mxu0 %v1398
        %1626 = vmatprep.subr.bf16.mxu0 %v1405
        %1627 = vmatpush1.bf16.msra.mxu0 %v1404
        %1628 = vmatprep.subr.bf16.mxu0 %v1411
        %1629 = vmatpush1.bf16.msra.mxu0 %v1410
        %1630 = vmatprep.subr.bf16.mxu0 %v1417
        %1631 = vmatpush1.bf16.msra.mxu0 %v1416
        %1632 = vmatprep.mubr.bf16.mxu0 %v905
        %1633 = vmatmul.mubr.bf16.gmra.mrb[0].mxu0 %v904
        %v1634 = vpop.f32.mrb[0].mxu0
        %v1635 = vadd.f32 %v1023, %v1634
        %v1636 = vpop.f32.mrb[0].mxu0
        %v1637 = vadd.f32 %v1027, %v1636
        %v1638 = vpop.f32.mrb[0].mxu0
        %v1639 = vadd.f32 %v1023, %v1638
        %v1640 = vpop.f32.mrb[0].mxu0
        %v1641 = vadd.f32 %v1027, %v1640
        %1642 = vdwg.mxu0
        %v1643 = vpack.c.bf16 %v1553, %v1549
        %v1644 = vpack.c.bf16 %v1555, %v1551
        %v1645 = vpack.c.bf16 %v1596, %v1592
        %v1646 = vpack.c.bf16 %v1598, %v1594
        %v1647 = vpack.c.bf16 %v1639, %v1635
        %v1648 = vpack.c.bf16 %v1641, %v1637
        %v1650 = vunpack.c.l.b16 %v1643
        %v1651 = vunpack.c.h.b16 %v1643
        %v1652 = vpack.c.b16 %v1650, %v1650
        %v1653 = vpack.c.b16 %v1651, %v1651
        %v1657 = vunpack.c.l.b16 %v1645
        %v1658 = vunpack.c.h.b16 %v1645
        %v1659 = vpack.c.b16 %v1657, %v1657
        %v1660 = vpack.c.b16 %v1658, %v1658
        %v1664 = vunpack.c.l.b16 %v1647
        %v1665 = vunpack.c.h.b16 %v1647
        %v1666 = vpack.c.b16 %v1664, %v1664
        %v1667 = vpack.c.b16 %v1665, %v1665
        %1668 = vmatprep.subr.bf16.mxu0 0
        %1669 = vmatpush1.bf16.xpose.msra.mxu0 %v1659
        %1670 = vmatprep.subr.bf16.mxu0 0
        %1671 = vmatpush1.bf16.xpose.msra.mxu0 0
        %1672 = vmatprep.subr.bf16.mxu0 0
        %1673 = vmatpush1.bf16.xpose.msra.mxu0 0
        %1674 = vmatprep.subr.bf16.mxu0 0
        %1675 = vmatpush1.bf16.xpose.msra.mxu0 0
        %1676 = vmatprep.subr.bf16.mxu0 0
        %1677 = vmatpush1.bf16.xpose.msra.mxu0 0
        %1678 = vmatprep.subr.bf16.mxu0 0
        %1679 = vmatpush1.bf16.xpose.msra.mxu0 0
        %1680 = vmatprep.subr.bf16.mxu0 0
        %1681 = vmatpush1.bf16.xpose.msra.mxu0 0
        %1682 = vmatprep.subr.bf16.mxu0 0
        %1683 = vmatpush1.bf16.xpose.msra.mxu0 0
        %1684 = vmatprep.subr.bf16.mxu0 0
        %1685 = vmatpush1.bf16.xpose.msra.mxu0 0
        %1686 = vmatprep.subr.bf16.mxu0 0
        %1687 = vmatpush1.bf16.xpose.msra.mxu0 0
        %1688 = vmatprep.subr.bf16.mxu0 0
        %1689 = vmatpush1.bf16.xpose.msra.mxu0 0
        %1690 = vmatprep.subr.bf16.mxu0 0
        %1691 = vmatpush1.bf16.xpose.msra.mxu0 0
        %1692 = vmatprep.subr.bf16.mxu0 0
        %1693 = vmatpush1.bf16.xpose.msra.mxu0 0
        %1694 = vmatprep.subr.bf16.mxu0 0
        %1695 = vmatpush1.bf16.xpose.msra.mxu0 0
        %1696 = vmatprep.subr.bf16.mxu0 0
        %1697 = vmatpush1.bf16.xpose.msra.mxu0 0
        %1698 = vmatprep.subr.bf16.mxu0 0
        %1699 = vmatpush1.bf16.xpose.msra.mxu0 0
        %1700 = vmatprep.mubr.bf16.mxu0 0
        %1701 = vmatmul.mubr.bf16.gmra.mrb[0].mxu0 %v1652
        %v1702 = vpop.f32.mrb[0].mxu0
        %v1703 = vadd.f32 %v838, %v1702
        %v1704 = vpop.f32.mrb[0].mxu0
        %v1705 = vpop.f32.mrb[0].mxu0
        %v1706 = vpop.f32.mrb[0].mxu0
        %1707 = vdwg.mxu0
        %1708 = vmatprep.subr.bf16.mxu0 0
        %1709 = vmatpush1.bf16.xpose.msra.mxu0 %v1660
        %1710 = vmatprep.subr.bf16.mxu0 0
        %1711 = vmatpush1.bf16.xpose.msra.mxu0 0
        %1712 = vmatprep.subr.bf16.mxu0 0
        %1713 = vmatpush1.bf16.xpose.msra.mxu0 0
        %1714 = vmatprep.subr.bf16.mxu0 0
        %1715 = vmatpush1.bf16.xpose.msra.mxu0 0
        %1716 = vmatprep.subr.bf16.mxu0 0
        %1717 = vmatpush1.bf16.xpose.msra.mxu0 0
        %1718 = vmatprep.subr.bf16.mxu0 0
        %1719 = vmatpush1.bf16.xpose.msra.mxu0 0
        %1720 = vmatprep.subr.bf16.mxu0 0
        %1721 = vmatpush1.bf16.xpose.msra.mxu0 0
        %1722 = vmatprep.subr.bf16.mxu0 0
        %1723 = vmatpush1.bf16.xpose.msra.mxu0 0
        %1724 = vmatprep.subr.bf16.mxu0 0
        %1725 = vmatpush1.bf16.xpose.msra.mxu0 0
        %1726 = vmatprep.subr.bf16.mxu0 0
        %1727 = vmatpush1.bf16.xpose.msra.mxu0 0
        %1728 = vmatprep.subr.bf16.mxu0 0
        %1729 = vmatpush1.bf16.xpose.msra.mxu0 0
        %1730 = vmatprep.subr.bf16.mxu0 0
        %1731 = vmatpush1.bf16.xpose.msra.mxu0 0
        %1732 = vmatprep.subr.bf16.mxu0 0
        %1733 = vmatpush1.bf16.xpose.msra.mxu0 0
        %1734 = vmatprep.subr.bf16.mxu0 0
        %1735 = vmatpush1.bf16.xpose.msra.mxu0 0
        %1736 = vmatprep.subr.bf16.mxu0 0
        %1737 = vmatpush1.bf16.xpose.msra.mxu0 0
        %1738 = vmatprep.subr.bf16.mxu0 0
        %1739 = vmatpush1.bf16.xpose.msra.mxu0 0
        %1740 = vmatprep.mubr.bf16.mxu0 0
        %1741 = vmatmul.mubr.bf16.gmra.mrb[0].mxu0 %v1653
        %v1742 = vpop.f32.mrb[0].mxu0
        %v1743 = vadd.f32 %v838, %v1742
        %v1744 = vpop.f32.mrb[0].mxu0
        %v1745 = vpop.f32.mrb[0].mxu0
        %v1746 = vpop.f32.mrb[0].mxu0
        %1747 = vdwg.mxu0
        %vm1748 = vcmask 64512
        %v1749 = vsel %vm1748, %v1703, -inf
        %1750 = vmax.xlane.f32.xlu0 %v1749
        %v1751 = vpop.xlane.xlu0 %1750
        %v1752 = vsel %vm1748, %v1743, -inf
        %1753 = vmax.xlane.f32.xlu0 %v1752
        %v1754 = vpop.xlane.xlu0 %1753
        %v1755 = vsub.f32 %v1703, %v1751
        %v1756 = vsub.f32 %v1743, %v1754
        %v1757 = vmul.f32 %v1755, 1.442695
        %v1758 = vpow.pop %v1757
        %v1759 = vmul.f32 %v1756, 1.442695
        %v1760 = vpow.pop %v1759
        %v1761 = vsel %vm1748, %v1758, 0.0
        %1762 = vadd.xlane.f32.xlu0 %v1761
        %v1763 = vpop.xlane.xlu0 %1762
        %v1764 = vsel %vm1748, %v1760, 0.0
        %1765 = vadd.xlane.f32.xlu0 %v1764
        %v1766 = vpop.xlane.xlu0 %1765
        %v1767 = vrcp.pop %v1763
        %v1768 = vrcp.pop %v1766
        %v1769 = vmul.f32 %v1758, %v1767
        %v1770 = vmul.f32 %v1760, %v1768
        %v1771 = vpack.c.bf16 %v1769, %v1769
        %v1772 = vpack.c.bf16 %v1770, %v1770
        %v1774 = vsel %vm1748, %v1771, 0
        %vm1776 = vcmask 1043456
        %v1778 = vsel %vm1776, %v1666, 0
        %1780 = vmatprep.subr.bf16.mxu0 0
        %1781 = vmatpush1.bf16.msra.mxu0 %v1778
        %1782 = vmatprep.subr.bf16.mxu0 0
        %1783 = vmatpush1.bf16.msra.mxu0 0
        %1784 = vmatprep.subr.bf16.mxu0 0
        %1785 = vmatpush1.bf16.msra.mxu0 0
        %1786 = vmatprep.subr.bf16.mxu0 0
        %1787 = vmatpush1.bf16.msra.mxu0 0
        %1788 = vmatprep.subr.bf16.mxu0 0
        %1789 = vmatpush1.bf16.msra.mxu0 0
        %1790 = vmatprep.subr.bf16.mxu0 0
        %1791 = vmatpush1.bf16.msra.mxu0 0
        %1792 = vmatprep.subr.bf16.mxu0 0
        %1793 = vmatpush1.bf16.msra.mxu0 0
        %1794 = vmatprep.subr.bf16.mxu0 0
        %1795 = vmatpush1.bf16.msra.mxu0 0
        %1796 = vmatprep.subr.bf16.mxu0 0
        %1797 = vmatpush1.bf16.msra.mxu0 0
        %1798 = vmatprep.subr.bf16.mxu0 0
        %1799 = vmatpush1.bf16.msra.mxu0 0
        %1800 = vmatprep.subr.bf16.mxu0 0
        %1801 = vmatpush1.bf16.msra.mxu0 0
        %1802 = vmatprep.subr.bf16.mxu0 0
        %1803 = vmatpush1.bf16.msra.mxu0 0
        %1804 = vmatprep.subr.bf16.mxu0 0
        %1805 = vmatpush1.bf16.msra.mxu0 0
        %1806 = vmatprep.subr.bf16.mxu0 0
        %1807 = vmatpush1.bf16.msra.mxu0 0
        %1808 = vmatprep.subr.bf16.mxu0 0
        %1809 = vmatpush1.bf16.msra.mxu0 0
        %1810 = vmatprep.subr.bf16.mxu0 0
        %1811 = vmatpush1.bf16.msra.mxu0 0
        %1812 = vmatprep.mubr.bf16.mxu0 0
        %1813 = vmatmul.mubr.bf16.gmra.mrb[0].mxu0 %v1774
        %v1814 = vpop.f32.mrb[0].mxu0
        %v1815 = vadd.f32 0.0, %v1814
        %v1816 = vpop.f32.mrb[0].mxu0
        %v1817 = vpop.f32.mrb[0].mxu0
        %v1818 = vpop.f32.mrb[0].mxu0
        %1819 = vdwg.mxu0
        %v1821 = vsel %vm1748, %v1772, 0
        %v1824 = vsel %vm1776, %v1667, 0
        %1826 = vmatprep.subr.bf16.mxu0 0
        %1827 = vmatpush1.bf16.msra.mxu0 %v1824
        %1828 = vmatprep.subr.bf16.mxu0 0
        %1829 = vmatpush1.bf16.msra.mxu0 0
        %1830 = vmatprep.subr.bf16.mxu0 0
        %1831 = vmatpush1.bf16.msra.mxu0 0
        %1832 = vmatprep.subr.bf16.mxu0 0
        %1833 = vmatpush1.bf16.msra.mxu0 0
        %1834 = vmatprep.subr.bf16.mxu0 0
        %1835 = vmatpush1.bf16.msra.mxu0 0
        %1836 = vmatprep.subr.bf16.mxu0 0
        %1837 = vmatpush1.bf16.msra.mxu0 0
        %1838 = vmatprep.subr.bf16.mxu0 0
        %1839 = vmatpush1.bf16.msra.mxu0 0
        %1840 = vmatprep.subr.bf16.mxu0 0
        %1841 = vmatpush1.bf16.msra.mxu0 0
        %1842 = vmatprep.subr.bf16.mxu0 0
        %1843 = vmatpush1.bf16.msra.mxu0 0
        %1844 = vmatprep.subr.bf16.mxu0 0
        %1845 = vmatpush1.bf16.msra.mxu0 0
        %1846 = vmatprep.subr.bf16.mxu0 0
        %1847 = vmatpush1.bf16.msra.mxu0 0
        %1848 = vmatprep.subr.bf16.mxu0 0
        %1849 = vmatpush1.bf16.msra.mxu0 0
        %1850 = vmatprep.subr.bf16.mxu0 0
        %1851 = vmatpush1.bf16.msra.mxu0 0
        %1852 = vmatprep.subr.bf16.mxu0 0
        %1853 = vmatpush1.bf16.msra.mxu0 0
        %1854 = vmatprep.subr.bf16.mxu0 0
        %1855 = vmatpush1.bf16.msra.mxu0 0
        %1856 = vmatprep.subr.bf16.mxu0 0
        %1857 = vmatpush1.bf16.msra.mxu0 0
        %1858 = vmatprep.mubr.bf16.mxu0 0
        %1859 = vmatmul.mubr.bf16.gmra.mrb[0].mxu0 %v1821
        %v1860 = vpop.f32.mrb[0].mxu0
        %v1861 = vadd.f32 0.0, %v1860
        %v1862 = vpop.f32.mrb[0].mxu0
        %v1863 = vpop.f32.mrb[0].mxu0
        %v1864 = vpop.f32.mrb[0].mxu0
        %1865 = vdwg.mxu0
        %v1866 = vpack.c.bf16 %v1861, %v1815
        %1867 = vst [vmem:[#allocation2] sm:$0xff] %v1866
        %v1869 = vunpack.c.l.b16 %v1644
        %v1870 = vunpack.c.h.b16 %v1644
        %v1871 = vpack.c.b16 %v1869, %v1869
        %v1872 = vpack.c.b16 %v1870, %v1870
        %v1876 = vunpack.c.l.b16 %v1646
        %v1877 = vunpack.c.h.b16 %v1646
        %v1878 = vpack.c.b16 %v1876, %v1876
        %v1879 = vpack.c.b16 %v1877, %v1877
        %v1883 = vunpack.c.l.b16 %v1648
        %v1884 = vunpack.c.h.b16 %v1648
        %v1885 = vpack.c.b16 %v1883, %v1883
        %v1886 = vpack.c.b16 %v1884, %v1884
        %1887 = vmatprep.subr.bf16.mxu0 0
        %1888 = vmatpush1.bf16.xpose.msra.mxu0 %v1878
        %1889 = vmatprep.subr.bf16.mxu0 0
        %1890 = vmatpush1.bf16.xpose.msra.mxu0 0
        %1891 = vmatprep.subr.bf16.mxu0 0
        %1892 = vmatpush1.bf16.xpose.msra.mxu0 0
        %1893 = vmatprep.subr.bf16.mxu0 0
        %1894 = vmatpush1.bf16.xpose.msra.mxu0 0
        %1895 = vmatprep.subr.bf16.mxu0 0
        %1896 = vmatpush1.bf16.xpose.msra.mxu0 0
        %1897 = vmatprep.subr.bf16.mxu0 0
        %1898 = vmatpush1.bf16.xpose.msra.mxu0 0
        %1899 = vmatprep.subr.bf16.mxu0 0
        %1900 = vmatpush1.bf16.xpose.msra.mxu0 0
        %1901 = vmatprep.subr.bf16.mxu0 0
        %1902 = vmatpush1.bf16.xpose.msra.mxu0 0
        %1903 = vmatprep.subr.bf16.mxu0 0
        %1904 = vmatpush1.bf16.xpose.msra.mxu0 0
        %1905 = vmatprep.subr.bf16.mxu0 0
        %1906 = vmatpush1.bf16.xpose.msra.mxu0 0
        %1907 = vmatprep.subr.bf16.mxu0 0
        %1908 = vmatpush1.bf16.xpose.msra.mxu0 0
        %1909 = vmatprep.subr.bf16.mxu0 0
        %1910 = vmatpush1.bf16.xpose.msra.mxu0 0
        %1911 = vmatprep.subr.bf16.mxu0 0
        %1912 = vmatpush1.bf16.xpose.msra.mxu0 0
        %1913 = vmatprep.subr.bf16.mxu0 0
        %1914 = vmatpush1.bf16.xpose.msra.mxu0 0
        %1915 = vmatprep.subr.bf16.mxu0 0
        %1916 = vmatpush1.bf16.xpose.msra.mxu0 0
        %1917 = vmatprep.subr.bf16.mxu0 0
        %1918 = vmatpush1.bf16.xpose.msra.mxu0 0
        %1919 = vmatprep.mubr.bf16.mxu0 0
        %1920 = vmatmul.mubr.bf16.gmra.mrb[0].mxu0 %v1871
        %v1921 = vpop.f32.mrb[0].mxu0
        %v1922 = vadd.f32 %v838, %v1921
        %v1923 = vpop.f32.mrb[0].mxu0
        %v1924 = vpop.f32.mrb[0].mxu0
        %v1925 = vpop.f32.mrb[0].mxu0
        %1926 = vdwg.mxu0
        %1927 = vmatprep.subr.bf16.mxu0 0
        %1928 = vmatpush1.bf16.xpose.msra.mxu0 %v1879
        %1929 = vmatprep.subr.bf16.mxu0 0
        %1930 = vmatpush1.bf16.xpose.msra.mxu0 0
        %1931 = vmatprep.subr.bf16.mxu0 0
        %1932 = vmatpush1.bf16.xpose.msra.mxu0 0
        %1933 = vmatprep.subr.bf16.mxu0 0
        %1934 = vmatpush1.bf16.xpose.msra.mxu0 0
        %1935 = vmatprep.subr.bf16.mxu0 0
        %1936 = vmatpush1.bf16.xpose.msra.mxu0 0
        %1937 = vmatprep.subr.bf16.mxu0 0
        %1938 = vmatpush1.bf16.xpose.msra.mxu0 0
        %1939 = vmatprep.subr.bf16.mxu0 0
        %1940 = vmatpush1.bf16.xpose.msra.mxu0 0
        %1941 = vmatprep.subr.bf16.mxu0 0
        %1942 = vmatpush1.bf16.xpose.msra.mxu0 0
        %1943 = vmatprep.subr.bf16.mxu0 0
        %1944 = vmatpush1.bf16.xpose.msra.mxu0 0
        %1945 = vmatprep.subr.bf16.mxu0 0
        %1946 = vmatpush1.bf16.xpose.msra.mxu0 0
        %1947 = vmatprep.subr.bf16.mxu0 0
        %1948 = vmatpush1.bf16.xpose.msra.mxu0 0
        %1949 = vmatprep.subr.bf16.mxu0 0
        %1950 = vmatpush1.bf16.xpose.msra.mxu0 0
        %1951 = vmatprep.subr.bf16.mxu0 0
        %1952 = vmatpush1.bf16.xpose.msra.mxu0 0
        %1953 = vmatprep.subr.bf16.mxu0 0
        %1954 = vmatpush1.bf16.xpose.msra.mxu0 0
        %1955 = vmatprep.subr.bf16.mxu0 0
        %1956 = vmatpush1.bf16.xpose.msra.mxu0 0
        %1957 = vmatprep.subr.bf16.mxu0 0
        %1958 = vmatpush1.bf16.xpose.msra.mxu0 0
        %1959 = vmatprep.mubr.bf16.mxu0 0
        %1960 = vmatmul.mubr.bf16.gmra.mrb[0].mxu0 %v1872
        %v1961 = vpop.f32.mrb[0].mxu0
        %v1962 = vadd.f32 %v838, %v1961
        %v1963 = vpop.f32.mrb[0].mxu0
        %v1964 = vpop.f32.mrb[0].mxu0
        %v1965 = vpop.f32.mrb[0].mxu0
        %1966 = vdwg.mxu0
        %v1967 = vsel %vm1748, %v1922, -inf
        %1968 = vmax.xlane.f32.xlu0 %v1967
        %v1969 = vpop.xlane.xlu0 %1968
        %v1970 = vsel %vm1748, %v1962, -inf
        %1971 = vmax.xlane.f32.xlu0 %v1970
        %v1972 = vpop.xlane.xlu0 %1971
        %v1973 = vsub.f32 %v1922, %v1969
        %v1974 = vsub.f32 %v1962, %v1972
        %v1975 = vmul.f32 %v1973, 1.442695
        %v1976 = vpow.pop %v1975
        %v1977 = vmul.f32 %v1974, 1.442695
        %v1978 = vpow.pop %v1977
        %v1979 = vsel %vm1748, %v1976, 0.0
        %1980 = vadd.xlane.f32.xlu0 %v1979
        %v1981 = vpop.xlane.xlu0 %1980
        %v1982 = vsel %vm1748, %v1978, 0.0
        %1983 = vadd.xlane.f32.xlu0 %v1982
        %v1984 = vpop.xlane.xlu0 %1983
        %v1985 = vrcp.pop %v1981
        %v1986 = vrcp.pop %v1984
        %v1987 = vmul.f32 %v1976, %v1985
        %v1988 = vmul.f32 %v1978, %v1986
        %v1989 = vpack.c.bf16 %v1987, %v1987
        %v1990 = vpack.c.bf16 %v1988, %v1988
        %v1992 = vsel %vm1748, %v1989, 0
        %v1995 = vsel %vm1776, %v1885, 0
        %1997 = vmatprep.subr.bf16.mxu0 0
        %1998 = vmatpush1.bf16.msra.mxu0 %v1995
        %1999 = vmatprep.subr.bf16.mxu0 0
        %2000 = vmatpush1.bf16.msra.mxu0 0
        %2001 = vmatprep.subr.bf16.mxu0 0
        %2002 = vmatpush1.bf16.msra.mxu0 0
        %2003 = vmatprep.subr.bf16.mxu0 0
        %2004 = vmatpush1.bf16.msra.mxu0 0
        %2005 = vmatprep.subr.bf16.mxu0 0
        %2006 = vmatpush1.bf16.msra.mxu0 0
        %2007 = vmatprep.subr.bf16.mxu0 0
        %2008 = vmatpush1.bf16.msra.mxu0 0
        %2009 = vmatprep.subr.bf16.mxu0 0
        %2010 = vmatpush1.bf16.msra.mxu0 0
        %2011 = vmatprep.subr.bf16.mxu0 0
        %2012 = vmatpush1.bf16.msra.mxu0 0
        %2013 = vmatprep.subr.bf16.mxu0 0
        %2014 = vmatpush1.bf16.msra.mxu0 0
        %2015 = vmatprep.subr.bf16.mxu0 0
        %2016 = vmatpush1.bf16.msra.mxu0 0
        %2017 = vmatprep.subr.bf16.mxu0 0
        %2018 = vmatpush1.bf16.msra.mxu0 0
        %2019 = vmatprep.subr.bf16.mxu0 0
        %2020 = vmatpush1.bf16.msra.mxu0 0
        %2021 = vmatprep.subr.bf16.mxu0 0
        %2022 = vmatpush1.bf16.msra.mxu0 0
        %2023 = vmatprep.subr.bf16.mxu0 0
        %2024 = vmatpush1.bf16.msra.mxu0 0
        %2025 = vmatprep.subr.bf16.mxu0 0
        %2026 = vmatpush1.bf16.msra.mxu0 0
        %2027 = vmatprep.subr.bf16.mxu0 0
        %2028 = vmatpush1.bf16.msra.mxu0 0
        %2029 = vmatprep.mubr.bf16.mxu0 0
        %2030 = vmatmul.mubr.bf16.gmra.mrb[0].mxu0 %v1992
        %v2031 = vpop.f32.mrb[0].mxu0
        %v2032 = vadd.f32 0.0, %v2031
        %v2033 = vpop.f32.mrb[0].mxu0
        %v2034 = vpop.f32.mrb[0].mxu0
        %v2035 = vpop.f32.mrb[0].mxu0
        %2036 = vdwg.mxu0
        %v2038 = vsel %vm1748, %v1990, 0
        %v2041 = vsel %vm1776, %v1886, 0
        %2043 = vmatprep.subr.bf16.mxu0 0
        %2044 = vmatpush1.bf16.msra.mxu0 %v2041
        %2045 = vmatprep.subr.bf16.mxu0 0
        %2046 = vmatpush1.bf16.msra.mxu0 0
        %2047 = vmatprep.subr.bf16.mxu0 0
        %2048 = vmatpush1.bf16.msra.mxu0 0
        %2049 = vmatprep.subr.bf16.mxu0 0
        %2050 = vmatpush1.bf16.msra.mxu0 0
        %2051 = vmatprep.subr.bf16.mxu0 0
        %2052 = vmatpush1.bf16.msra.mxu0 0
        %2053 = vmatprep.subr.bf16.mxu0 0
        %2054 = vmatpush1.bf16.msra.mxu0 0
        %2055 = vmatprep.subr.bf16.mxu0 0
        %2056 = vmatpush1.bf16.msra.mxu0 0
        %2057 = vmatprep.subr.bf16.mxu0 0
        %2058 = vmatpush1.bf16.msra.mxu0 0
        %2059 = vmatprep.subr.bf16.mxu0 0
        %2060 = vmatpush1.bf16.msra.mxu0 0
        %2061 = vmatprep.subr.bf16.mxu0 0
        %2062 = vmatpush1.bf16.msra.mxu0 0
        %2063 = vmatprep.subr.bf16.mxu0 0
        %2064 = vmatpush1.bf16.msra.mxu0 0
        %2065 = vmatprep.subr.bf16.mxu0 0
        %2066 = vmatpush1.bf16.msra.mxu0 0
        %2067 = vmatprep.subr.bf16.mxu0 0
        %2068 = vmatpush1.bf16.msra.mxu0 0
        %2069 = vmatprep.subr.bf16.mxu0 0
        %2070 = vmatpush1.bf16.msra.mxu0 0
        %2071 = vmatprep.subr.bf16.mxu0 0
        %2072 = vmatpush1.bf16.msra.mxu0 0
        %2073 = vmatprep.subr.bf16.mxu0 0
        %2074 = vmatpush1.bf16.msra.mxu0 0
        %2075 = vmatprep.mubr.bf16.mxu0 0
        %2076 = vmatmul.mubr.bf16.gmra.mrb[0].mxu0 %v2038
        %v2077 = vpop.f32.mrb[0].mxu0
        %v2078 = vadd.f32 0.0, %v2077
        %v2079 = vpop.f32.mrb[0].mxu0
        %v2080 = vpop.f32.mrb[0].mxu0
        %v2081 = vpop.f32.mrb[0].mxu0
        %2082 = vdwg.mxu0
        %v2083 = vpack.c.bf16 %v2078, %v2032
        %2084 = vst [vmem:[#allocation2 + $0x8] sm:$0xff] %v2083
        %v2085 = vld [vmem:[#allocation2] sm:$0xff]
        %v2086 = vld [vmem:[#allocation2 + $0x8] sm:$0xff]
        %v2087 = vld [vmem:[%s678] sm:$0xff]
        %v2088 = vld [vmem:[%s678 + $0x8] sm:$0xff]
        %v2089 = vld [vmem:[%s678 + $0x10] sm:$0xff]
        %v2090 = vld [vmem:[%s678 + $0x18] sm:$0xff]
        %v2091 = vld [vmem:[%s678 + $0x20] sm:$0xff]
        %v2092 = vld [vmem:[%s678 + $0x28] sm:$0xff]
        %v2093 = vld [vmem:[%s678 + $0x30] sm:$0xff]
        %v2094 = vld [vmem:[%s678 + $0x38] sm:$0xff]
        %v2095 = vld [vmem:[%s678 + $0x40] sm:$0xff]
        %v2096 = vld [vmem:[%s678 + $0x48] sm:$0xff]
        %v2097 = vld [vmem:[%s678 + $0x50] sm:$0xff]
        %v2098 = vld [vmem:[%s678 + $0x58] sm:$0xff]
        %v2099 = vld [vmem:[%s678 + $0x60] sm:$0xff]
        %v2100 = vld [vmem:[%s678 + $0x68] sm:$0xff]
        %v2101 = vld [vmem:[%s678 + $0x70] sm:$0xff]
        %v2102 = vld [vmem:[%s678 + $0x78] sm:$0xff]
        %v2103 = vld [vmem:[%s678 + $0x80] sm:$0xff]
        %v2104 = vld [vmem:[%s678 + $0x88] sm:$0xff]
        %v2105 = vld [vmem:[%s678 + $0x90] sm:$0xff]
        %v2106 = vld [vmem:[%s678 + $0x98] sm:$0xff]
        %v2107 = vld [vmem:[%s678 + $0xa0] sm:$0xff]
        %v2108 = vld [vmem:[%s678 + $0xa8] sm:$0xff]
        %v2109 = vld [vmem:[%s678 + $0xb0] sm:$0xff]
        %v2110 = vld [vmem:[%s678 + $0xb8] sm:$0xff]
        %v2111 = vld [vmem:[%s678 + $0xc0] sm:$0xff]
        %v2112 = vld [vmem:[%s678 + $0xc8] sm:$0xff]
        %v2113 = vld [vmem:[%s678 + $0xd0] sm:$0xff]
        %v2114 = vld [vmem:[%s678 + $0xd8] sm:$0xff]
        %v2115 = vld [vmem:[%s678 + $0xe0] sm:$0xff]
        %v2116 = vld [vmem:[%s678 + $0xe8] sm:$0xff]
        %v2117 = vld [vmem:[%s678 + $0xf0] sm:$0xff]
        %v2118 = vld [vmem:[%s678 + $0xf8] sm:$0xff]
        %v2119 = vld [vmem:[%s803] sm:$0x3]
        %v2121 = vlaneseq
        %v2122 = vshrl.u32 %v2121, 7
        %v2123 = vsub.s32 0, %v2122
        %v2124 = vrot.slane %v2119, %v2123
        %v2125 = vlaneseq
        %v2126 = vshrl.u32 %v2125, 7
        %v2127 = vsub.s32 1, %v2126
        %v2128 = vrot.slane %v2119, %v2127
        %v2163 = vunpack.c.l.b16 %v2087
        %v2164 = vunpack.c.h.b16 %v2087
        %v2165 = vunpack.c.l.b16 %v2088
        %v2166 = vunpack.c.h.b16 %v2088
        %v2167 = vunpack.c.l.b16 %v2089
        %v2168 = vunpack.c.h.b16 %v2089
        %v2169 = vunpack.c.l.b16 %v2090
        %v2170 = vunpack.c.h.b16 %v2090
        %v2171 = vunpack.c.l.b16 %v2091
        %v2172 = vunpack.c.h.b16 %v2091
        %v2173 = vunpack.c.l.b16 %v2092
        %v2174 = vunpack.c.h.b16 %v2092
        %v2175 = vunpack.c.l.b16 %v2093
        %v2176 = vunpack.c.h.b16 %v2093
        %v2177 = vunpack.c.l.b16 %v2094
        %v2178 = vunpack.c.h.b16 %v2094
        %v2179 = vunpack.c.l.b16 %v2095
        %v2180 = vunpack.c.h.b16 %v2095
        %v2181 = vunpack.c.l.b16 %v2096
        %v2182 = vunpack.c.h.b16 %v2096
        %v2183 = vunpack.c.l.b16 %v2097
        %v2184 = vunpack.c.h.b16 %v2097
        %v2185 = vunpack.c.l.b16 %v2098
        %v2186 = vunpack.c.h.b16 %v2098
        %v2187 = vunpack.c.l.b16 %v2099
        %v2188 = vunpack.c.h.b16 %v2099
        %v2189 = vunpack.c.l.b16 %v2100
        %v2190 = vunpack.c.h.b16 %v2100
        %v2191 = vunpack.c.l.b16 %v2101
        %v2192 = vunpack.c.h.b16 %v2101
        %v2193 = vunpack.c.l.b16 %v2102
        %v2194 = vunpack.c.h.b16 %v2102
        %v2195 = vunpack.c.l.b16 %v2103
        %v2196 = vunpack.c.h.b16 %v2103
        %v2197 = vunpack.c.l.b16 %v2104
        %v2198 = vunpack.c.h.b16 %v2104
        %v2199 = vunpack.c.l.b16 %v2105
        %v2200 = vunpack.c.h.b16 %v2105
        %v2201 = vunpack.c.l.b16 %v2106
        %v2202 = vunpack.c.h.b16 %v2106
        %v2203 = vunpack.c.l.b16 %v2107
        %v2204 = vunpack.c.h.b16 %v2107
        %v2205 = vunpack.c.l.b16 %v2108
        %v2206 = vunpack.c.h.b16 %v2108
        %v2207 = vunpack.c.l.b16 %v2109
        %v2208 = vunpack.c.h.b16 %v2109
        %v2209 = vunpack.c.l.b16 %v2110
        %v2210 = vunpack.c.h.b16 %v2110
        %v2211 = vunpack.c.l.b16 %v2111
        %v2212 = vunpack.c.h.b16 %v2111
        %v2213 = vunpack.c.l.b16 %v2112
        %v2214 = vunpack.c.h.b16 %v2112
        %v2215 = vunpack.c.l.b16 %v2113
        %v2216 = vunpack.c.h.b16 %v2113
        %v2217 = vunpack.c.l.b16 %v2114
        %v2218 = vunpack.c.h.b16 %v2114
        %v2219 = vunpack.c.l.b16 %v2115
        %v2220 = vunpack.c.h.b16 %v2115
        %v2221 = vunpack.c.l.b16 %v2116
        %v2222 = vunpack.c.h.b16 %v2116
        %v2223 = vunpack.c.l.b16 %v2117
        %v2224 = vunpack.c.h.b16 %v2117
        %v2225 = vunpack.c.l.b16 %v2118
        %v2226 = vunpack.c.h.b16 %v2118
        %v2227 = vpack.c.b16 %v2165, %v2163
        %v2228 = vpack.c.b16 %v2166, %v2164
        %v2229 = vpack.c.b16 %v2169, %v2167
        %v2230 = vpack.c.b16 %v2170, %v2168
        %v2231 = vpack.c.b16 %v2173, %v2171
        %v2232 = vpack.c.b16 %v2174, %v2172
        %v2233 = vpack.c.b16 %v2177, %v2175
        %v2234 = vpack.c.b16 %v2178, %v2176
        %v2235 = vpack.c.b16 %v2181, %v2179
        %v2236 = vpack.c.b16 %v2182, %v2180
        %v2237 = vpack.c.b16 %v2185, %v2183
        %v2238 = vpack.c.b16 %v2186, %v2184
        %v2239 = vpack.c.b16 %v2189, %v2187
        %v2240 = vpack.c.b16 %v2190, %v2188
        %v2241 = vpack.c.b16 %v2193, %v2191
        %v2242 = vpack.c.b16 %v2194, %v2192
        %v2243 = vpack.c.b16 %v2197, %v2195
        %v2244 = vpack.c.b16 %v2198, %v2196
        %v2245 = vpack.c.b16 %v2201, %v2199
        %v2246 = vpack.c.b16 %v2202, %v2200
        %v2247 = vpack.c.b16 %v2205, %v2203
        %v2248 = vpack.c.b16 %v2206, %v2204
        %v2249 = vpack.c.b16 %v2209, %v2207
        %v2250 = vpack.c.b16 %v2210, %v2208
        %v2251 = vpack.c.b16 %v2213, %v2211
        %v2252 = vpack.c.b16 %v2214, %v2212
        %v2253 = vpack.c.b16 %v2217, %v2215
        %v2254 = vpack.c.b16 %v2218, %v2216
        %v2255 = vpack.c.b16 %v2221, %v2219
        %v2256 = vpack.c.b16 %v2222, %v2220
        %v2257 = vpack.c.b16 %v2225, %v2223
        %v2258 = vpack.c.b16 %v2226, %v2224
        %2291 = vmatprep.subr.bf16.mxu0 %v2228
        %2292 = vmatpush1.bf16.msra.mxu0 %v2227
        %2293 = vmatprep.subr.bf16.mxu0 %v2230
        %2294 = vmatpush1.bf16.msra.mxu0 %v2229
        %2295 = vmatprep.subr.bf16.mxu0 %v2232
        %2296 = vmatpush1.bf16.msra.mxu0 %v2231
        %2297 = vmatprep.subr.bf16.mxu0 %v2234
        %2298 = vmatpush1.bf16.msra.mxu0 %v2233
        %2299 = vmatprep.subr.bf16.mxu0 %v2236
        %2300 = vmatpush1.bf16.msra.mxu0 %v2235
        %2301 = vmatprep.subr.bf16.mxu0 %v2238
        %2302 = vmatpush1.bf16.msra.mxu0 %v2237
        %2303 = vmatprep.subr.bf16.mxu0 %v2240
        %2304 = vmatpush1.bf16.msra.mxu0 %v2239
        %2305 = vmatprep.subr.bf16.mxu0 %v2242
        %2306 = vmatpush1.bf16.msra.mxu0 %v2241
        %2307 = vmatprep.subr.bf16.mxu0 %v2244
        %2308 = vmatpush1.bf16.msra.mxu0 %v2243
        %2309 = vmatprep.subr.bf16.mxu0 %v2246
        %2310 = vmatpush1.bf16.msra.mxu0 %v2245
        %2311 = vmatprep.subr.bf16.mxu0 %v2248
        %2312 = vmatpush1.bf16.msra.mxu0 %v2247
        %2313 = vmatprep.subr.bf16.mxu0 %v2250
        %2314 = vmatpush1.bf16.msra.mxu0 %v2249
        %2315 = vmatprep.subr.bf16.mxu0 %v2252
        %2316 = vmatpush1.bf16.msra.mxu0 %v2251
        %2317 = vmatprep.subr.bf16.mxu0 %v2254
        %2318 = vmatpush1.bf16.msra.mxu0 %v2253
        %2319 = vmatprep.subr.bf16.mxu0 %v2256
        %2320 = vmatpush1.bf16.msra.mxu0 %v2255
        %2321 = vmatprep.subr.bf16.mxu0 %v2258
        %2322 = vmatpush1.bf16.msra.mxu0 %v2257
        %2323 = vmatprep.mubr.bf16.mxu0 %v2086
        %2324 = vmatmul.mubr.bf16.gmra.mrb[0].mxu0 %v2085
        %v2325 = vpop.f32.mrb[0].mxu0
        %v2326 = vadd.f32 %v2124, %v2325
        %v2327 = vpop.f32.mrb[0].mxu0
        %v2328 = vadd.f32 %v2128, %v2327
        %v2329 = vpop.f32.mrb[0].mxu0
        %v2330 = vadd.f32 %v2124, %v2329
        %v2331 = vpop.f32.mrb[0].mxu0
        %v2332 = vadd.f32 %v2128, %v2331
        %2333 = vdwg.mxu0
        %v2334 = vadd.f32 %v834, %v2326
        %v2335 = vadd.f32 %v835, %v2328
        %v2336 = vadd.f32 %v836, %v2330
        %v2337 = vadd.f32 %v837, %v2332
        %v2338 = vld [vmem:[%s807] sm:$0x3]
        %v2339 = vld [vmem:[%s811] sm:$0x3]
        %v2340 = vadd.f32 %v2334, %v2335
        %2341 = vadd.xlane.f32.xlu0 %v2340
        %v2342 = vpop.xlane.xlu0 %2341
        %v2343 = vadd.f32 %v2336, %v2337
        %2344 = vadd.xlane.f32.xlu0 %v2343
        %v2345 = vpop.xlane.xlu0 %2344
        %v2346 = vmul.f32 %v2342, %v847
        %v2347 = vmul.f32 %v2345, %v847
        %v2348 = vsub.f32 %v2334, %v2346
        %v2349 = vsub.f32 %v2335, %v2346
        %v2350 = vsub.f32 %v2336, %v2347
        %v2351 = vsub.f32 %v2337, %v2347
        %v2352 = vmul.f32 %v2348, %v2348
        %v2353 = vmul.f32 %v2349, %v2349
        %v2354 = vmul.f32 %v2350, %v2350
        %v2355 = vmul.f32 %v2351, %v2351
        %v2356 = vadd.f32 %v2352, %v2353
        %2357 = vadd.xlane.f32.xlu0 %v2356
        %v2358 = vpop.xlane.xlu0 %2357
        %v2359 = vadd.f32 %v2354, %v2355
        %2360 = vadd.xlane.f32.xlu0 %v2359
        %v2361 = vpop.xlane.xlu0 %2360
        %v2362 = vmul.f32 %v2358, %v847
        %v2363 = vmul.f32 %v2361, %v847
        %v2364 = vadd.f32 %v2362, 1e-05
        %v2365 = vadd.f32 %v2363, 1e-05
        %v2366 = vrsqrt.pop %v2364
        %v2367 = vrsqrt.pop %v2365
        %v2368 = vmul.f32 %v2348, %v2366
        %v2369 = vmul.f32 %v2349, %v2366
        %v2370 = vmul.f32 %v2350, %v2367
        %v2371 = vmul.f32 %v2351, %v2367
        %v2373 = vlaneseq
        %v2374 = vshrl.u32 %v2373, 7
        %v2375 = vsub.s32 0, %v2374
        %v2376 = vrot.slane %v2338, %v2375
        %v2377 = vlaneseq
        %v2378 = vshrl.u32 %v2377, 7
        %v2379 = vsub.s32 1, %v2378
        %v2380 = vrot.slane %v2338, %v2379
        %v2383 = vmul.f32 %v2368, %v2376
        %v2384 = vmul.f32 %v2369, %v2380
        %v2385 = vmul.f32 %v2370, %v2376
        %v2386 = vmul.f32 %v2371, %v2380
        %v2388 = vlaneseq
        %v2389 = vshrl.u32 %v2388, 7
        %v2390 = vsub.s32 0, %v2389
        %v2391 = vrot.slane %v2339, %v2390
        %v2392 = vlaneseq
        %v2393 = vshrl.u32 %v2392, 7
        %v2394 = vsub.s32 1, %v2393
        %v2395 = vrot.slane %v2339, %v2394
        %v2398 = vadd.f32 %v2383, %v2391
        %v2399 = vadd.f32 %v2384, %v2395
        %v2400 = vadd.f32 %v2385, %v2391
        %v2401 = vadd.f32 %v2386, %v2395
        %v2402 = vpack.c.bf16 %v2400, %v2398
        %v2403 = vpack.c.bf16 %v2401, %v2399
        %v2404 = vld [vmem:[%s687] sm:$0xff]
        %v2405 = vld [vmem:[%s687 + $0x8] sm:$0xff]
        %v2406 = vld [vmem:[%s687 + $0x10] sm:$0xff]
        %v2407 = vld [vmem:[%s687 + $0x18] sm:$0xff]
        %v2408 = vld [vmem:[%s687 + $0x20] sm:$0xff]
        %v2409 = vld [vmem:[%s687 + $0x28] sm:$0xff]
        %v2410 = vld [vmem:[%s687 + $0x30] sm:$0xff]
        %v2411 = vld [vmem:[%s687 + $0x38] sm:$0xff]
        %v2412 = vld [vmem:[%s687 + $0x40] sm:$0xff]
        %v2413 = vld [vmem:[%s687 + $0x48] sm:$0xff]
        %v2414 = vld [vmem:[%s687 + $0x50] sm:$0xff]
        %v2415 = vld [vmem:[%s687 + $0x58] sm:$0xff]
        %v2416 = vld [vmem:[%s687 + $0x60] sm:$0xff]
        %v2417 = vld [vmem:[%s687 + $0x68] sm:$0xff]
        %v2418 = vld [vmem:[%s687 + $0x70] sm:$0xff]
        %v2419 = vld [vmem:[%s687 + $0x78] sm:$0xff]
        %v2420 = vld [vmem:[%s687 + $0x80] sm:$0xff]
        %v2421 = vld [vmem:[%s687 + $0x88] sm:$0xff]
        %v2422 = vld [vmem:[%s687 + $0x90] sm:$0xff]
        %v2423 = vld [vmem:[%s687 + $0x98] sm:$0xff]
        %v2424 = vld [vmem:[%s687 + $0xa0] sm:$0xff]
        %v2425 = vld [vmem:[%s687 + $0xa8] sm:$0xff]
        %v2426 = vld [vmem:[%s687 + $0xb0] sm:$0xff]
        %v2427 = vld [vmem:[%s687 + $0xb8] sm:$0xff]
        %v2428 = vld [vmem:[%s687 + $0xc0] sm:$0xff]
        %v2429 = vld [vmem:[%s687 + $0xc8] sm:$0xff]
        %v2430 = vld [vmem:[%s687 + $0xd0] sm:$0xff]
        %v2431 = vld [vmem:[%s687 + $0xd8] sm:$0xff]
        %v2432 = vld [vmem:[%s687 + $0xe0] sm:$0xff]
        %v2433 = vld [vmem:[%s687 + $0xe8] sm:$0xff]
        %v2434 = vld [vmem:[%s687 + $0xf0] sm:$0xff]
        %v2435 = vld [vmem:[%s687 + $0xf8] sm:$0xff]
        %v2436 = vld [vmem:[%s687 + $0x100] sm:$0xff]
        %v2437 = vld [vmem:[%s687 + $0x108] sm:$0xff]
        %v2438 = vld [vmem:[%s687 + $0x110] sm:$0xff]
        %v2439 = vld [vmem:[%s687 + $0x118] sm:$0xff]
        %v2440 = vld [vmem:[%s687 + $0x120] sm:$0xff]
        %v2441 = vld [vmem:[%s687 + $0x128] sm:$0xff]
        %v2442 = vld [vmem:[%s687 + $0x130] sm:$0xff]
        %v2443 = vld [vmem:[%s687 + $0x138] sm:$0xff]
        %v2444 = vld [vmem:[%s687 + $0x140] sm:$0xff]
        %v2445 = vld [vmem:[%s687 + $0x148] sm:$0xff]
        %v2446 = vld [vmem:[%s687 + $0x150] sm:$0xff]
        %v2447 = vld [vmem:[%s687 + $0x158] sm:$0xff]
        %v2448 = vld [vmem:[%s687 + $0x160] sm:$0xff]
        %v2449 = vld [vmem:[%s687 + $0x168] sm:$0xff]
        %v2450 = vld [vmem:[%s687 + $0x170] sm:$0xff]
        %v2451 = vld [vmem:[%s687 + $0x178] sm:$0xff]
        %v2452 = vld [vmem:[%s687 + $0x180] sm:$0xff]
        %v2453 = vld [vmem:[%s687 + $0x188] sm:$0xff]
        %v2454 = vld [vmem:[%s687 + $0x190] sm:$0xff]
        %v2455 = vld [vmem:[%s687 + $0x198] sm:$0xff]
        %v2456 = vld [vmem:[%s687 + $0x1a0] sm:$0xff]
        %v2457 = vld [vmem:[%s687 + $0x1a8] sm:$0xff]
        %v2458 = vld [vmem:[%s687 + $0x1b0] sm:$0xff]
        %v2459 = vld [vmem:[%s687 + $0x1b8] sm:$0xff]
        %v2460 = vld [vmem:[%s687 + $0x1c0] sm:$0xff]
        %v2461 = vld [vmem:[%s687 + $0x1c8] sm:$0xff]
        %v2462 = vld [vmem:[%s687 + $0x1d0] sm:$0xff]
        %v2463 = vld [vmem:[%s687 + $0x1d8] sm:$0xff]
        %v2464 = vld [vmem:[%s687 + $0x1e0] sm:$0xff]
        %v2465 = vld [vmem:[%s687 + $0x1e8] sm:$0xff]
        %v2466 = vld [vmem:[%s687 + $0x1f0] sm:$0xff]
        %v2467 = vld [vmem:[%s687 + $0x1f8] sm:$0xff]
        %v2468 = vld [vmem:[%s687 + $0x200] sm:$0xff]
        %v2469 = vld [vmem:[%s687 + $0x208] sm:$0xff]
        %v2470 = vld [vmem:[%s687 + $0x210] sm:$0xff]
        %v2471 = vld [vmem:[%s687 + $0x218] sm:$0xff]
        %v2472 = vld [vmem:[%s687 + $0x220] sm:$0xff]
        %v2473 = vld [vmem:[%s687 + $0x228] sm:$0xff]
        %v2474 = vld [vmem:[%s687 + $0x230] sm:$0xff]
        %v2475 = vld [vmem:[%s687 + $0x238] sm:$0xff]
        %v2476 = vld [vmem:[%s687 + $0x240] sm:$0xff]
        %v2477 = vld [vmem:[%s687 + $0x248] sm:$0xff]
        %v2478 = vld [vmem:[%s687 + $0x250] sm:$0xff]
        %v2479 = vld [vmem:[%s687 + $0x258] sm:$0xff]
        %v2480 = vld [vmem:[%s687 + $0x260] sm:$0xff]
        %v2481 = vld [vmem:[%s687 + $0x268] sm:$0xff]
        %v2482 = vld [vmem:[%s687 + $0x270] sm:$0xff]
        %v2483 = vld [vmem:[%s687 + $0x278] sm:$0xff]
        %v2484 = vld [vmem:[%s687 + $0x280] sm:$0xff]
        %v2485 = vld [vmem:[%s687 + $0x288] sm:$0xff]
        %v2486 = vld [vmem:[%s687 + $0x290] sm:$0xff]
        %v2487 = vld [vmem:[%s687 + $0x298] sm:$0xff]
        %v2488 = vld [vmem:[%s687 + $0x2a0] sm:$0xff]
        %v2489 = vld [vmem:[%s687 + $0x2a8] sm:$0xff]
        %v2490 = vld [vmem:[%s687 + $0x2b0] sm:$0xff]
        %v2491 = vld [vmem:[%s687 + $0x2b8] sm:$0xff]
        %v2492 = vld [vmem:[%s687 + $0x2c0] sm:$0xff]
        %v2493 = vld [vmem:[%s687 + $0x2c8] sm:$0xff]
        %v2494 = vld [vmem:[%s687 + $0x2d0] sm:$0xff]
        %v2495 = vld [vmem:[%s687 + $0x2d8] sm:$0xff]
        %v2496 = vld [vmem:[%s687 + $0x2e0] sm:$0xff]
        %v2497 = vld [vmem:[%s687 + $0x2e8] sm:$0xff]
        %v2498 = vld [vmem:[%s687 + $0x2f0] sm:$0xff]
        %v2499 = vld [vmem:[%s687 + $0x2f8] sm:$0xff]
        %v2500 = vld [vmem:[%s687 + $0x300] sm:$0xff]
        %v2501 = vld [vmem:[%s687 + $0x308] sm:$0xff]
        %v2502 = vld [vmem:[%s687 + $0x310] sm:$0xff]
        %v2503 = vld [vmem:[%s687 + $0x318] sm:$0xff]
        %v2504 = vld [vmem:[%s687 + $0x320] sm:$0xff]
        %v2505 = vld [vmem:[%s687 + $0x328] sm:$0xff]
        %v2506 = vld [vmem:[%s687 + $0x330] sm:$0xff]
        %v2507 = vld [vmem:[%s687 + $0x338] sm:$0xff]
        %v2508 = vld [vmem:[%s687 + $0x340] sm:$0xff]
        %v2509 = vld [vmem:[%s687 + $0x348] sm:$0xff]
        %v2510 = vld [vmem:[%s687 + $0x350] sm:$0xff]
        %v2511 = vld [vmem:[%s687 + $0x358] sm:$0xff]
        %v2512 = vld [vmem:[%s687 + $0x360] sm:$0xff]
        %v2513 = vld [vmem:[%s687 + $0x368] sm:$0xff]
        %v2514 = vld [vmem:[%s687 + $0x370] sm:$0xff]
        %v2515 = vld [vmem:[%s687 + $0x378] sm:$0xff]
        %v2516 = vld [vmem:[%s687 + $0x380] sm:$0xff]
        %v2517 = vld [vmem:[%s687 + $0x388] sm:$0xff]
        %v2518 = vld [vmem:[%s687 + $0x390] sm:$0xff]
        %v2519 = vld [vmem:[%s687 + $0x398] sm:$0xff]
        %v2520 = vld [vmem:[%s687 + $0x3a0] sm:$0xff]
        %v2521 = vld [vmem:[%s687 + $0x3a8] sm:$0xff]
        %v2522 = vld [vmem:[%s687 + $0x3b0] sm:$0xff]
        %v2523 = vld [vmem:[%s687 + $0x3b8] sm:$0xff]
        %v2524 = vld [vmem:[%s687 + $0x3c0] sm:$0xff]
        %v2525 = vld [vmem:[%s687 + $0x3c8] sm:$0xff]
        %v2526 = vld [vmem:[%s687 + $0x3d0] sm:$0xff]
        %v2527 = vld [vmem:[%s687 + $0x3d8] sm:$0xff]
        %v2528 = vld [vmem:[%s687 + $0x3e0] sm:$0xff]
        %v2529 = vld [vmem:[%s687 + $0x3e8] sm:$0xff]
        %v2530 = vld [vmem:[%s687 + $0x3f0] sm:$0xff]
        %v2531 = vld [vmem:[%s687 + $0x3f8] sm:$0xff]
        %v2532 = vld [vmem:[%s815] sm:$0xff]
        %v2534 = vlaneseq
        %v2535 = vshrl.u32 %v2534, 7
        %v2536 = vsub.s32 0, %v2535
        %v2537 = vrot.slane %v2532, %v2536
        %v2538 = vlaneseq
        %v2539 = vshrl.u32 %v2538, 7
        %v2540 = vsub.s32 1, %v2539
        %v2541 = vrot.slane %v2532, %v2540
        %v2542 = vlaneseq
        %v2543 = vshrl.u32 %v2542, 7
        %v2544 = vsub.s32 2, %v2543
        %v2545 = vrot.slane %v2532, %v2544
        %v2546 = vlaneseq
        %v2547 = vshrl.u32 %v2546, 7
        %v2548 = vsub.s32 3, %v2547
        %v2549 = vrot.slane %v2532, %v2548
        %v2550 = vlaneseq
        %v2551 = vshrl.u32 %v2550, 7
        %v2552 = vsub.s32 4, %v2551
        %v2553 = vrot.slane %v2532, %v2552
        %v2554 = vlaneseq
        %v2555 = vshrl.u32 %v2554, 7
        %v2556 = vsub.s32 5, %v2555
        %v2557 = vrot.slane %v2532, %v2556
        %v2558 = vlaneseq
        %v2559 = vshrl.u32 %v2558, 7
        %v2560 = vsub.s32 6, %v2559
        %v2561 = vrot.slane %v2532, %v2560
        %v2562 = vlaneseq
        %v2563 = vshrl.u32 %v2562, 7
        %v2564 = vsub.s32 7, %v2563
        %v2565 = vrot.slane %v2532, %v2564
        %v2702 = vunpack.c.l.b16 %v2404
        %v2703 = vunpack.c.h.b16 %v2404
        %v2704 = vunpack.c.l.b16 %v2405
        %v2705 = vunpack.c.h.b16 %v2405
        %v2706 = vunpack.c.l.b16 %v2406
        %v2707 = vunpack.c.h.b16 %v2406
        %v2708 = vunpack.c.l.b16 %v2407
        %v2709 = vunpack.c.h.b16 %v2407
        %v2710 = vunpack.c.l.b16 %v2408
        %v2711 = vunpack.c.h.b16 %v2408
        %v2712 = vunpack.c.l.b16 %v2409
        %v2713 = vunpack.c.h.b16 %v2409
        %v2714 = vunpack.c.l.b16 %v2410
        %v2715 = vunpack.c.h.b16 %v2410
        %v2716 = vunpack.c.l.b16 %v2411
        %v2717 = vunpack.c.h.b16 %v2411
        %v2718 = vunpack.c.l.b16 %v2412
        %v2719 = vunpack.c.h.b16 %v2412
        %v2720 = vunpack.c.l.b16 %v2413
        %v2721 = vunpack.c.h.b16 %v2413
        %v2722 = vunpack.c.l.b16 %v2414
        %v2723 = vunpack.c.h.b16 %v2414
        %v2724 = vunpack.c.l.b16 %v2415
        %v2725 = vunpack.c.h.b16 %v2415
        %v2726 = vunpack.c.l.b16 %v2416
        %v2727 = vunpack.c.h.b16 %v2416
        %v2728 = vunpack.c.l.b16 %v2417
        %v2729 = vunpack.c.h.b16 %v2417
        %v2730 = vunpack.c.l.b16 %v2418
        %v2731 = vunpack.c.h.b16 %v2418
        %v2732 = vunpack.c.l.b16 %v2419
        %v2733 = vunpack.c.h.b16 %v2419
        %v2734 = vunpack.c.l.b16 %v2420
        %v2735 = vunpack.c.h.b16 %v2420
        %v2736 = vunpack.c.l.b16 %v2421
        %v2737 = vunpack.c.h.b16 %v2421
        %v2738 = vunpack.c.l.b16 %v2422
        %v2739 = vunpack.c.h.b16 %v2422
        %v2740 = vunpack.c.l.b16 %v2423
        %v2741 = vunpack.c.h.b16 %v2423
        %v2742 = vunpack.c.l.b16 %v2424
        %v2743 = vunpack.c.h.b16 %v2424
        %v2744 = vunpack.c.l.b16 %v2425
        %v2745 = vunpack.c.h.b16 %v2425
        %v2746 = vunpack.c.l.b16 %v2426
        %v2747 = vunpack.c.h.b16 %v2426
        %v2748 = vunpack.c.l.b16 %v2427
        %v2749 = vunpack.c.h.b16 %v2427
        %v2750 = vunpack.c.l.b16 %v2428
        %v2751 = vunpack.c.h.b16 %v2428
        %v2752 = vunpack.c.l.b16 %v2429
        %v2753 = vunpack.c.h.b16 %v2429
        %v2754 = vunpack.c.l.b16 %v2430
        %v2755 = vunpack.c.h.b16 %v2430
        %v2756 = vunpack.c.l.b16 %v2431
        %v2757 = vunpack.c.h.b16 %v2431
        %v2758 = vunpack.c.l.b16 %v2432
        %v2759 = vunpack.c.h.b16 %v2432
        %v2760 = vunpack.c.l.b16 %v2433
        %v2761 = vunpack.c.h.b16 %v2433
        %v2762 = vunpack.c.l.b16 %v2434
        %v2763 = vunpack.c.h.b16 %v2434
        %v2764 = vunpack.c.l.b16 %v2435
        %v2765 = vunpack.c.h.b16 %v2435
        %v2766 = vunpack.c.l.b16 %v2436
        %v2767 = vunpack.c.h.b16 %v2436
        %v2768 = vunpack.c.l.b16 %v2437
        %v2769 = vunpack.c.h.b16 %v2437
        %v2770 = vunpack.c.l.b16 %v2438
        %v2771 = vunpack.c.h.b16 %v2438
        %v2772 = vunpack.c.l.b16 %v2439
        %v2773 = vunpack.c.h.b16 %v2439
        %v2774 = vunpack.c.l.b16 %v2440
        %v2775 = vunpack.c.h.b16 %v2440
        %v2776 = vunpack.c.l.b16 %v2441
        %v2777 = vunpack.c.h.b16 %v2441
        %v2778 = vunpack.c.l.b16 %v2442
        %v2779 = vunpack.c.h.b16 %v2442
        %v2780 = vunpack.c.l.b16 %v2443
        %v2781 = vunpack.c.h.b16 %v2443
        %v2782 = vunpack.c.l.b16 %v2444
        %v2783 = vunpack.c.h.b16 %v2444
        %v2784 = vunpack.c.l.b16 %v2445
        %v2785 = vunpack.c.h.b16 %v2445
        %v2786 = vunpack.c.l.b16 %v2446
        %v2787 = vunpack.c.h.b16 %v2446
        %v2788 = vunpack.c.l.b16 %v2447
        %v2789 = vunpack.c.h.b16 %v2447
        %v2790 = vunpack.c.l.b16 %v2448
        %v2791 = vunpack.c.h.b16 %v2448
        %v2792 = vunpack.c.l.b16 %v2449
        %v2793 = vunpack.c.h.b16 %v2449
        %v2794 = vunpack.c.l.b16 %v2450
        %v2795 = vunpack.c.h.b16 %v2450
        %v2796 = vunpack.c.l.b16 %v2451
        %v2797 = vunpack.c.h.b16 %v2451
        %v2798 = vunpack.c.l.b16 %v2452
        %v2799 = vunpack.c.h.b16 %v2452
        %v2800 = vunpack.c.l.b16 %v2453
        %v2801 = vunpack.c.h.b16 %v2453
        %v2802 = vunpack.c.l.b16 %v2454
        %v2803 = vunpack.c.h.b16 %v2454
        %v2804 = vunpack.c.l.b16 %v2455
        %v2805 = vunpack.c.h.b16 %v2455
        %v2806 = vunpack.c.l.b16 %v2456
        %v2807 = vunpack.c.h.b16 %v2456
        %v2808 = vunpack.c.l.b16 %v2457
        %v2809 = vunpack.c.h.b16 %v2457
        %v2810 = vunpack.c.l.b16 %v2458
        %v2811 = vunpack.c.h.b16 %v2458
        %v2812 = vunpack.c.l.b16 %v2459
        %v2813 = vunpack.c.h.b16 %v2459
        %v2814 = vunpack.c.l.b16 %v2460
        %v2815 = vunpack.c.h.b16 %v2460
        %v2816 = vunpack.c.l.b16 %v2461
        %v2817 = vunpack.c.h.b16 %v2461
        %v2818 = vunpack.c.l.b16 %v2462
        %v2819 = vunpack.c.h.b16 %v2462
        %v2820 = vunpack.c.l.b16 %v2463
        %v2821 = vunpack.c.h.b16 %v2463
        %v2822 = vunpack.c.l.b16 %v2464
        %v2823 = vunpack.c.h.b16 %v2464
        %v2824 = vunpack.c.l.b16 %v2465
        %v2825 = vunpack.c.h.b16 %v2465
        %v2826 = vunpack.c.l.b16 %v2466
        %v2827 = vunpack.c.h.b16 %v2466
        %v2828 = vunpack.c.l.b16 %v2467
        %v2829 = vunpack.c.h.b16 %v2467
        %v2830 = vunpack.c.l.b16 %v2468
        %v2831 = vunpack.c.h.b16 %v2468
        %v2832 = vunpack.c.l.b16 %v2469
        %v2833 = vunpack.c.h.b16 %v2469
        %v2834 = vunpack.c.l.b16 %v2470
        %v2835 = vunpack.c.h.b16 %v2470
        %v2836 = vunpack.c.l.b16 %v2471
        %v2837 = vunpack.c.h.b16 %v2471
        %v2838 = vunpack.c.l.b16 %v2472
        %v2839 = vunpack.c.h.b16 %v2472
        %v2840 = vunpack.c.l.b16 %v2473
        %v2841 = vunpack.c.h.b16 %v2473
        %v2842 = vunpack.c.l.b16 %v2474
        %v2843 = vunpack.c.h.b16 %v2474
        %v2844 = vunpack.c.l.b16 %v2475
        %v2845 = vunpack.c.h.b16 %v2475
        %v2846 = vunpack.c.l.b16 %v2476
        %v2847 = vunpack.c.h.b16 %v2476
        %v2848 = vunpack.c.l.b16 %v2477
        %v2849 = vunpack.c.h.b16 %v2477
        %v2850 = vunpack.c.l.b16 %v2478
        %v2851 = vunpack.c.h.b16 %v2478
        %v2852 = vunpack.c.l.b16 %v2479
        %v2853 = vunpack.c.h.b16 %v2479
        %v2854 = vunpack.c.l.b16 %v2480
        %v2855 = vunpack.c.h.b16 %v2480
        %v2856 = vunpack.c.l.b16 %v2481
        %v2857 = vunpack.c.h.b16 %v2481
        %v2858 = vunpack.c.l.b16 %v2482
        %v2859 = vunpack.c.h.b16 %v2482
        %v2860 = vunpack.c.l.b16 %v2483
        %v2861 = vunpack.c.h.b16 %v2483
        %v2862 = vunpack.c.l.b16 %v2484
        %v2863 = vunpack.c.h.b16 %v2484
        %v2864 = vunpack.c.l.b16 %v2485
        %v2865 = vunpack.c.h.b16 %v2485
        %v2866 = vunpack.c.l.b16 %v2486
        %v2867 = vunpack.c.h.b16 %v2486
        %v2868 = vunpack.c.l.b16 %v2487
        %v2869 = vunpack.c.h.b16 %v2487
        %v2870 = vunpack.c.l.b16 %v2488
        %v2871 = vunpack.c.h.b16 %v2488
        %v2872 = vunpack.c.l.b16 %v2489
        %v2873 = vunpack.c.h.b16 %v2489
        %v2874 = vunpack.c.l.b16 %v2490
        %v2875 = vunpack.c.h.b16 %v2490
        %v2876 = vunpack.c.l.b16 %v2491
        %v2877 = vunpack.c.h.b16 %v2491
        %v2878 = vunpack.c.l.b16 %v2492
        %v2879 = vunpack.c.h.b16 %v2492
        %v2880 = vunpack.c.l.b16 %v2493
        %v2881 = vunpack.c.h.b16 %v2493
        %v2882 = vunpack.c.l.b16 %v2494
        %v2883 = vunpack.c.h.b16 %v2494
        %v2884 = vunpack.c.l.b16 %v2495
        %v2885 = vunpack.c.h.b16 %v2495
        %v2886 = vunpack.c.l.b16 %v2496
        %v2887 = vunpack.c.h.b16 %v2496
        %v2888 = vunpack.c.l.b16 %v2497
        %v2889 = vunpack.c.h.b16 %v2497
        %v2890 = vunpack.c.l.b16 %v2498
        %v2891 = vunpack.c.h.b16 %v2498
        %v2892 = vunpack.c.l.b16 %v2499
        %v2893 = vunpack.c.h.b16 %v2499
        %v2894 = vunpack.c.l.b16 %v2500
        %v2895 = vunpack.c.h.b16 %v2500
        %v2896 = vunpack.c.l.b16 %v2501
        %v2897 = vunpack.c.h.b16 %v2501
        %v2898 = vunpack.c.l.b16 %v2502
        %v2899 = vunpack.c.h.b16 %v2502
        %v2900 = vunpack.c.l.b16 %v2503
        %v2901 = vunpack.c.h.b16 %v2503
        %v2902 = vunpack.c.l.b16 %v2504
        %v2903 = vunpack.c.h.b16 %v2504
        %v2904 = vunpack.c.l.b16 %v2505
        %v2905 = vunpack.c.h.b16 %v2505
        %v2906 = vunpack.c.l.b16 %v2506
        %v2907 = vunpack.c.h.b16 %v2506
        %v2908 = vunpack.c.l.b16 %v2507
        %v2909 = vunpack.c.h.b16 %v2507
        %v2910 = vunpack.c.l.b16 %v2508
        %v2911 = vunpack.c.h.b16 %v2508
        %v2912 = vunpack.c.l.b16 %v2509
        %v2913 = vunpack.c.h.b16 %v2509
        %v2914 = vunpack.c.l.b16 %v2510
        %v2915 = vunpack.c.h.b16 %v2510
        %v2916 = vunpack.c.l.b16 %v2511
        %v2917 = vunpack.c.h.b16 %v2511
        %v2918 = vunpack.c.l.b16 %v2512
        %v2919 = vunpack.c.h.b16 %v2512
        %v2920 = vunpack.c.l.b16 %v2513
        %v2921 = vunpack.c.h.b16 %v2513
        %v2922 = vunpack.c.l.b16 %v2514
        %v2923 = vunpack.c.h.b16 %v2514
        %v2924 = vunpack.c.l.b16 %v2515
        %v2925 = vunpack.c.h.b16 %v2515
        %v2926 = vunpack.c.l.b16 %v2516
        %v2927 = vunpack.c.h.b16 %v2516
        %v2928 = vunpack.c.l.b16 %v2517
        %v2929 = vunpack.c.h.b16 %v2517
        %v2930 = vunpack.c.l.b16 %v2518
        %v2931 = vunpack.c.h.b16 %v2518
        %v2932 = vunpack.c.l.b16 %v2519
        %v2933 = vunpack.c.h.b16 %v2519
        %v2934 = vunpack.c.l.b16 %v2520
        %v2935 = vunpack.c.h.b16 %v2520
        %v2936 = vunpack.c.l.b16 %v2521
        %v2937 = vunpack.c.h.b16 %v2521
        %v2938 = vunpack.c.l.b16 %v2522
        %v2939 = vunpack.c.h.b16 %v2522
        %v2940 = vunpack.c.l.b16 %v2523
        %v2941 = vunpack.c.h.b16 %v2523
        %v2942 = vunpack.c.l.b16 %v2524
        %v2943 = vunpack.c.h.b16 %v2524
        %v2944 = vunpack.c.l.b16 %v2525
        %v2945 = vunpack.c.h.b16 %v2525
        %v2946 = vunpack.c.l.b16 %v2526
        %v2947 = vunpack.c.h.b16 %v2526
        %v2948 = vunpack.c.l.b16 %v2527
        %v2949 = vunpack.c.h.b16 %v2527
        %v2950 = vunpack.c.l.b16 %v2528
        %v2951 = vunpack.c.h.b16 %v2528
        %v2952 = vunpack.c.l.b16 %v2529
        %v2953 = vunpack.c.h.b16 %v2529
        %v2954 = vunpack.c.l.b16 %v2530
        %v2955 = vunpack.c.h.b16 %v2530
        %v2956 = vunpack.c.l.b16 %v2531
        %v2957 = vunpack.c.h.b16 %v2531
        %v2958 = vpack.c.b16 %v2710, %v2702
        %v2959 = vpack.c.b16 %v2711, %v2703
        %v2960 = vpack.c.b16 %v2712, %v2704
        %v2961 = vpack.c.b16 %v2713, %v2705
        %v2962 = vpack.c.b16 %v2714, %v2706
        %v2963 = vpack.c.b16 %v2715, %v2707
        %v2964 = vpack.c.b16 %v2716, %v2708
        %v2965 = vpack.c.b16 %v2717, %v2709
        %v2966 = vpack.c.b16 %v2726, %v2718
        %v2967 = vpack.c.b16 %v2727, %v2719
        %v2968 = vpack.c.b16 %v2728, %v2720
        %v2969 = vpack.c.b16 %v2729, %v2721
        %v2970 = vpack.c.b16 %v2730, %v2722
        %v2971 = vpack.c.b16 %v2731, %v2723
        %v2972 = vpack.c.b16 %v2732, %v2724
        %v2973 = vpack.c.b16 %v2733, %v2725
        %v2974 = vpack.c.b16 %v2742, %v2734
        %v2975 = vpack.c.b16 %v2743, %v2735
        %v2976 = vpack.c.b16 %v2744, %v2736
        %v2977 = vpack.c.b16 %v2745, %v2737
        %v2978 = vpack.c.b16 %v2746, %v2738
        %v2979 = vpack.c.b16 %v2747, %v2739
        %v2980 = vpack.c.b16 %v2748, %v2740
        %v2981 = vpack.c.b16 %v2749, %v2741
        %v2982 = vpack.c.b16 %v2758, %v2750
        %v2983 = vpack.c.b16 %v2759, %v2751
        %v2984 = vpack.c.b16 %v2760, %v2752
        %v2985 = vpack.c.b16 %v2761, %v2753
        %v2986 = vpack.c.b16 %v2762, %v2754
        %v2987 = vpack.c.b16 %v2763, %v2755
        %v2988 = vpack.c.b16 %v2764, %v2756
        %v2989 = vpack.c.b16 %v2765, %v2757
        %v2990 = vpack.c.b16 %v2774, %v2766
        %v2991 = vpack.c.b16 %v2775, %v2767
        %v2992 = vpack.c.b16 %v2776, %v2768
        %v2993 = vpack.c.b16 %v2777, %v2769
        %v2994 = vpack.c.b16 %v2778, %v2770
        %v2995 = vpack.c.b16 %v2779, %v2771
        %v2996 = vpack.c.b16 %v2780, %v2772
        %v2997 = vpack.c.b16 %v2781, %v2773
        %v2998 = vpack.c.b16 %v2790, %v2782
        %v2999 = vpack.c.b16 %v2791, %v2783
        %v3000 = vpack.c.b16 %v2792, %v2784
        %v3001 = vpack.c.b16 %v2793, %v2785
        %v3002 = vpack.c.b16 %v2794, %v2786
        %v3003 = vpack.c.b16 %v2795, %v2787
        %v3004 = vpack.c.b16 %v2796, %v2788
        %v3005 = vpack.c.b16 %v2797, %v2789
        %v3006 = vpack.c.b16 %v2806, %v2798
        %v3007 = vpack.c.b16 %v2807, %v2799
        %v3008 = vpack.c.b16 %v2808, %v2800
        %v3009 = vpack.c.b16 %v2809, %v2801
        %v3010 = vpack.c.b16 %v2810, %v2802
        %v3011 = vpack.c.b16 %v2811, %v2803
        %v3012 = vpack.c.b16 %v2812, %v2804
        %v3013 = vpack.c.b16 %v2813, %v2805
        %v3014 = vpack.c.b16 %v2822, %v2814
        %v3015 = vpack.c.b16 %v2823, %v2815
        %v3016 = vpack.c.b16 %v2824, %v2816
        %v3017 = vpack.c.b16 %v2825, %v2817
        %v3018 = vpack.c.b16 %v2826, %v2818
        %v3019 = vpack.c.b16 %v2827, %v2819
        %v3020 = vpack.c.b16 %v2828, %v2820
        %v3021 = vpack.c.b16 %v2829, %v2821
        %v3022 = vpack.c.b16 %v2838, %v2830
        %v3023 = vpack.c.b16 %v2839, %v2831
        %v3024 = vpack.c.b16 %v2840, %v2832
        %v3025 = vpack.c.b16 %v2841, %v2833
        %v3026 = vpack.c.b16 %v2842, %v2834
        %v3027 = vpack.c.b16 %v2843, %v2835
        %v3028 = vpack.c.b16 %v2844, %v2836
        %v3029 = vpack.c.b16 %v2845, %v2837
        %v3030 = vpack.c.b16 %v2854, %v2846
        %v3031 = vpack.c.b16 %v2855, %v2847
        %v3032 = vpack.c.b16 %v2856, %v2848
        %v3033 = vpack.c.b16 %v2857, %v2849
        %v3034 = vpack.c.b16 %v2858, %v2850
        %v3035 = vpack.c.b16 %v2859, %v2851
        %v3036 = vpack.c.b16 %v2860, %v2852
        %v3037 = vpack.c.b16 %v2861, %v2853
        %v3038 = vpack.c.b16 %v2870, %v2862
        %v3039 = vpack.c.b16 %v2871, %v2863
        %v3040 = vpack.c.b16 %v2872, %v2864
        %v3041 = vpack.c.b16 %v2873, %v2865
        %v3042 = vpack.c.b16 %v2874, %v2866
        %v3043 = vpack.c.b16 %v2875, %v2867
        %v3044 = vpack.c.b16 %v2876, %v2868
        %v3045 = vpack.c.b16 %v2877, %v2869
        %v3046 = vpack.c.b16 %v2886, %v2878
        %v3047 = vpack.c.b16 %v2887, %v2879
        %v3048 = vpack.c.b16 %v2888, %v2880
        %v3049 = vpack.c.b16 %v2889, %v2881
        %v3050 = vpack.c.b16 %v2890, %v2882
        %v3051 = vpack.c.b16 %v2891, %v2883
        %v3052 = vpack.c.b16 %v2892, %v2884
        %v3053 = vpack.c.b16 %v2893, %v2885
        %v3054 = vpack.c.b16 %v2902, %v2894
        %v3055 = vpack.c.b16 %v2903, %v2895
        %v3056 = vpack.c.b16 %v2904, %v2896
        %v3057 = vpack.c.b16 %v2905, %v2897
        %v3058 = vpack.c.b16 %v2906, %v2898
        %v3059 = vpack.c.b16 %v2907, %v2899
        %v3060 = vpack.c.b16 %v2908, %v2900
        %v3061 = vpack.c.b16 %v2909, %v2901
        %v3062 = vpack.c.b16 %v2918, %v2910
        %v3063 = vpack.c.b16 %v2919, %v2911
        %v3064 = vpack.c.b16 %v2920, %v2912
        %v3065 = vpack.c.b16 %v2921, %v2913
        %v3066 = vpack.c.b16 %v2922, %v2914
        %v3067 = vpack.c.b16 %v2923, %v2915
        %v3068 = vpack.c.b16 %v2924, %v2916
        %v3069 = vpack.c.b16 %v2925, %v2917
        %v3070 = vpack.c.b16 %v2934, %v2926
        %v3071 = vpack.c.b16 %v2935, %v2927
        %v3072 = vpack.c.b16 %v2936, %v2928
        %v3073 = vpack.c.b16 %v2937, %v2929
        %v3074 = vpack.c.b16 %v2938, %v2930
        %v3075 = vpack.c.b16 %v2939, %v2931
        %v3076 = vpack.c.b16 %v2940, %v2932
        %v3077 = vpack.c.b16 %v2941, %v2933
        %v3078 = vpack.c.b16 %v2950, %v2942
        %v3079 = vpack.c.b16 %v2951, %v2943
        %v3080 = vpack.c.b16 %v2952, %v2944
        %v3081 = vpack.c.b16 %v2953, %v2945
        %v3082 = vpack.c.b16 %v2954, %v2946
        %v3083 = vpack.c.b16 %v2955, %v2947
        %v3084 = vpack.c.b16 %v2956, %v2948
        %v3085 = vpack.c.b16 %v2957, %v2949
        %3214 = vmatprep.subr.bf16.mxu0 %v2959
        %3215 = vmatpush1.bf16.msra.mxu0 %v2958
        %3216 = vmatprep.subr.bf16.mxu0 %v2967
        %3217 = vmatpush1.bf16.msra.mxu0 %v2966
        %3218 = vmatprep.subr.bf16.mxu0 %v2975
        %3219 = vmatpush1.bf16.msra.mxu0 %v2974
        %3220 = vmatprep.subr.bf16.mxu0 %v2983
        %3221 = vmatpush1.bf16.msra.mxu0 %v2982
        %3222 = vmatprep.subr.bf16.mxu0 %v2991
        %3223 = vmatpush1.bf16.msra.mxu0 %v2990
        %3224 = vmatprep.subr.bf16.mxu0 %v2999
        %3225 = vmatpush1.bf16.msra.mxu0 %v2998
        %3226 = vmatprep.subr.bf16.mxu0 %v3007
        %3227 = vmatpush1.bf16.msra.mxu0 %v3006
        %3228 = vmatprep.subr.bf16.mxu0 %v3015
        %3229 = vmatpush1.bf16.msra.mxu0 %v3014
        %3230 = vmatprep.subr.bf16.mxu0 %v3023
        %3231 = vmatpush1.bf16.msra.mxu0 %v3022
        %3232 = vmatprep.subr.bf16.mxu0 %v3031
        %3233 = vmatpush1.bf16.msra.mxu0 %v3030
        %3234 = vmatprep.subr.bf16.mxu0 %v3039
        %3235 = vmatpush1.bf16.msra.mxu0 %v3038
        %3236 = vmatprep.subr.bf16.mxu0 %v3047
        %3237 = vmatpush1.bf16.msra.mxu0 %v3046
        %3238 = vmatprep.subr.bf16.mxu0 %v3055
        %3239 = vmatpush1.bf16.msra.mxu0 %v3054
        %3240 = vmatprep.subr.bf16.mxu0 %v3063
        %3241 = vmatpush1.bf16.msra.mxu0 %v3062
        %3242 = vmatprep.subr.bf16.mxu0 %v3071
        %3243 = vmatpush1.bf16.msra.mxu0 %v3070
        %3244 = vmatprep.subr.bf16.mxu0 %v3079
        %3245 = vmatpush1.bf16.msra.mxu0 %v3078
        %3246 = vmatprep.mubr.bf16.mxu0 %v2403
        %3247 = vmatmul.mubr.bf16.gmra.mrb[0].mxu0 %v2402
        %v3248 = vpop.f32.mrb[0].mxu0
        %v3249 = vadd.f32 %v2537, %v3248
        %v3250 = vpop.f32.mrb[0].mxu0
        %v3251 = vadd.f32 %v2541, %v3250
        %v3252 = vpop.f32.mrb[0].mxu0
        %v3253 = vadd.f32 %v2537, %v3252
        %v3254 = vpop.f32.mrb[0].mxu0
        %v3255 = vadd.f32 %v2541, %v3254
        %3256 = vdwg.mxu0
        %3257 = vmatprep.subr.bf16.mxu0 %v2961
        %3258 = vmatpush1.bf16.msra.mxu0 %v2960
        %3259 = vmatprep.subr.bf16.mxu0 %v2969
        %3260 = vmatpush1.bf16.msra.mxu0 %v2968
        %3261 = vmatprep.subr.bf16.mxu0 %v2977
        %3262 = vmatpush1.bf16.msra.mxu0 %v2976
        %3263 = vmatprep.subr.bf16.mxu0 %v2985
        %3264 = vmatpush1.bf16.msra.mxu0 %v2984
        %3265 = vmatprep.subr.bf16.mxu0 %v2993
        %3266 = vmatpush1.bf16.msra.mxu0 %v2992
        %3267 = vmatprep.subr.bf16.mxu0 %v3001
        %3268 = vmatpush1.bf16.msra.mxu0 %v3000
        %3269 = vmatprep.subr.bf16.mxu0 %v3009
        %3270 = vmatpush1.bf16.msra.mxu0 %v3008
        %3271 = vmatprep.subr.bf16.mxu0 %v3017
        %3272 = vmatpush1.bf16.msra.mxu0 %v3016
        %3273 = vmatprep.subr.bf16.mxu0 %v3025
        %3274 = vmatpush1.bf16.msra.mxu0 %v3024
        %3275 = vmatprep.subr.bf16.mxu0 %v3033
        %3276 = vmatpush1.bf16.msra.mxu0 %v3032
        %3277 = vmatprep.subr.bf16.mxu0 %v3041
        %3278 = vmatpush1.bf16.msra.mxu0 %v3040
        %3279 = vmatprep.subr.bf16.mxu0 %v3049
        %3280 = vmatpush1.bf16.msra.mxu0 %v3048
        %3281 = vmatprep.subr.bf16.mxu0 %v3057
        %3282 = vmatpush1.bf16.msra.mxu0 %v3056
        %3283 = vmatprep.subr.bf16.mxu0 %v3065
        %3284 = vmatpush1.bf16.msra.mxu0 %v3064
        %3285 = vmatprep.subr.bf16.mxu0 %v3073
        %3286 = vmatpush1.bf16.msra.mxu0 %v3072
        %3287 = vmatprep.subr.bf16.mxu0 %v3081
        %3288 = vmatpush1.bf16.msra.mxu0 %v3080
        %3289 = vmatprep.mubr.bf16.mxu0 %v2403
        %3290 = vmatmul.mubr.bf16.gmra.mrb[0].mxu0 %v2402
        %v3291 = vpop.f32.mrb[0].mxu0
        %v3292 = vadd.f32 %v2545, %v3291
        %v3293 = vpop.f32.mrb[0].mxu0
        %v3294 = vadd.f32 %v2549, %v3293
        %v3295 = vpop.f32.mrb[0].mxu0
        %v3296 = vadd.f32 %v2545, %v3295
        %v3297 = vpop.f32.mrb[0].mxu0
        %v3298 = vadd.f32 %v2549, %v3297
        %3299 = vdwg.mxu0
        %3300 = vmatprep.subr.bf16.mxu0 %v2963
        %3301 = vmatpush1.bf16.msra.mxu0 %v2962
        %3302 = vmatprep.subr.bf16.mxu0 %v2971
        %3303 = vmatpush1.bf16.msra.mxu0 %v2970
        %3304 = vmatprep.subr.bf16.mxu0 %v2979
        %3305 = vmatpush1.bf16.msra.mxu0 %v2978
        %3306 = vmatprep.subr.bf16.mxu0 %v2987
        %3307 = vmatpush1.bf16.msra.mxu0 %v2986
        %3308 = vmatprep.subr.bf16.mxu0 %v2995
        %3309 = vmatpush1.bf16.msra.mxu0 %v2994
        %3310 = vmatprep.subr.bf16.mxu0 %v3003
        %3311 = vmatpush1.bf16.msra.mxu0 %v3002
        %3312 = vmatprep.subr.bf16.mxu0 %v3011
        %3313 = vmatpush1.bf16.msra.mxu0 %v3010
        %3314 = vmatprep.subr.bf16.mxu0 %v3019
        %3315 = vmatpush1.bf16.msra.mxu0 %v3018
        %3316 = vmatprep.subr.bf16.mxu0 %v3027
        %3317 = vmatpush1.bf16.msra.mxu0 %v3026
        %3318 = vmatprep.subr.bf16.mxu0 %v3035
        %3319 = vmatpush1.bf16.msra.mxu0 %v3034
        %3320 = vmatprep.subr.bf16.mxu0 %v3043
        %3321 = vmatpush1.bf16.msra.mxu0 %v3042
        %3322 = vmatprep.subr.bf16.mxu0 %v3051
        %3323 = vmatpush1.bf16.msra.mxu0 %v3050
        %3324 = vmatprep.subr.bf16.mxu0 %v3059
        %3325 = vmatpush1.bf16.msra.mxu0 %v3058
        %3326 = vmatprep.subr.bf16.mxu0 %v3067
        %3327 = vmatpush1.bf16.msra.mxu0 %v3066
        %3328 = vmatprep.subr.bf16.mxu0 %v3075
        %3329 = vmatpush1.bf16.msra.mxu0 %v3074
        %3330 = vmatprep.subr.bf16.mxu0 %v3083
        %3331 = vmatpush1.bf16.msra.mxu0 %v3082
        %3332 = vmatprep.mubr.bf16.mxu0 %v2403
        %3333 = vmatmul.mubr.bf16.gmra.mrb[0].mxu0 %v2402
        %v3334 = vpop.f32.mrb[0].mxu0
        %v3335 = vadd.f32 %v2553, %v3334
        %v3336 = vpop.f32.mrb[0].mxu0
        %v3337 = vadd.f32 %v2557, %v3336
        %v3338 = vpop.f32.mrb[0].mxu0
        %v3339 = vadd.f32 %v2553, %v3338
        %v3340 = vpop.f32.mrb[0].mxu0
        %v3341 = vadd.f32 %v2557, %v3340
        %3342 = vdwg.mxu0
        %3343 = vmatprep.subr.bf16.mxu0 %v2965
        %3344 = vmatpush1.bf16.msra.mxu0 %v2964
        %3345 = vmatprep.subr.bf16.mxu0 %v2973
        %3346 = vmatpush1.bf16.msra.mxu0 %v2972
        %3347 = vmatprep.subr.bf16.mxu0 %v2981
        %3348 = vmatpush1.bf16.msra.mxu0 %v2980
        %3349 = vmatprep.subr.bf16.mxu0 %v2989
        %3350 = vmatpush1.bf16.msra.mxu0 %v2988
        %3351 = vmatprep.subr.bf16.mxu0 %v2997
        %3352 = vmatpush1.bf16.msra.mxu0 %v2996
        %3353 = vmatprep.subr.bf16.mxu0 %v3005
        %3354 = vmatpush1.bf16.msra.mxu0 %v3004
        %3355 = vmatprep.subr.bf16.mxu0 %v3013
        %3356 = vmatpush1.bf16.msra.mxu0 %v3012
        %3357 = vmatprep.subr.bf16.mxu0 %v3021
        %3358 = vmatpush1.bf16.msra.mxu0 %v3020
        %3359 = vmatprep.subr.bf16.mxu0 %v3029
        %3360 = vmatpush1.bf16.msra.mxu0 %v3028
        %3361 = vmatprep.subr.bf16.mxu0 %v3037
        %3362 = vmatpush1.bf16.msra.mxu0 %v3036
        %3363 = vmatprep.subr.bf16.mxu0 %v3045
        %3364 = vmatpush1.bf16.msra.mxu0 %v3044
        %3365 = vmatprep.subr.bf16.mxu0 %v3053
        %3366 = vmatpush1.bf16.msra.mxu0 %v3052
        %3367 = vmatprep.subr.bf16.mxu0 %v3061
        %3368 = vmatpush1.bf16.msra.mxu0 %v3060
        %3369 = vmatprep.subr.bf16.mxu0 %v3069
        %3370 = vmatpush1.bf16.msra.mxu0 %v3068
        %3371 = vmatprep.subr.bf16.mxu0 %v3077
        %3372 = vmatpush1.bf16.msra.mxu0 %v3076
        %3373 = vmatprep.subr.bf16.mxu0 %v3085
        %3374 = vmatpush1.bf16.msra.mxu0 %v3084
        %3375 = vmatprep.mubr.bf16.mxu0 %v2403
        %3376 = vmatmul.mubr.bf16.gmra.mrb[0].mxu0 %v2402
        %v3377 = vpop.f32.mrb[0].mxu0
        %v3378 = vadd.f32 %v2561, %v3377
        %v3379 = vpop.f32.mrb[0].mxu0
        %v3380 = vadd.f32 %v2565, %v3379
        %v3381 = vpop.f32.mrb[0].mxu0
        %v3382 = vadd.f32 %v2561, %v3381
        %v3383 = vpop.f32.mrb[0].mxu0
        %v3384 = vadd.f32 %v2565, %v3383
        %3385 = vdwg.mxu0
        %v3386 = vmul.f32 %v3249, 1.702
        %v3387 = vmul.f32 %v3251, 1.702
        %v3388 = vmul.f32 %v3292, 1.702
        %v3389 = vmul.f32 %v3294, 1.702
        %v3390 = vmul.f32 %v3335, 1.702
        %v3391 = vmul.f32 %v3337, 1.702
        %v3392 = vmul.f32 %v3378, 1.702
        %v3393 = vmul.f32 %v3380, 1.702
        %v3394 = vmul.f32 %v3253, 1.702
        %v3395 = vmul.f32 %v3255, 1.702
        %v3396 = vmul.f32 %v3296, 1.702
        %v3397 = vmul.f32 %v3298, 1.702
        %v3398 = vmul.f32 %v3339, 1.702
        %v3399 = vmul.f32 %v3341, 1.702
        %v3400 = vmul.f32 %v3382, 1.702
        %v3401 = vmul.f32 %v3384, 1.702
        %v3402 = vxor.u32 %v3386, 2147483648
        %v3403 = vxor.u32 %v3387, 2147483648
        %v3404 = vxor.u32 %v3388, 2147483648
        %v3405 = vxor.u32 %v3389, 2147483648
        %v3406 = vxor.u32 %v3390, 2147483648
        %v3407 = vxor.u32 %v3391, 2147483648
        %v3408 = vxor.u32 %v3392, 2147483648
        %v3409 = vxor.u32 %v3393, 2147483648
        %v3410 = vxor.u32 %v3394, 2147483648
        %v3411 = vxor.u32 %v3395, 2147483648
        %v3412 = vxor.u32 %v3396, 2147483648
        %v3413 = vxor.u32 %v3397, 2147483648
        %v3414 = vxor.u32 %v3398, 2147483648
        %v3415 = vxor.u32 %v3399, 2147483648
        %v3416 = vxor.u32 %v3400, 2147483648
        %v3417 = vxor.u32 %v3401, 2147483648
        %v3418 = vmul.f32 %v3402, 1.442695
        %v3419 = vpow.pop %v3418
        %v3420 = vmul.f32 %v3403, 1.442695
        %v3421 = vpow.pop %v3420
        %v3422 = vmul.f32 %v3404, 1.442695
        %v3423 = vpow.pop %v3422
        %v3424 = vmul.f32 %v3405, 1.442695
        %v3425 = vpow.pop %v3424
        %v3426 = vmul.f32 %v3406, 1.442695
        %v3427 = vpow.pop %v3426
        %v3428 = vmul.f32 %v3407, 1.442695
        %v3429 = vpow.pop %v3428
        %v3430 = vmul.f32 %v3408, 1.442695
        %v3431 = vpow.pop %v3430
        %v3432 = vmul.f32 %v3409, 1.442695
        %v3433 = vpow.pop %v3432
        %v3434 = vmul.f32 %v3410, 1.442695
        %v3435 = vpow.pop %v3434
        %v3436 = vmul.f32 %v3411, 1.442695
        %v3437 = vpow.pop %v3436
        %v3438 = vmul.f32 %v3412, 1.442695
        %v3439 = vpow.pop %v3438
        %v3440 = vmul.f32 %v3413, 1.442695
        %v3441 = vpow.pop %v3440
        %v3442 = vmul.f32 %v3414, 1.442695
        %v3443 = vpow.pop %v3442
        %v3444 = vmul.f32 %v3415, 1.442695
        %v3445 = vpow.pop %v3444
        %v3446 = vmul.f32 %v3416, 1.442695
        %v3447 = vpow.pop %v3446
        %v3448 = vmul.f32 %v3417, 1.442695
        %v3449 = vpow.pop %v3448
        %v3450 = vadd.f32 %v3419, 1.0
        %v3451 = vadd.f32 %v3421, 1.0
        %v3452 = vadd.f32 %v3423, 1.0
        %v3453 = vadd.f32 %v3425, 1.0
        %v3454 = vadd.f32 %v3427, 1.0
        %v3455 = vadd.f32 %v3429, 1.0
        %v3456 = vadd.f32 %v3431, 1.0
        %v3457 = vadd.f32 %v3433, 1.0
        %v3458 = vadd.f32 %v3435, 1.0
        %v3459 = vadd.f32 %v3437, 1.0
        %v3460 = vadd.f32 %v3439, 1.0
        %v3461 = vadd.f32 %v3441, 1.0
        %v3462 = vadd.f32 %v3443, 1.0
        %v3463 = vadd.f32 %v3445, 1.0
        %v3464 = vadd.f32 %v3447, 1.0
        %v3465 = vadd.f32 %v3449, 1.0
        %v3466 = vrcp.pop %v3450
        %v3467 = vmul.f32 1.0, %v3466
        %v3468 = vrcp.pop %v3451
        %v3469 = vmul.f32 1.0, %v3468
        %v3470 = vrcp.pop %v3452
        %v3471 = vmul.f32 1.0, %v3470
        %v3472 = vrcp.pop %v3453
        %v3473 = vmul.f32 1.0, %v3472
        %v3474 = vrcp.pop %v3454
        %v3475 = vmul.f32 1.0, %v3474
        %v3476 = vrcp.pop %v3455
        %v3477 = vmul.f32 1.0, %v3476
        %v3478 = vrcp.pop %v3456
        %v3479 = vmul.f32 1.0, %v3478
        %v3480 = vrcp.pop %v3457
        %v3481 = vmul.f32 1.0, %v3480
        %v3482 = vrcp.pop %v3458
        %v3483 = vmul.f32 1.0, %v3482
        %v3484 = vrcp.pop %v3459
        %v3485 = vmul.f32 1.0, %v3484
        %v3486 = vrcp.pop %v3460
        %v3487 = vmul.f32 1.0, %v3486
        %v3488 = vrcp.pop %v3461
        %v3489 = vmul.f32 1.0, %v3488
        %v3490 = vrcp.pop %v3462
        %v3491 = vmul.f32 1.0, %v3490
        %v3492 = vrcp.pop %v3463
        %v3493 = vmul.f32 1.0, %v3492
        %v3494 = vrcp.pop %v3464
        %v3495 = vmul.f32 1.0, %v3494
        %v3496 = vrcp.pop %v3465
        %v3497 = vmul.f32 1.0, %v3496
        %v3498 = vmul.f32 %v3249, %v3467
        %v3499 = vmul.f32 %v3251, %v3469
        %v3500 = vmul.f32 %v3292, %v3471
        %v3501 = vmul.f32 %v3294, %v3473
        %v3502 = vmul.f32 %v3335, %v3475
        %v3503 = vmul.f32 %v3337, %v3477
        %v3504 = vmul.f32 %v3378, %v3479
        %v3505 = vmul.f32 %v3380, %v3481
        %v3506 = vmul.f32 %v3253, %v3483
        %v3507 = vmul.f32 %v3255, %v3485
        %v3508 = vmul.f32 %v3296, %v3487
        %v3509 = vmul.f32 %v3298, %v3489
        %v3510 = vmul.f32 %v3339, %v3491
        %v3511 = vmul.f32 %v3341, %v3493
        %v3512 = vmul.f32 %v3382, %v3495
        %v3513 = vmul.f32 %v3384, %v3497
        %v3514 = vpack.c.bf16 %v3506, %v3498
        %v3515 = vpack.c.bf16 %v3507, %v3499
        %v3516 = vpack.c.bf16 %v3508, %v3500
        %v3517 = vpack.c.bf16 %v3509, %v3501
        %v3518 = vpack.c.bf16 %v3510, %v3502
        %v3519 = vpack.c.bf16 %v3511, %v3503
        %v3520 = vpack.c.bf16 %v3512, %v3504
        %v3521 = vpack.c.bf16 %v3513, %v3505
        %v3522 = vld [vmem:[%s696] sm:$0xff]
        %v3523 = vld [vmem:[%s696 + $0x8] sm:$0xff]
        %v3524 = vld [vmem:[%s696 + $0x10] sm:$0xff]
        %v3525 = vld [vmem:[%s696 + $0x18] sm:$0xff]
        %v3526 = vld [vmem:[%s696 + $0x20] sm:$0xff]
        %v3527 = vld [vmem:[%s696 + $0x28] sm:$0xff]
        %v3528 = vld [vmem:[%s696 + $0x30] sm:$0xff]
        %v3529 = vld [vmem:[%s696 + $0x38] sm:$0xff]
        %v3530 = vld [vmem:[%s696 + $0x40] sm:$0xff]
        %v3531 = vld [vmem:[%s696 + $0x48] sm:$0xff]
        %v3532 = vld [vmem:[%s696 + $0x50] sm:$0xff]
        %v3533 = vld [vmem:[%s696 + $0x58] sm:$0xff]
        %v3534 = vld [vmem:[%s696 + $0x60] sm:$0xff]
        %v3535 = vld [vmem:[%s696 + $0x68] sm:$0xff]
        %v3536 = vld [vmem:[%s696 + $0x70] sm:$0xff]
        %v3537 = vld [vmem:[%s696 + $0x78] sm:$0xff]
        %v3538 = vld [vmem:[%s696 + $0x80] sm:$0xff]
        %v3539 = vld [vmem:[%s696 + $0x88] sm:$0xff]
        %v3540 = vld [vmem:[%s696 + $0x90] sm:$0xff]
        %v3541 = vld [vmem:[%s696 + $0x98] sm:$0xff]
        %v3542 = vld [vmem:[%s696 + $0xa0] sm:$0xff]
        %v3543 = vld [vmem:[%s696 + $0xa8] sm:$0xff]
        %v3544 = vld [vmem:[%s696 + $0xb0] sm:$0xff]
        %v3545 = vld [vmem:[%s696 + $0xb8] sm:$0xff]
        %v3546 = vld [vmem:[%s696 + $0xc0] sm:$0xff]
        %v3547 = vld [vmem:[%s696 + $0xc8] sm:$0xff]
        %v3548 = vld [vmem:[%s696 + $0xd0] sm:$0xff]
        %v3549 = vld [vmem:[%s696 + $0xd8] sm:$0xff]
        %v3550 = vld [vmem:[%s696 + $0xe0] sm:$0xff]
        %v3551 = vld [vmem:[%s696 + $0xe8] sm:$0xff]
        %v3552 = vld [vmem:[%s696 + $0xf0] sm:$0xff]
        %v3553 = vld [vmem:[%s696 + $0xf8] sm:$0xff]
        %v3554 = vld [vmem:[%s696 + $0x100] sm:$0xff]
        %v3555 = vld [vmem:[%s696 + $0x108] sm:$0xff]
        %v3556 = vld [vmem:[%s696 + $0x110] sm:$0xff]
        %v3557 = vld [vmem:[%s696 + $0x118] sm:$0xff]
        %v3558 = vld [vmem:[%s696 + $0x120] sm:$0xff]
        %v3559 = vld [vmem:[%s696 + $0x128] sm:$0xff]
        %v3560 = vld [vmem:[%s696 + $0x130] sm:$0xff]
        %v3561 = vld [vmem:[%s696 + $0x138] sm:$0xff]
        %v3562 = vld [vmem:[%s696 + $0x140] sm:$0xff]
        %v3563 = vld [vmem:[%s696 + $0x148] sm:$0xff]
        %v3564 = vld [vmem:[%s696 + $0x150] sm:$0xff]
        %v3565 = vld [vmem:[%s696 + $0x158] sm:$0xff]
        %v3566 = vld [vmem:[%s696 + $0x160] sm:$0xff]
        %v3567 = vld [vmem:[%s696 + $0x168] sm:$0xff]
        %v3568 = vld [vmem:[%s696 + $0x170] sm:$0xff]
        %v3569 = vld [vmem:[%s696 + $0x178] sm:$0xff]
        %v3570 = vld [vmem:[%s696 + $0x180] sm:$0xff]
        %v3571 = vld [vmem:[%s696 + $0x188] sm:$0xff]
        %v3572 = vld [vmem:[%s696 + $0x190] sm:$0xff]
        %v3573 = vld [vmem:[%s696 + $0x198] sm:$0xff]
        %v3574 = vld [vmem:[%s696 + $0x1a0] sm:$0xff]
        %v3575 = vld [vmem:[%s696 + $0x1a8] sm:$0xff]
        %v3576 = vld [vmem:[%s696 + $0x1b0] sm:$0xff]
        %v3577 = vld [vmem:[%s696 + $0x1b8] sm:$0xff]
        %v3578 = vld [vmem:[%s696 + $0x1c0] sm:$0xff]
        %v3579 = vld [vmem:[%s696 + $0x1c8] sm:$0xff]
        %v3580 = vld [vmem:[%s696 + $0x1d0] sm:$0xff]
        %v3581 = vld [vmem:[%s696 + $0x1d8] sm:$0xff]
        %v3582 = vld [vmem:[%s696 + $0x1e0] sm:$0xff]
        %v3583 = vld [vmem:[%s696 + $0x1e8] sm:$0xff]
        %v3584 = vld [vmem:[%s696 + $0x1f0] sm:$0xff]
        %v3585 = vld [vmem:[%s696 + $0x1f8] sm:$0xff]
        %v3586 = vld [vmem:[%s696 + $0x200] sm:$0xff]
        %v3587 = vld [vmem:[%s696 + $0x208] sm:$0xff]
        %v3588 = vld [vmem:[%s696 + $0x210] sm:$0xff]
        %v3589 = vld [vmem:[%s696 + $0x218] sm:$0xff]
        %v3590 = vld [vmem:[%s696 + $0x220] sm:$0xff]
        %v3591 = vld [vmem:[%s696 + $0x228] sm:$0xff]
        %v3592 = vld [vmem:[%s696 + $0x230] sm:$0xff]
        %v3593 = vld [vmem:[%s696 + $0x238] sm:$0xff]
        %v3594 = vld [vmem:[%s696 + $0x240] sm:$0xff]
        %v3595 = vld [vmem:[%s696 + $0x248] sm:$0xff]
        %v3596 = vld [vmem:[%s696 + $0x250] sm:$0xff]
        %v3597 = vld [vmem:[%s696 + $0x258] sm:$0xff]
        %v3598 = vld [vmem:[%s696 + $0x260] sm:$0xff]
        %v3599 = vld [vmem:[%s696 + $0x268] sm:$0xff]
        %v3600 = vld [vmem:[%s696 + $0x270] sm:$0xff]
        %v3601 = vld [vmem:[%s696 + $0x278] sm:$0xff]
        %v3602 = vld [vmem:[%s696 + $0x280] sm:$0xff]
        %v3603 = vld [vmem:[%s696 + $0x288] sm:$0xff]
        %v3604 = vld [vmem:[%s696 + $0x290] sm:$0xff]
        %v3605 = vld [vmem:[%s696 + $0x298] sm:$0xff]
        %v3606 = vld [vmem:[%s696 + $0x2a0] sm:$0xff]
        %v3607 = vld [vmem:[%s696 + $0x2a8] sm:$0xff]
        %v3608 = vld [vmem:[%s696 + $0x2b0] sm:$0xff]
        %v3609 = vld [vmem:[%s696 + $0x2b8] sm:$0xff]
        %v3610 = vld [vmem:[%s696 + $0x2c0] sm:$0xff]
        %v3611 = vld [vmem:[%s696 + $0x2c8] sm:$0xff]
        %v3612 = vld [vmem:[%s696 + $0x2d0] sm:$0xff]
        %v3613 = vld [vmem:[%s696 + $0x2d8] sm:$0xff]
        %v3614 = vld [vmem:[%s696 + $0x2e0] sm:$0xff]
        %v3615 = vld [vmem:[%s696 + $0x2e8] sm:$0xff]
        %v3616 = vld [vmem:[%s696 + $0x2f0] sm:$0xff]
        %v3617 = vld [vmem:[%s696 + $0x2f8] sm:$0xff]
        %v3618 = vld [vmem:[%s696 + $0x300] sm:$0xff]
        %v3619 = vld [vmem:[%s696 + $0x308] sm:$0xff]
        %v3620 = vld [vmem:[%s696 + $0x310] sm:$0xff]
        %v3621 = vld [vmem:[%s696 + $0x318] sm:$0xff]
        %v3622 = vld [vmem:[%s696 + $0x320] sm:$0xff]
        %v3623 = vld [vmem:[%s696 + $0x328] sm:$0xff]
        %v3624 = vld [vmem:[%s696 + $0x330] sm:$0xff]
        %v3625 = vld [vmem:[%s696 + $0x338] sm:$0xff]
        %v3626 = vld [vmem:[%s696 + $0x340] sm:$0xff]
        %v3627 = vld [vmem:[%s696 + $0x348] sm:$0xff]
        %v3628 = vld [vmem:[%s696 + $0x350] sm:$0xff]
        %v3629 = vld [vmem:[%s696 + $0x358] sm:$0xff]
        %v3630 = vld [vmem:[%s696 + $0x360] sm:$0xff]
        %v3631 = vld [vmem:[%s696 + $0x368] sm:$0xff]
        %v3632 = vld [vmem:[%s696 + $0x370] sm:$0xff]
        %v3633 = vld [vmem:[%s696 + $0x378] sm:$0xff]
        %v3634 = vld [vmem:[%s696 + $0x380] sm:$0xff]
        %v3635 = vld [vmem:[%s696 + $0x388] sm:$0xff]
        %v3636 = vld [vmem:[%s696 + $0x390] sm:$0xff]
        %v3637 = vld [vmem:[%s696 + $0x398] sm:$0xff]
        %v3638 = vld [vmem:[%s696 + $0x3a0] sm:$0xff]
        %v3639 = vld [vmem:[%s696 + $0x3a8] sm:$0xff]
        %v3640 = vld [vmem:[%s696 + $0x3b0] sm:$0xff]
        %v3641 = vld [vmem:[%s696 + $0x3b8] sm:$0xff]
        %v3642 = vld [vmem:[%s696 + $0x3c0] sm:$0xff]
        %v3643 = vld [vmem:[%s696 + $0x3c8] sm:$0xff]
        %v3644 = vld [vmem:[%s696 + $0x3d0] sm:$0xff]
        %v3645 = vld [vmem:[%s696 + $0x3d8] sm:$0xff]
        %v3646 = vld [vmem:[%s696 + $0x3e0] sm:$0xff]
        %v3647 = vld [vmem:[%s696 + $0x3e8] sm:$0xff]
        %v3648 = vld [vmem:[%s696 + $0x3f0] sm:$0xff]
        %v3649 = vld [vmem:[%s696 + $0x3f8] sm:$0xff]
        %v3650 = vld [vmem:[%s819] sm:$0x3]
        %v3652 = vlaneseq
        %v3653 = vshrl.u32 %v3652, 7
        %v3654 = vsub.s32 0, %v3653
        %v3655 = vrot.slane %v3650, %v3654
        %v3656 = vlaneseq
        %v3657 = vshrl.u32 %v3656, 7
        %v3658 = vsub.s32 1, %v3657
        %v3659 = vrot.slane %v3650, %v3658
        %v3790 = vunpack.c.l.b16 %v3522
        %v3791 = vunpack.c.h.b16 %v3522
        %v3792 = vunpack.c.l.b16 %v3523
        %v3793 = vunpack.c.h.b16 %v3523
        %v3794 = vunpack.c.l.b16 %v3524
        %v3795 = vunpack.c.h.b16 %v3524
        %v3796 = vunpack.c.l.b16 %v3525
        %v3797 = vunpack.c.h.b16 %v3525
        %v3798 = vunpack.c.l.b16 %v3526
        %v3799 = vunpack.c.h.b16 %v3526
        %v3800 = vunpack.c.l.b16 %v3527
        %v3801 = vunpack.c.h.b16 %v3527
        %v3802 = vunpack.c.l.b16 %v3528
        %v3803 = vunpack.c.h.b16 %v3528
        %v3804 = vunpack.c.l.b16 %v3529
        %v3805 = vunpack.c.h.b16 %v3529
        %v3806 = vunpack.c.l.b16 %v3530
        %v3807 = vunpack.c.h.b16 %v3530
        %v3808 = vunpack.c.l.b16 %v3531
        %v3809 = vunpack.c.h.b16 %v3531
        %v3810 = vunpack.c.l.b16 %v3532
        %v3811 = vunpack.c.h.b16 %v3532
        %v3812 = vunpack.c.l.b16 %v3533
        %v3813 = vunpack.c.h.b16 %v3533
        %v3814 = vunpack.c.l.b16 %v3534
        %v3815 = vunpack.c.h.b16 %v3534
        %v3816 = vunpack.c.l.b16 %v3535
        %v3817 = vunpack.c.h.b16 %v3535
        %v3818 = vunpack.c.l.b16 %v3536
        %v3819 = vunpack.c.h.b16 %v3536
        %v3820 = vunpack.c.l.b16 %v3537
        %v3821 = vunpack.c.h.b16 %v3537
        %v3822 = vunpack.c.l.b16 %v3538
        %v3823 = vunpack.c.h.b16 %v3538
        %v3824 = vunpack.c.l.b16 %v3539
        %v3825 = vunpack.c.h.b16 %v3539
        %v3826 = vunpack.c.l.b16 %v3540
        %v3827 = vunpack.c.h.b16 %v3540
        %v3828 = vunpack.c.l.b16 %v3541
        %v3829 = vunpack.c.h.b16 %v3541
        %v3830 = vunpack.c.l.b16 %v3542
        %v3831 = vunpack.c.h.b16 %v3542
        %v3832 = vunpack.c.l.b16 %v3543
        %v3833 = vunpack.c.h.b16 %v3543
        %v3834 = vunpack.c.l.b16 %v3544
        %v3835 = vunpack.c.h.b16 %v3544
        %v3836 = vunpack.c.l.b16 %v3545
        %v3837 = vunpack.c.h.b16 %v3545
        %v3838 = vunpack.c.l.b16 %v3546
        %v3839 = vunpack.c.h.b16 %v3546
        %v3840 = vunpack.c.l.b16 %v3547
        %v3841 = vunpack.c.h.b16 %v3547
        %v3842 = vunpack.c.l.b16 %v3548
        %v3843 = vunpack.c.h.b16 %v3548
        %v3844 = vunpack.c.l.b16 %v3549
        %v3845 = vunpack.c.h.b16 %v3549
        %v3846 = vunpack.c.l.b16 %v3550
        %v3847 = vunpack.c.h.b16 %v3550
        %v3848 = vunpack.c.l.b16 %v3551
        %v3849 = vunpack.c.h.b16 %v3551
        %v3850 = vunpack.c.l.b16 %v3552
        %v3851 = vunpack.c.h.b16 %v3552
        %v3852 = vunpack.c.l.b16 %v3553
        %v3853 = vunpack.c.h.b16 %v3553
        %v3854 = vunpack.c.l.b16 %v3554
        %v3855 = vunpack.c.h.b16 %v3554
        %v3856 = vunpack.c.l.b16 %v3555
        %v3857 = vunpack.c.h.b16 %v3555
        %v3858 = vunpack.c.l.b16 %v3556
        %v3859 = vunpack.c.h.b16 %v3556
        %v3860 = vunpack.c.l.b16 %v3557
        %v3861 = vunpack.c.h.b16 %v3557
        %v3862 = vunpack.c.l.b16 %v3558
        %v3863 = vunpack.c.h.b16 %v3558
        %v3864 = vunpack.c.l.b16 %v3559
        %v3865 = vunpack.c.h.b16 %v3559
        %v3866 = vunpack.c.l.b16 %v3560
        %v3867 = vunpack.c.h.b16 %v3560
        %v3868 = vunpack.c.l.b16 %v3561
        %v3869 = vunpack.c.h.b16 %v3561
        %v3870 = vunpack.c.l.b16 %v3562
        %v3871 = vunpack.c.h.b16 %v3562
        %v3872 = vunpack.c.l.b16 %v3563
        %v3873 = vunpack.c.h.b16 %v3563
        %v3874 = vunpack.c.l.b16 %v3564
        %v3875 = vunpack.c.h.b16 %v3564
        %v3876 = vunpack.c.l.b16 %v3565
        %v3877 = vunpack.c.h.b16 %v3565
        %v3878 = vunpack.c.l.b16 %v3566
        %v3879 = vunpack.c.h.b16 %v3566
        %v3880 = vunpack.c.l.b16 %v3567
        %v3881 = vunpack.c.h.b16 %v3567
        %v3882 = vunpack.c.l.b16 %v3568
        %v3883 = vunpack.c.h.b16 %v3568
        %v3884 = vunpack.c.l.b16 %v3569
        %v3885 = vunpack.c.h.b16 %v3569
        %v3886 = vunpack.c.l.b16 %v3570
        %v3887 = vunpack.c.h.b16 %v3570
        %v3888 = vunpack.c.l.b16 %v3571
        %v3889 = vunpack.c.h.b16 %v3571
        %v3890 = vunpack.c.l.b16 %v3572
        %v3891 = vunpack.c.h.b16 %v3572
        %v3892 = vunpack.c.l.b16 %v3573
        %v3893 = vunpack.c.h.b16 %v3573
        %v3894 = vunpack.c.l.b16 %v3574
        %v3895 = vunpack.c.h.b16 %v3574
        %v3896 = vunpack.c.l.b16 %v3575
        %v3897 = vunpack.c.h.b16 %v3575
        %v3898 = vunpack.c.l.b16 %v3576
        %v3899 = vunpack.c.h.b16 %v3576
        %v3900 = vunpack.c.l.b16 %v3577
        %v3901 = vunpack.c.h.b16 %v3577
        %v3902 = vunpack.c.l.b16 %v3578
        %v3903 = vunpack.c.h.b16 %v3578
        %v3904 = vunpack.c.l.b16 %v3579
        %v3905 = vunpack.c.h.b16 %v3579
        %v3906 = vunpack.c.l.b16 %v3580
        %v3907 = vunpack.c.h.b16 %v3580
        %v3908 = vunpack.c.l.b16 %v3581
        %v3909 = vunpack.c.h.b16 %v3581
        %v3910 = vunpack.c.l.b16 %v3582
        %v3911 = vunpack.c.h.b16 %v3582
        %v3912 = vunpack.c.l.b16 %v3583
        %v3913 = vunpack.c.h.b16 %v3583
        %v3914 = vunpack.c.l.b16 %v3584
        %v3915 = vunpack.c.h.b16 %v3584
        %v3916 = vunpack.c.l.b16 %v3585
        %v3917 = vunpack.c.h.b16 %v3585
        %v3918 = vunpack.c.l.b16 %v3586
        %v3919 = vunpack.c.h.b16 %v3586
        %v3920 = vunpack.c.l.b16 %v3587
        %v3921 = vunpack.c.h.b16 %v3587
        %v3922 = vunpack.c.l.b16 %v3588
        %v3923 = vunpack.c.h.b16 %v3588
        %v3924 = vunpack.c.l.b16 %v3589
        %v3925 = vunpack.c.h.b16 %v3589
        %v3926 = vunpack.c.l.b16 %v3590
        %v3927 = vunpack.c.h.b16 %v3590
        %v3928 = vunpack.c.l.b16 %v3591
        %v3929 = vunpack.c.h.b16 %v3591
        %v3930 = vunpack.c.l.b16 %v3592
        %v3931 = vunpack.c.h.b16 %v3592
        %v3932 = vunpack.c.l.b16 %v3593
        %v3933 = vunpack.c.h.b16 %v3593
        %v3934 = vunpack.c.l.b16 %v3594
        %v3935 = vunpack.c.h.b16 %v3594
        %v3936 = vunpack.c.l.b16 %v3595
        %v3937 = vunpack.c.h.b16 %v3595
        %v3938 = vunpack.c.l.b16 %v3596
        %v3939 = vunpack.c.h.b16 %v3596
        %v3940 = vunpack.c.l.b16 %v3597
        %v3941 = vunpack.c.h.b16 %v3597
        %v3942 = vunpack.c.l.b16 %v3598
        %v3943 = vunpack.c.h.b16 %v3598
        %v3944 = vunpack.c.l.b16 %v3599
        %v3945 = vunpack.c.h.b16 %v3599
        %v3946 = vunpack.c.l.b16 %v3600
        %v3947 = vunpack.c.h.b16 %v3600
        %v3948 = vunpack.c.l.b16 %v3601
        %v3949 = vunpack.c.h.b16 %v3601
        %v3950 = vunpack.c.l.b16 %v3602
        %v3951 = vunpack.c.h.b16 %v3602
        %v3952 = vunpack.c.l.b16 %v3603
        %v3953 = vunpack.c.h.b16 %v3603
        %v3954 = vunpack.c.l.b16 %v3604
        %v3955 = vunpack.c.h.b16 %v3604
        %v3956 = vunpack.c.l.b16 %v3605
        %v3957 = vunpack.c.h.b16 %v3605
        %v3958 = vunpack.c.l.b16 %v3606
        %v3959 = vunpack.c.h.b16 %v3606
        %v3960 = vunpack.c.l.b16 %v3607
        %v3961 = vunpack.c.h.b16 %v3607
        %v3962 = vunpack.c.l.b16 %v3608
        %v3963 = vunpack.c.h.b16 %v3608
        %v3964 = vunpack.c.l.b16 %v3609
        %v3965 = vunpack.c.h.b16 %v3609
        %v3966 = vunpack.c.l.b16 %v3610
        %v3967 = vunpack.c.h.b16 %v3610
        %v3968 = vunpack.c.l.b16 %v3611
        %v3969 = vunpack.c.h.b16 %v3611
        %v3970 = vunpack.c.l.b16 %v3612
        %v3971 = vunpack.c.h.b16 %v3612
        %v3972 = vunpack.c.l.b16 %v3613
        %v3973 = vunpack.c.h.b16 %v3613
        %v3974 = vunpack.c.l.b16 %v3614
        %v3975 = vunpack.c.h.b16 %v3614
        %v3976 = vunpack.c.l.b16 %v3615
        %v3977 = vunpack.c.h.b16 %v3615
        %v3978 = vunpack.c.l.b16 %v3616
        %v3979 = vunpack.c.h.b16 %v3616
        %v3980 = vunpack.c.l.b16 %v3617
        %v3981 = vunpack.c.h.b16 %v3617
        %v3982 = vunpack.c.l.b16 %v3618
        %v3983 = vunpack.c.h.b16 %v3618
        %v3984 = vunpack.c.l.b16 %v3619
        %v3985 = vunpack.c.h.b16 %v3619
        %v3986 = vunpack.c.l.b16 %v3620
        %v3987 = vunpack.c.h.b16 %v3620
        %v3988 = vunpack.c.l.b16 %v3621
        %v3989 = vunpack.c.h.b16 %v3621
        %v3990 = vunpack.c.l.b16 %v3622
        %v3991 = vunpack.c.h.b16 %v3622
        %v3992 = vunpack.c.l.b16 %v3623
        %v3993 = vunpack.c.h.b16 %v3623
        %v3994 = vunpack.c.l.b16 %v3624
        %v3995 = vunpack.c.h.b16 %v3624
        %v3996 = vunpack.c.l.b16 %v3625
        %v3997 = vunpack.c.h.b16 %v3625
        %v3998 = vunpack.c.l.b16 %v3626
        %v3999 = vunpack.c.h.b16 %v3626
        %v4000 = vunpack.c.l.b16 %v3627
        %v4001 = vunpack.c.h.b16 %v3627
        %v4002 = vunpack.c.l.b16 %v3628
        %v4003 = vunpack.c.h.b16 %v3628
        %v4004 = vunpack.c.l.b16 %v3629
        %v4005 = vunpack.c.h.b16 %v3629
        %v4006 = vunpack.c.l.b16 %v3630
        %v4007 = vunpack.c.h.b16 %v3630
        %v4008 = vunpack.c.l.b16 %v3631
        %v4009 = vunpack.c.h.b16 %v3631
        %v4010 = vunpack.c.l.b16 %v3632
        %v4011 = vunpack.c.h.b16 %v3632
        %v4012 = vunpack.c.l.b16 %v3633
        %v4013 = vunpack.c.h.b16 %v3633
        %v4014 = vunpack.c.l.b16 %v3634
        %v4015 = vunpack.c.h.b16 %v3634
        %v4016 = vunpack.c.l.b16 %v3635
        %v4017 = vunpack.c.h.b16 %v3635
        %v4018 = vunpack.c.l.b16 %v3636
        %v4019 = vunpack.c.h.b16 %v3636
        %v4020 = vunpack.c.l.b16 %v3637
        %v4021 = vunpack.c.h.b16 %v3637
        %v4022 = vunpack.c.l.b16 %v3638
        %v4023 = vunpack.c.h.b16 %v3638
        %v4024 = vunpack.c.l.b16 %v3639
        %v4025 = vunpack.c.h.b16 %v3639
        %v4026 = vunpack.c.l.b16 %v3640
        %v4027 = vunpack.c.h.b16 %v3640
        %v4028 = vunpack.c.l.b16 %v3641
        %v4029 = vunpack.c.h.b16 %v3641
        %v4030 = vunpack.c.l.b16 %v3642
        %v4031 = vunpack.c.h.b16 %v3642
        %v4032 = vunpack.c.l.b16 %v3643
        %v4033 = vunpack.c.h.b16 %v3643
        %v4034 = vunpack.c.l.b16 %v3644
        %v4035 = vunpack.c.h.b16 %v3644
        %v4036 = vunpack.c.l.b16 %v3645
        %v4037 = vunpack.c.h.b16 %v3645
        %v4038 = vunpack.c.l.b16 %v3646
        %v4039 = vunpack.c.h.b16 %v3646
        %v4040 = vunpack.c.l.b16 %v3647
        %v4041 = vunpack.c.h.b16 %v3647
        %v4042 = vunpack.c.l.b16 %v3648
        %v4043 = vunpack.c.h.b16 %v3648
        %v4044 = vunpack.c.l.b16 %v3649
        %v4045 = vunpack.c.h.b16 %v3649
        %v4046 = vpack.c.b16 %v3792, %v3790
        %v4047 = vpack.c.b16 %v3793, %v3791
        %v4048 = vpack.c.b16 %v3796, %v3794
        %v4049 = vpack.c.b16 %v3797, %v3795
        %v4050 = vpack.c.b16 %v3800, %v3798
        %v4051 = vpack.c.b16 %v3801, %v3799
        %v4052 = vpack.c.b16 %v3804, %v3802
        %v4053 = vpack.c.b16 %v3805, %v3803
        %v4054 = vpack.c.b16 %v3808, %v3806
        %v4055 = vpack.c.b16 %v3809, %v3807
        %v4056 = vpack.c.b16 %v3812, %v3810
        %v4057 = vpack.c.b16 %v3813, %v3811
        %v4058 = vpack.c.b16 %v3816, %v3814
        %v4059 = vpack.c.b16 %v3817, %v3815
        %v4060 = vpack.c.b16 %v3820, %v3818
        %v4061 = vpack.c.b16 %v3821, %v3819
        %v4062 = vpack.c.b16 %v3824, %v3822
        %v4063 = vpack.c.b16 %v3825, %v3823
        %v4064 = vpack.c.b16 %v3828, %v3826
        %v4065 = vpack.c.b16 %v3829, %v3827
        %v4066 = vpack.c.b16 %v3832, %v3830
        %v4067 = vpack.c.b16 %v3833, %v3831
        %v4068 = vpack.c.b16 %v3836, %v3834
        %v4069 = vpack.c.b16 %v3837, %v3835
        %v4070 = vpack.c.b16 %v3840, %v3838
        %v4071 = vpack.c.b16 %v3841, %v3839
        %v4072 = vpack.c.b16 %v3844, %v3842
        %v4073 = vpack.c.b16 %v3845, %v3843
        %v4074 = vpack.c.b16 %v3848, %v3846
        %v4075 = vpack.c.b16 %v3849, %v3847
        %v4076 = vpack.c.b16 %v3852, %v3850
        %v4077 = vpack.c.b16 %v3853, %v3851
        %v4078 = vpack.c.b16 %v3856, %v3854
        %v4079 = vpack.c.b16 %v3857, %v3855
        %v4080 = vpack.c.b16 %v3860, %v3858
        %v4081 = vpack.c.b16 %v3861, %v3859
        %v4082 = vpack.c.b16 %v3864, %v3862
        %v4083 = vpack.c.b16 %v3865, %v3863
        %v4084 = vpack.c.b16 %v3868, %v3866
        %v4085 = vpack.c.b16 %v3869, %v3867
        %v4086 = vpack.c.b16 %v3872, %v3870
        %v4087 = vpack.c.b16 %v3873, %v3871
        %v4088 = vpack.c.b16 %v3876, %v3874
        %v4089 = vpack.c.b16 %v3877, %v3875
        %v4090 = vpack.c.b16 %v3880, %v3878
        %v4091 = vpack.c.b16 %v3881, %v3879
        %v4092 = vpack.c.b16 %v3884, %v3882
        %v4093 = vpack.c.b16 %v3885, %v3883
        %v4094 = vpack.c.b16 %v3888, %v3886
        %v4095 = vpack.c.b16 %v3889, %v3887
        %v4096 = vpack.c.b16 %v3892, %v3890
        %v4097 = vpack.c.b16 %v3893, %v3891
        %v4098 = vpack.c.b16 %v3896, %v3894
        %v4099 = vpack.c.b16 %v3897, %v3895
        %v4100 = vpack.c.b16 %v3900, %v3898
        %v4101 = vpack.c.b16 %v3901, %v3899
        %v4102 = vpack.c.b16 %v3904, %v3902
        %v4103 = vpack.c.b16 %v3905, %v3903
        %v4104 = vpack.c.b16 %v3908, %v3906
        %v4105 = vpack.c.b16 %v3909, %v3907
        %v4106 = vpack.c.b16 %v3912, %v3910
        %v4107 = vpack.c.b16 %v3913, %v3911
        %v4108 = vpack.c.b16 %v3916, %v3914
        %v4109 = vpack.c.b16 %v3917, %v3915
        %v4110 = vpack.c.b16 %v3920, %v3918
        %v4111 = vpack.c.b16 %v3921, %v3919
        %v4112 = vpack.c.b16 %v3924, %v3922
        %v4113 = vpack.c.b16 %v3925, %v3923
        %v4114 = vpack.c.b16 %v3928, %v3926
        %v4115 = vpack.c.b16 %v3929, %v3927
        %v4116 = vpack.c.b16 %v3932, %v3930
        %v4117 = vpack.c.b16 %v3933, %v3931
        %v4118 = vpack.c.b16 %v3936, %v3934
        %v4119 = vpack.c.b16 %v3937, %v3935
        %v4120 = vpack.c.b16 %v3940, %v3938
        %v4121 = vpack.c.b16 %v3941, %v3939
        %v4122 = vpack.c.b16 %v3944, %v3942
        %v4123 = vpack.c.b16 %v3945, %v3943
        %v4124 = vpack.c.b16 %v3948, %v3946
        %v4125 = vpack.c.b16 %v3949, %v3947
        %v4126 = vpack.c.b16 %v3952, %v3950
        %v4127 = vpack.c.b16 %v3953, %v3951
        %v4128 = vpack.c.b16 %v3956, %v3954
        %v4129 = vpack.c.b16 %v3957, %v3955
        %v4130 = vpack.c.b16 %v3960, %v3958
        %v4131 = vpack.c.b16 %v3961, %v3959
        %v4132 = vpack.c.b16 %v3964, %v3962
        %v4133 = vpack.c.b16 %v3965, %v3963
        %v4134 = vpack.c.b16 %v3968, %v3966
        %v4135 = vpack.c.b16 %v3969, %v3967
        %v4136 = vpack.c.b16 %v3972, %v3970
        %v4137 = vpack.c.b16 %v3973, %v3971
        %v4138 = vpack.c.b16 %v3976, %v3974
        %v4139 = vpack.c.b16 %v3977, %v3975
        %v4140 = vpack.c.b16 %v3980, %v3978
        %v4141 = vpack.c.b16 %v3981, %v3979
        %v4142 = vpack.c.b16 %v3984, %v3982
        %v4143 = vpack.c.b16 %v3985, %v3983
        %v4144 = vpack.c.b16 %v3988, %v3986
        %v4145 = vpack.c.b16 %v3989, %v3987
        %v4146 = vpack.c.b16 %v3992, %v3990
        %v4147 = vpack.c.b16 %v3993, %v3991
        %v4148 = vpack.c.b16 %v3996, %v3994
        %v4149 = vpack.c.b16 %v3997, %v3995
        %v4150 = vpack.c.b16 %v4000, %v3998
        %v4151 = vpack.c.b16 %v4001, %v3999
        %v4152 = vpack.c.b16 %v4004, %v4002
        %v4153 = vpack.c.b16 %v4005, %v4003
        %v4154 = vpack.c.b16 %v4008, %v4006
        %v4155 = vpack.c.b16 %v4009, %v4007
        %v4156 = vpack.c.b16 %v4012, %v4010
        %v4157 = vpack.c.b16 %v4013, %v4011
        %v4158 = vpack.c.b16 %v4016, %v4014
        %v4159 = vpack.c.b16 %v4017, %v4015
        %v4160 = vpack.c.b16 %v4020, %v4018
        %v4161 = vpack.c.b16 %v4021, %v4019
        %v4162 = vpack.c.b16 %v4024, %v4022
        %v4163 = vpack.c.b16 %v4025, %v4023
        %v4164 = vpack.c.b16 %v4028, %v4026
        %v4165 = vpack.c.b16 %v4029, %v4027
        %v4166 = vpack.c.b16 %v4032, %v4030
        %v4167 = vpack.c.b16 %v4033, %v4031
        %v4168 = vpack.c.b16 %v4036, %v4034
        %v4169 = vpack.c.b16 %v4037, %v4035
        %v4170 = vpack.c.b16 %v4040, %v4038
        %v4171 = vpack.c.b16 %v4041, %v4039
        %v4172 = vpack.c.b16 %v4044, %v4042
        %v4173 = vpack.c.b16 %v4045, %v4043
        %4302 = vmatprep.subr.bf16.mxu0 %v4047
        %4303 = vmatpush1.bf16.msra.mxu0 %v4046
        %4304 = vmatprep.subr.bf16.mxu0 %v4049
        %4305 = vmatpush1.bf16.msra.mxu0 %v4048
        %4306 = vmatprep.subr.bf16.mxu0 %v4051
        %4307 = vmatpush1.bf16.msra.mxu0 %v4050
        %4308 = vmatprep.subr.bf16.mxu0 %v4053
        %4309 = vmatpush1.bf16.msra.mxu0 %v4052
        %4310 = vmatprep.subr.bf16.mxu0 %v4055
        %4311 = vmatpush1.bf16.msra.mxu0 %v4054
        %4312 = vmatprep.subr.bf16.mxu0 %v4057
        %4313 = vmatpush1.bf16.msra.mxu0 %v4056
        %4314 = vmatprep.subr.bf16.mxu0 %v4059
        %4315 = vmatpush1.bf16.msra.mxu0 %v4058
        %4316 = vmatprep.subr.bf16.mxu0 %v4061
        %4317 = vmatpush1.bf16.msra.mxu0 %v4060
        %4318 = vmatprep.subr.bf16.mxu0 %v4063
        %4319 = vmatpush1.bf16.msra.mxu0 %v4062
        %4320 = vmatprep.subr.bf16.mxu0 %v4065
        %4321 = vmatpush1.bf16.msra.mxu0 %v4064
        %4322 = vmatprep.subr.bf16.mxu0 %v4067
        %4323 = vmatpush1.bf16.msra.mxu0 %v4066
        %4324 = vmatprep.subr.bf16.mxu0 %v4069
        %4325 = vmatpush1.bf16.msra.mxu0 %v4068
        %4326 = vmatprep.subr.bf16.mxu0 %v4071
        %4327 = vmatpush1.bf16.msra.mxu0 %v4070
        %4328 = vmatprep.subr.bf16.mxu0 %v4073
        %4329 = vmatpush1.bf16.msra.mxu0 %v4072
        %4330 = vmatprep.subr.bf16.mxu0 %v4075
        %4331 = vmatpush1.bf16.msra.mxu0 %v4074
        %4332 = vmatprep.subr.bf16.mxu0 %v4077
        %4333 = vmatpush1.bf16.msra.mxu0 %v4076
        %4334 = vmatprep.mubr.bf16.mxu0 %v3515
        %4335 = vmatmul.mubr.bf16.gmra.mrb[0].mxu0 %v3514
        %v4336 = vpop.f32.mrb[0].mxu0
        %v4337 = vadd.f32 %v3655, %v4336
        %v4338 = vpop.f32.mrb[0].mxu0
        %v4339 = vadd.f32 %v3659, %v4338
        %v4340 = vpop.f32.mrb[0].mxu0
        %v4341 = vadd.f32 %v3655, %v4340
        %v4342 = vpop.f32.mrb[0].mxu0
        %v4343 = vadd.f32 %v3659, %v4342
        %4344 = vdwg.mxu0
        %4345 = vmatprep.subr.bf16.mxu0 %v4079
        %4346 = vmatpush1.bf16.msra.mxu0 %v4078
        %4347 = vmatprep.subr.bf16.mxu0 %v4081
        %4348 = vmatpush1.bf16.msra.mxu0 %v4080
        %4349 = vmatprep.subr.bf16.mxu0 %v4083
        %4350 = vmatpush1.bf16.msra.mxu0 %v4082
        %4351 = vmatprep.subr.bf16.mxu0 %v4085
        %4352 = vmatpush1.bf16.msra.mxu0 %v4084
        %4353 = vmatprep.subr.bf16.mxu0 %v4087
        %4354 = vmatpush1.bf16.msra.mxu0 %v4086
        %4355 = vmatprep.subr.bf16.mxu0 %v4089
        %4356 = vmatpush1.bf16.msra.mxu0 %v4088
        %4357 = vmatprep.subr.bf16.mxu0 %v4091
        %4358 = vmatpush1.bf16.msra.mxu0 %v4090
        %4359 = vmatprep.subr.bf16.mxu0 %v4093
        %4360 = vmatpush1.bf16.msra.mxu0 %v4092
        %4361 = vmatprep.subr.bf16.mxu0 %v4095
        %4362 = vmatpush1.bf16.msra.mxu0 %v4094
        %4363 = vmatprep.subr.bf16.mxu0 %v4097
        %4364 = vmatpush1.bf16.msra.mxu0 %v4096
        %4365 = vmatprep.subr.bf16.mxu0 %v4099
        %4366 = vmatpush1.bf16.msra.mxu0 %v4098
        %4367 = vmatprep.subr.bf16.mxu0 %v4101
        %4368 = vmatpush1.bf16.msra.mxu0 %v4100
        %4369 = vmatprep.subr.bf16.mxu0 %v4103
        %4370 = vmatpush1.bf16.msra.mxu0 %v4102
        %4371 = vmatprep.subr.bf16.mxu0 %v4105
        %4372 = vmatpush1.bf16.msra.mxu0 %v4104
        %4373 = vmatprep.subr.bf16.mxu0 %v4107
        %4374 = vmatpush1.bf16.msra.mxu0 %v4106
        %4375 = vmatprep.subr.bf16.mxu0 %v4109
        %4376 = vmatpush1.bf16.msra.mxu0 %v4108
        %4377 = vmatprep.mubr.bf16.mxu0 %v3517
        %4378 = vmatmul.mubr.bf16.gmra.mrb[0].mxu0 %v3516
        %v4379 = vpop.f32.mrb[0].mxu0
        %v4380 = vadd.f32 %v4337, %v4379
        %v4381 = vpop.f32.mrb[0].mxu0
        %v4382 = vadd.f32 %v4339, %v4381
        %v4383 = vpop.f32.mrb[0].mxu0
        %v4384 = vadd.f32 %v4341, %v4383
        %v4385 = vpop.f32.mrb[0].mxu0
        %v4386 = vadd.f32 %v4343, %v4385
        %4387 = vdwg.mxu0
        %4388 = vmatprep.subr.bf16.mxu0 %v4111
        %4389 = vmatpush1.bf16.msra.mxu0 %v4110
        %4390 = vmatprep.subr.bf16.mxu0 %v4113
        %4391 = vmatpush1.bf16.msra.mxu0 %v4112
        %4392 = vmatprep.subr.bf16.mxu0 %v4115
        %4393 = vmatpush1.bf16.msra.mxu0 %v4114
        %4394 = vmatprep.subr.bf16.mxu0 %v4117
        %4395 = vmatpush1.bf16.msra.mxu0 %v4116
        %4396 = vmatprep.subr.bf16.mxu0 %v4119
        %4397 = vmatpush1.bf16.msra.mxu0 %v4118
        %4398 = vmatprep.subr.bf16.mxu0 %v4121
        %4399 = vmatpush1.bf16.msra.mxu0 %v4120
        %4400 = vmatprep.subr.bf16.mxu0 %v4123
        %4401 = vmatpush1.bf16.msra.mxu0 %v4122
        %4402 = vmatprep.subr.bf16.mxu0 %v4125
        %4403 = vmatpush1.bf16.msra.mxu0 %v4124
        %4404 = vmatprep.subr.bf16.mxu0 %v4127
        %4405 = vmatpush1.bf16.msra.mxu0 %v4126
        %4406 = vmatprep.subr.bf16.mxu0 %v4129
        %4407 = vmatpush1.bf16.msra.mxu0 %v4128
        %4408 = vmatprep.subr.bf16.mxu0 %v4131
        %4409 = vmatpush1.bf16.msra.mxu0 %v4130
        %4410 = vmatprep.subr.bf16.mxu0 %v4133
        %4411 = vmatpush1.bf16.msra.mxu0 %v4132
        %4412 = vmatprep.subr.bf16.mxu0 %v4135
        %4413 = vmatpush1.bf16.msra.mxu0 %v4134
        %4414 = vmatprep.subr.bf16.mxu0 %v4137
        %4415 = vmatpush1.bf16.msra.mxu0 %v4136
        %4416 = vmatprep.subr.bf16.mxu0 %v4139
        %4417 = vmatpush1.bf16.msra.mxu0 %v4138
        %4418 = vmatprep.subr.bf16.mxu0 %v4141
        %4419 = vmatpush1.bf16.msra.mxu0 %v4140
        %4420 = vmatprep.mubr.bf16.mxu0 %v3519
        %4421 = vmatmul.mubr.bf16.gmra.mrb[0].mxu0 %v3518
        %v4422 = vpop.f32.mrb[0].mxu0
        %v4423 = vadd.f32 %v4380, %v4422
        %v4424 = vpop.f32.mrb[0].mxu0
        %v4425 = vadd.f32 %v4382, %v4424
        %v4426 = vpop.f32.mrb[0].mxu0
        %v4427 = vadd.f32 %v4384, %v4426
        %v4428 = vpop.f32.mrb[0].mxu0
        %v4429 = vadd.f32 %v4386, %v4428
        %4430 = vdwg.mxu0
        %4431 = vmatprep.subr.bf16.mxu0 %v4143
        %4432 = vmatpush1.bf16.msra.mxu0 %v4142
        %4433 = vmatprep.subr.bf16.mxu0 %v4145
        %4434 = vmatpush1.bf16.msra.mxu0 %v4144
        %4435 = vmatprep.subr.bf16.mxu0 %v4147
        %4436 = vmatpush1.bf16.msra.mxu0 %v4146
        %4437 = vmatprep.subr.bf16.mxu0 %v4149
        %4438 = vmatpush1.bf16.msra.mxu0 %v4148
        %4439 = vmatprep.subr.bf16.mxu0 %v4151
        %4440 = vmatpush1.bf16.msra.mxu0 %v4150
        %4441 = vmatprep.subr.bf16.mxu0 %v4153
        %4442 = vmatpush1.bf16.msra.mxu0 %v4152
        %4443 = vmatprep.subr.bf16.mxu0 %v4155
        %4444 = vmatpush1.bf16.msra.mxu0 %v4154
        %4445 = vmatprep.subr.bf16.mxu0 %v4157
        %4446 = vmatpush1.bf16.msra.mxu0 %v4156
        %4447 = vmatprep.subr.bf16.mxu0 %v4159
        %4448 = vmatpush1.bf16.msra.mxu0 %v4158
        %4449 = vmatprep.subr.bf16.mxu0 %v4161
        %4450 = vmatpush1.bf16.msra.mxu0 %v4160
        %4451 = vmatprep.subr.bf16.mxu0 %v4163
        %4452 = vmatpush1.bf16.msra.mxu0 %v4162
        %4453 = vmatprep.subr.bf16.mxu0 %v4165
        %4454 = vmatpush1.bf16.msra.mxu0 %v4164
        %4455 = vmatprep.subr.bf16.mxu0 %v4167
        %4456 = vmatpush1.bf16.msra.mxu0 %v4166
        %4457 = vmatprep.subr.bf16.mxu0 %v4169
        %4458 = vmatpush1.bf16.msra.mxu0 %v4168
        %4459 = vmatprep.subr.bf16.mxu0 %v4171
        %4460 = vmatpush1.bf16.msra.mxu0 %v4170
        %4461 = vmatprep.subr.bf16.mxu0 %v4173
        %4462 = vmatpush1.bf16.msra.mxu0 %v4172
        %4463 = vmatprep.mubr.bf16.mxu0 %v3521
        %4464 = vmatmul.mubr.bf16.gmra.mrb[0].mxu0 %v3520
        %v4465 = vpop.f32.mrb[0].mxu0
        %v4466 = vadd.f32 %v4423, %v4465
        %v4467 = vpop.f32.mrb[0].mxu0
        %v4468 = vadd.f32 %v4425, %v4467
        %v4469 = vpop.f32.mrb[0].mxu0
        %v4470 = vadd.f32 %v4427, %v4469
        %v4471 = vpop.f32.mrb[0].mxu0
        %v4472 = vadd.f32 %v4429, %v4471
        %4473 = vdwg.mxu0
        %v4474 = vadd.f32 %v2334, %v4466
        %v4475 = vadd.f32 %v2335, %v4468
        %v4476 = vadd.f32 %v2336, %v4470
        %v4477 = vadd.f32 %v2337, %v4472
        %p4478 = scmp.lt.s32.totalorder %s40, 1
        // Predicated region
        $region109: #{clip_text_forward.1} parent=83 // pred_check
          %p4479 = pneg %p4478
        $region110: #{clip_text_forward.1} parent=83 // pred_check_branch
          %4481 = sbr.rel (%p4479) target = $region112
        $region111: #{clip_text_forward.1} parent=83 // pred_region
          %4482 = vst [vmem:[#allocation12] sm:$0xff] %v4474
          %4483 = vst [vmem:[#allocation12 + $0x8] sm:$0xff] %v4475
          %4484 = vst [vmem:[#allocation12 + $0x10] sm:$0xff] %v4476
          %4485 = vst [vmem:[#allocation12 + $0x18] sm:$0xff] %v4477
        $region112: #{clip_text_forward.1} parent=83 // pred_fallthru
          _
        %p4486 = scmp.eq.s32.totalorder %s40, 1
        // Predicated region
        $region113: #{clip_text_forward.1} parent=83 // pred_check
          %p4487 = pneg %p4486
        $region114: #{clip_text_forward.1} parent=83 // pred_check_branch
          %4489 = sbr.rel (%p4487) target = $region116
        $region115: #{clip_text_forward.1} parent=83 // pred_region
          %v4490 = vld [vmem:[%s14] sm:$0x3]
          %v4491 = vld [vmem:[%s15] sm:$0x3]
          %v4492 = vadd.f32 %v4474, %v4475
          %4493 = vadd.xlane.f32.xlu0 %v4492
          %v4494 = vpop.xlane.xlu0 %4493
          %v4495 = vadd.f32 %v4476, %v4477
          %4496 = vadd.xlane.f32.xlu0 %v4495
          %v4497 = vpop.xlane.xlu0 %4496
          %v4498 = vmul.f32 %v4494, %v847
          %v4499 = vmul.f32 %v4497, %v847
          %v4500 = vsub.f32 %v4474, %v4498
          %v4501 = vsub.f32 %v4475, %v4498
          %v4502 = vsub.f32 %v4476, %v4499
          %v4503 = vsub.f32 %v4477, %v4499
          %v4504 = vmul.f32 %v4500, %v4500
          %v4505 = vmul.f32 %v4501, %v4501
          %v4506 = vmul.f32 %v4502, %v4502
          %v4507 = vmul.f32 %v4503, %v4503
          %v4508 = vadd.f32 %v4504, %v4505
          %4509 = vadd.xlane.f32.xlu0 %v4508
          %v4510 = vpop.xlane.xlu0 %4509
          %v4511 = vadd.f32 %v4506, %v4507
          %4512 = vadd.xlane.f32.xlu0 %v4511
          %v4513 = vpop.xlane.xlu0 %4512
          %v4514 = vmul.f32 %v4510, %v847
          %v4515 = vmul.f32 %v4513, %v847
          %v4516 = vadd.f32 %v4514, 1e-05
          %v4517 = vadd.f32 %v4515, 1e-05
          %v4518 = vrsqrt.pop %v4516
          %v4519 = vrsqrt.pop %v4517
          %v4520 = vmul.f32 %v4500, %v4518
          %v4521 = vmul.f32 %v4501, %v4518
          %v4522 = vmul.f32 %v4502, %v4519
          %v4523 = vmul.f32 %v4503, %v4519
          %v4525 = vlaneseq
          %v4526 = vshrl.u32 %v4525, 7
          %v4527 = vsub.s32 0, %v4526
          %v4528 = vrot.slane %v4490, %v4527
          %v4529 = vlaneseq
          %v4530 = vshrl.u32 %v4529, 7
          %v4531 = vsub.s32 1, %v4530
          %v4532 = vrot.slane %v4490, %v4531
          %v4535 = vmul.f32 %v4520, %v4528
          %v4536 = vmul.f32 %v4521, %v4532
          %v4537 = vmul.f32 %v4522, %v4528
          %v4538 = vmul.f32 %v4523, %v4532
          %v4540 = vlaneseq
          %v4541 = vshrl.u32 %v4540, 7
          %v4542 = vsub.s32 0, %v4541
          %v4543 = vrot.slane %v4491, %v4542
          %v4544 = vlaneseq
          %v4545 = vshrl.u32 %v4544, 7
          %v4546 = vsub.s32 1, %v4545
          %v4547 = vrot.slane %v4491, %v4546
          %v4550 = vadd.f32 %v4535, %v4543
          %v4551 = vadd.f32 %v4536, %v4547
          %v4552 = vadd.f32 %v4537, %v4543
          %v4553 = vadd.f32 %v4538, %v4547
          %4554 = vst [vmem:[#allocation12] sm:$0xff] %v4550
          %4555 = vst [vmem:[#allocation12 + $0x8] sm:$0xff] %v4551
          %4556 = vst [vmem:[#allocation12 + $0x10] sm:$0xff] %v4552
          %4557 = vst [vmem:[#allocation12 + $0x18] sm:$0xff] %v4553
        $region116: #{clip_text_forward.1} parent=83 // pred_fallthru
          _
        // Predicated region
        $region117: #{clip_text_forward.1} parent=83 // pred_check
          %p4558 = pneg %p466
        $region118: #{clip_text_forward.1} parent=83 // pred_check_branch
          %4560 = sbr.rel (%p4558) target = $region120
        $region119: #{clip_text_forward.1} parent=83 // pred_region
          %s4561 = smul.u32 2, %s39
          %s4563 = ssub.s32 512, 512
          %4564 = vsyncadd [#allocation5], %s4563
          %s4565 = smul.addr %s4561, 2
          %s4566 = smul.addr %s4565, 128
          %s4567 = scalar_lea.hbm %s16, %s4566
          %s4568 = sshll.u32 [#allocation12], 4
          %s4569 = int_to_ptr.vmem [resolvable:$true] %s4568
          %4574 = dma.vmem_to_hbm [thread:$0]  %s4569, 512, %s4567, [#allocation5], 256, 256, 16
        $region120: #{clip_text_forward.1} parent=83 // pred_fallthru
          _
        // Predicated region
        $region121: #{clip_text_forward.1} parent=83 // pred_check
          %p4575 = pneg %p466
        $region122: #{clip_text_forward.1} parent=83 // pred_check_branch
          %4577 = sbr.rel (%p4575) target = $region124
        $region123: #{clip_text_forward.1} parent=83 // pred_region
          %4578 = dma.done [#allocation5], 512
        $region124: #{clip_text_forward.1} parent=83 // pred_fallthru
          _
      $region84: #{clip_text_forward.1} parent=5 // pred_fallthru
        _
      %p4579 = scmp.le.s32.totalorder 2, %s30
      // Predicated region
      $region125: #{clip_text_forward.1} parent=5 // pred_check
        %p4580 = pneg %p4579
      $region126: #{clip_text_forward.1} parent=5 // pred_check_branch
        %4582 = sbr.rel (%p4580) target = $region128
      $region127: #{clip_text_forward.1} parent=5 // pred_region
        %s4583 = ssub.s32 %s30, 2
      $region128: #{clip_text_forward.1} parent=5 // pred_fallthru
        _
    $region6: #{clip_text_forward.1} parent=1 // loop_footer
      %s34 = sadd.s32 1, %s30
    $region7: #{clip_text_forward.1} parent=1 // loop_footer_branch
      %29 = sbr.rel target = $region3
    $region8: #{clip_text_forward.1} parent=1 // loop_exit
      _
    %4584 = vsyncpa [#allocation4], 1
    %s4585 = scalar_lea.sflag [#allocation4], 1
    %4586 = vsyncpa %s4585, 1
    %4587 = vsyncpa [#allocation7], 1
    %s4588 = scalar_lea.sflag [#allocation7], 1
    %4589 = vsyncpa %s4588, 1
    %4590 = vsyncpa [#allocation10], 1
    %s4591 = scalar_lea.sflag [#allocation10], 1
    %4592 = vsyncpa %s4591, 1
    %4593 = vsyncpa [#allocation5], 1
    %s4594 = scalar_lea.sflag [#allocation5], 1
    %4595 = vsyncpa %s4594, 1

</llo_original>
